<compile_context>
chip_gen: v7x
topology: tpu7x:2x2x1
jax: 0.10.0
libtpu: 0.0.40
codegen_flags: <defaults>
</compile_context>

<pallas_src>
import functools
import math

import jax
import jax.numpy as jnp
from jax.experimental import pallas as pl
from jax.experimental.pallas import tpu as pltpu

_INV_SQRT2 = 1.0 / math.sqrt(2.0)


def _gelu(x):
    # exact (erf-based) GELU, matching torch.nn.functional.gelu default
    return 0.5 * x * (1.0 + jax.lax.erf(x * _INV_SQRT2))


def _round_up(n, m):
    return ((n + m - 1) // m) * m


def _pick_tile(n, cap=2048):
    """Largest lane tile (multiple of 128, <= cap) with the least padding."""
    n_up = _round_up(n, 128)
    if n_up <= cap:
        return n_up, n_up - n
    best_t, best_pad = None, None
    for t in range(cap, 127, -128):
        pad = (-n) % t
        if best_pad is None or pad < best_pad:
            best_t, best_pad = t, pad
            if pad == 0:
                break
    return best_t, best_pad


def _pick_co_block(co):
    # 8 keeps the output block's second-minor dim sublane-full; otherwise take
    # the whole Co (block dim == full array dim is always legal).
    return 8 if co % 8 == 0 else co


# ---------------------------------------------------------------------------
# Pallas kernels
# ---------------------------------------------------------------------------
def _fc0_kernel(x_ref, g_ref, wt_ref, wg_ref, b_ref, o_ref):
    # Lift, channel-last in / channel-first lane-dense out.
    #   x : (1, ts, 64)   g : (3, ts)   wt : (width, 64)   wg : (width, 3)
    #   b : (width, 1)    o : (1, width, ts)
    x = x_ref[0]                                               # (ts, 64)
    y = jax.lax.dot_general(                                   # wt @ x.T -> (width, ts)
        wt_ref[...], x,
        dimension_numbers=(((1,), (1,)), ((), ())),
        preferred_element_type=jnp.float32)
    g = g_ref[...]                                             # (3, ts)
    wg = wg_ref[...]                                           # (width, 3)
    # grid-coordinate channels as three rank-1 VPU updates (no HBM concat)
    y = y + wg[:, 0:1] * g[0:1, :]
    y = y + wg[:, 1:2] * g[1:2, :]
    y = y + wg[:, 2:3] * g[2:3, :]
    o_ref[0] = (y + b_ref[...]).astype(o_ref.dtype)


def _head_kernel(x_ref, w1t_ref, b1_ref, w2t_ref, b2_ref, o_ref):
    # Fused fc1 + GELU + fc2, channel-first.  The (128, ts) intermediate never
    # leaves VMEM; output (1, 2, ts) is lane-dense.
    h = jnp.dot(w1t_ref[...], x_ref[0], preferred_element_type=jnp.float32)
    h = _gelu(h + b1_ref[...])
    y = jnp.dot(w2t_ref[...], h, preferred_element_type=jnp.float32) + b2_ref[...]
    o_ref[0] = y.astype(o_ref.dtype)


def _conv1x1_kernel(x_ref, y1_ref, w_ref, b_ref, o_ref, *, activation):
    # channel-first 1x1 conv fused with spectral-branch add (+GELU).
    #   x: (1, Ci, ts)  y1: (1, Co, ts)  w: (Co, Ci)  b: (Co, 1)  o: (1, Co, ts)
    y = jnp.dot(w_ref[...], x_ref[0], preferred_element_type=jnp.float32)
    y = y + b_ref[...] + y1_ref[0]
    if activation:
        y = _gelu(y)
    o_ref[0] = y.astype(o_ref.dtype)


def _spectral_kernel(xr_ref, xi_ref, wr_ref, wi_ref, or_ref, oi_ref, *, co_blk):
    # One (Co-block, batch-element) grid step; corners folded into the lane axis.
    #   xr/xi : (1, Ci, Mp)     wr/wi : (co_blk, Ci, Mp)     out : (1, co_blk, Mp)
    # out[o, m] = sum_i x[i, m] * w[o, i, m]   (complex, plain 4-multiply)
    xr = xr_ref[0]                                 # (Ci, Mp)
    xi = xi_ref[0]
    for o in range(co_blk):                        # small static unroll (<= 8)
        wr = wr_ref[o]                             # (Ci, Mp)
        wi = wi_ref[o]
        or_ref[0, o:o + 1, :] = jnp.sum(xr * wr - xi * wi, axis=0, keepdims=True)
        oi_ref[0, o:o + 1, :] = jnp.sum(xr * wi + xi * wr, axis=0, keepdims=True)


# ---------------------------------------------------------------------------
# Pallas wrappers
# ---------------------------------------------------------------------------
def pallas_fc0(x64, gcoords, wt, wg, b, tile_cap=2048):
    """x64: (B, S, 64) channel-last, gcoords: (3, S) -> (B, width, S) channel-first."""
    B, S, C = x64.shape
    width = wt.shape[0]
    ts, pad = _pick_tile(S, tile_cap)
    if pad:
        x64 = jnp.pad(x64, ((0, 0), (0, pad), (0, 0)))
        gcoords = jnp.pad(gcoords, ((0, 0), (0, pad)))
    Sp = S + pad
    out = pl.pallas_call(
        _fc0_kernel,
        grid=(B, Sp // ts),
        in_specs=[pl.BlockSpec((1, ts, C), lambda b_, j: (b_, j, 0)),
                  pl.BlockSpec((3, ts), lambda b_, j: (0, j)),
                  pl.BlockSpec((width, C), lambda b_, j: (0, 0)),
                  pl.BlockSpec((width, 3), lambda b_, j: (0, 0)),
                  pl.BlockSpec((width, 1), lambda b_, j: (0, 0))],
        out_specs=pl.BlockSpec((1, width, ts), lambda b_, j: (b_, 0, j)),
        out_shape=jax.ShapeDtypeStruct((B, width, Sp), jnp.float32),
        compiler_params=pltpu.CompilerParams(
            dimension_semantics=("parallel", "parallel")),
    )(x64, gcoords, wt, wg, b)
    return out[..., :S] if pad else out


def pallas_head(x_cf, w1t, b1, w2t, b2, tile_cap=2048):
    """Fused fc1 + GELU + fc2, channel-first: (B, width, S) -> (B, 2, S)."""
    B, width, S = x_cf.shape
    ch = w1t.shape[0]
    cout = w2t.shape[0]
    ts, pad = _pick_tile(S, tile_cap)
    if pad:
        x_cf = jnp.pad(x_cf, ((0, 0), (0, 0), (0, pad)))
    Sp = S + pad
    out = pl.pallas_call(
        _head_kernel,
        grid=(B, Sp // ts),
        in_specs=[pl.BlockSpec((1, width, ts), lambda b_, j: (b_, 0, j)),
                  pl.BlockSpec((ch, width), lambda b_, j: (0, 0)),
                  pl.BlockSpec((ch, 1), lambda b_, j: (0, 0)),
                  pl.BlockSpec((cout, ch), lambda b_, j: (0, 0)),
                  pl.BlockSpec((cout, 1), lambda b_, j: (0, 0))],
        out_specs=pl.BlockSpec((1, cout, ts), lambda b_, j: (b_, 0, j)),
        out_shape=jax.ShapeDtypeStruct((B, cout, Sp), jnp.float32),
        compiler_params=pltpu.CompilerParams(
            dimension_semantics=("parallel", "parallel")),
    )(x_cf, w1t, b1, w2t, b2)
    return out[..., :S] if pad else out


def pallas_conv1x1_add(x, y1, w, b, activation, tile_cap=2048):
    """act( w @ x + b + y1 ) channel-first.  x, y1: (B, C, X, Y, Tp)."""
    B, Ci, X, Y, Tp = x.shape
    Co = w.shape[0]
    S = X * Y * Tp
    x3 = x.reshape(B, Ci, S)
    y3 = y1.reshape(B, Co, S)
    ts, pad = _pick_tile(S, tile_cap)
    if pad:
        x3 = jnp.pad(x3, ((0, 0), (0, 0), (0, pad)))
        y3 = jnp.pad(y3, ((0, 0), (0, 0), (0, pad)))
    Sp = S + pad
    out = pl.pallas_call(
        functools.partial(_conv1x1_kernel, activation=activation),
        grid=(B, Sp // ts),
        in_specs=[pl.BlockSpec((1, Ci, ts), lambda b_, j: (b_, 0, j)),
                  pl.BlockSpec((1, Co, ts), lambda b_, j: (b_, 0, j)),
                  pl.BlockSpec((Co, Ci), lambda b_, j: (0, 0)),
                  pl.BlockSpec((Co, 1), lambda b_, j: (0, 0))],
        out_specs=pl.BlockSpec((1, Co, ts), lambda b_, j: (b_, 0, j)),
        out_shape=jax.ShapeDtypeStruct((B, Co, Sp), jnp.float32),
        compiler_params=pltpu.CompilerParams(
            dimension_semantics=("parallel", "parallel")),
    )(x3, y3, w, b)
    if pad:
        out = out[..., :S]
    return out.reshape(B, Co, X, Y, Tp)


def spectral_conv3d(x_cf, wr, wi, m1, m2, m3):
    """x_cf: (B, Ci, X, Y, Tp) f32 -> (B, Co, X, Y, Tp) f32.

    wr/wi: (Co, Ci, Mp) real/imag spectral weights with the 4 low/high corner
    blocks concatenated along the mode (lane) axis and padded to Mp lanes.
    """
    B, Ci, X, Y, Tp = x_cf.shape
    Co, _, Mp = wr.shape
    M = m1 * m2 * m3
    M4 = 4 * M

    # TODO(synk): rfftn / irfftn have no Pallas TPU equivalent (XLA FFT glue).
    x_ft = jnp.fft.rfftn(x_cf, axes=(2, 3, 4))               # (B, Ci, X, Y, Tf) c64
    Tf = x_ft.shape[-1]

    xs_lo, xs_hi = slice(0, m1), slice(X - m1, X)
    ys_lo, ys_hi = slice(0, m2), slice(Y - m2, Y)

    def corner(sx, sy):
        return x_ft[:, :, sx, sy, :m3].reshape(B, Ci, M)

    xc = jnp.concatenate([corner(xs_lo, ys_lo), corner(xs_hi, ys_lo),
                          corner(xs_lo, ys_hi), corner(xs_hi, ys_hi)],
                         axis=-1)                             # (B, Ci, 4M) c64
    xr = jnp.real(xc)
    xi = jnp.imag(xc)
    if Mp > M4:
        mode_pad = ((0, 0), (0, 0), (0, Mp - M4))
        xr = jnp.pad(xr, mode_pad)
        xi = jnp.pad(xi, mode_pad)

    co_blk = _pick_co_block(Co)
    grid = (Co // co_blk, B)                                  # >= 2 parallel steps when B >= 2
    x_spec = pl.BlockSpec((1, Ci, Mp), lambda j, b_: (b_, 0, 0))
    w_spec = pl.BlockSpec((co_blk, Ci, Mp), lambda j, b_: (j, 0, 0))
    o_spec = pl.BlockSpec((1, co_blk, Mp), lambda j, b_: (b_, j, 0))

    or_, oi_ = pl.pallas_call(
        functools.partial(_spectral_kernel, co_blk=co_blk),
        grid=grid,
        in_specs=[x_spec, x_spec, w_spec, w_spec],
        out_specs=[o_spec, o_spec],
        out_shape=[jax.ShapeDtypeStruct((B, Co, Mp), jnp.float32)] * 2,
        compiler_params=pltpu.CompilerParams(
            dimension_semantics=("parallel", "parallel")),
    )(xr, xi, wr, wi)

    oc = jax.lax.complex(or_[..., :M4], oi_[..., :M4])        # (B, Co, 4M)
    oc = oc.reshape(B, Co, 4, m1, m2, m3)

    out_ft = jnp.zeros((B, Co, X, Y, Tf), jnp.complex64)
    out_ft = out_ft.at[:, :, xs_lo, ys_lo, :m3].set(oc[:, :, 0])
    out_ft = out_ft.at[:, :, xs_hi, ys_lo, :m3].set(oc[:, :, 1])
    out_ft = out_ft.at[:, :, xs_lo, ys_hi, :m3].set(oc[:, :, 2])
    out_ft = out_ft.at[:, :, xs_hi, ys_hi, :m3].set(oc[:, :, 3])

    return jnp.fft.irfftn(out_ft, s=(X, Y, Tp), axes=(2, 3, 4)).astype(jnp.float32)


# ---------------------------------------------------------------------------
# Model glue & parameter init (kernel-layout weights precomputed here)
# ---------------------------------------------------------------------------
def make_grid_coords(X, Y, T):
    """(3, X*Y*T) f32 coordinate table: gridx, gridy, gridz (flattened x,y,t)."""
    gx = jnp.broadcast_to(jnp.linspace(0.0, 1.0, X)[:, None, None], (X, Y, T))
    gy = jnp.broadcast_to(jnp.linspace(0.0, 1.0, Y)[None, :, None], (X, Y, T))
    gz = jnp.broadcast_to(jnp.linspace(0.0, 1.0, T)[None, None, :], (X, Y, T))
    return jnp.stack([gx.reshape(-1), gy.reshape(-1), gz.reshape(-1)],
                     axis=0).astype(jnp.float32)


def _prep_spectral_weights(key, ci, co, m1, m2, m3, scale):
    """Kernel-layout spectral weights: (Co, Ci, Mp) real & imag, corners folded
    into the mode axis (4*M modes) and zero-padded to a multiple of 128."""
    M = m1 * m2 * m3
    M4 = 4 * M
    Mp = _round_up(M4, 128)
    keys = jax.random.split(key, 8)
    wrs, wis = [], []
    for c in range(4):
        w_re = scale * jax.random.uniform(keys[2 * c], (ci, co, m1, m2, m3), jnp.float32)
        w_im = scale * jax.random.uniform(keys[2 * c + 1], (ci, co, m1, m2, m3), jnp.float32)
        wrs.append(w_re.reshape(ci, co, M).transpose(1, 0, 2))   # (Co, Ci, M)
        wis.append(w_im.reshape(ci, co, M).transpose(1, 0, 2))
    wr = jnp.concatenate(wrs, axis=-1)                           # (Co, Ci, 4M)
    wi = jnp.concatenate(wis, axis=-1)
    if Mp > M4:
        wr = jnp.pad(wr, ((0, 0), (0, 0), (0, Mp - M4)))
        wi = jnp.pad(wi, ((0, 0), (0, 0), (0, Mp - M4)))
    return wr, wi


def init_params(key, width, m1, m2, m3):
    p = {}
    keys = iter(jax.random.split(key, 32))

    def unif(shape, lo=-0.1, hi=0.1):
        return jax.random.uniform(next(keys), shape, jnp.float32, lo, hi)

    # fc0: Linear(67 -> width); stored transposed & split for the channel-first kernel
    w0 = unif((67, width))
    p["fc0_wt"] = jnp.transpose(w0[:64])     # (width, 64): 64 data channels
    p["fc0_wg"] = jnp.transpose(w0[64:])     # (width, 3): gridx, gridy, gridz
    p["fc0_b"] = unif((width, 1))

    scale = 1.0 / (width * width)
    for l in range(4):
        wr, wi = _prep_spectral_weights(next(keys), width, width, m1, m2, m3, scale)
        p[f"conv{l}_wr"], p[f"conv{l}_wi"] = wr, wi
        # 1x1 Conv3d (width -> width): (Co, Ci) + bias (Co, 1) (kernel layout)
        p[f"w{l}_w"] = unif((width, width))
        p[f"w{l}_b"] = unif((width, 1))

    # fc1: Linear(width -> 128), fc2: Linear(128 -> 2), stored transposed
    p["fc1_wt"] = unif((128, width))
    p["fc1_b"] = unif((128, 1))
    p["fc2_wt"] = unif((2, 128))
    p["fc2_b"] = unif((2, 1))
    return p


def fno3d_binseg_forward(x, params, m1, m2, m3, padding=6):
    # x: (B, X, Y, T, 64) float32 -> out: (B, X, Y, T, 2)
    B, X, Y, T, Cin = x.shape
    width = params["fc0_wt"].shape[0]
    S = X * Y * T

    # Lift (fc0): channel-last rows in, lane-dense channel-first out.
    gcoords = make_grid_coords(B and X, Y, T) if False else make_grid_coords(X, Y, T)
    h = pallas_fc0(x.reshape(B, S, Cin), gcoords,
                   params["fc0_wt"], params["fc0_wg"], params["fc0_b"])
    h = h.reshape(B, width, X, Y, T)
    h = jnp.pad(h, ((0, 0), (0, 0), (0, 0), (0, 0), (0, padding)))   # pad T
    Tp = T + padding

    for l in range(4):
        spec = spectral_conv3d(h, params[f"conv{l}_wr"], params[f"conv{l}_wi"],
                               m1, m2, m3)
        # fused: act( spectral + 1x1conv(h) + b )  (no GELU after last layer)
        h = pallas_conv1x1_add(h, spec, params[f"w{l}_w"], params[f"w{l}_b"],
                               activation=(l != 3))

    # Head (fc1+GELU+fc2) channel-first on the still-padded volume (pointwise),
    # then crop the 2-channel output and transpose (cheap: only 2 channels).
    out = pallas_head(h.reshape(B, width, X * Y * Tp),
                      params["fc1_wt"], params["fc1_b"],
                      params["fc2_wt"], params["fc2_b"])             # (B, 2, X*Y*Tp)
    out = out.reshape(B, 2, X, Y, Tp)[..., :T]
    return out.transpose(0, 2, 3, 4, 1)                              # (B, X, Y, T, 2)


if __name__ == "__main__":
    # small shapes: batch=2, X=Y=T=8, input channels=64 (fc0 expects 67 = 64+3)
    modes1, modes2, modes3, width = 4, 4, 3, 8

    key = jax.random.PRNGKey(0)
    kx, kp = jax.random.split(key)
    x = jax.random.uniform(kx, (2, 8, 8, 8, 64), jnp.float32)
    params = init_params(kp, width, modes1, modes2, modes3)

    fwd = jax.jit(functools.partial(fno3d_binseg_forward,
                                    m1=modes1, m2=modes2, m3=modes3))
    out = jax.block_until_ready(fwd(x, params))
    assert out.shape == (2, 8, 8, 8, 2), out.shape
    assert jnp.all(jnp.isfinite(out))
    print("KERNEL_OK")
</pallas_src>

<mosaic_0001>
module attributes {stable_mosaic.version = 11 : i64} {
  func.func @_fc0_kernel(%arg0: i32, %arg1: i32, %arg2: memref<1x512x64xf32, #tpu.memory_space<vmem>>, %arg3: memref<3x512xf32, #tpu.memory_space<vmem>>, %arg4: memref<8x64xf32, #tpu.memory_space<vmem>>, %arg5: memref<8x3xf32, #tpu.memory_space<vmem>>, %arg6: memref<8x1xf32, #tpu.memory_space<vmem>>, %arg7: memref<1x8x512xf32, #tpu.memory_space<vmem>>) attributes {dimension_semantics = [#tpu.dimension_semantics<parallel>, #tpu.dimension_semantics<parallel>], iteration_bounds = array<i64: 2, 1>, scalar_prefetch = 0 : i64, scratch_operands = 0 : i64, tpu.core_type = #tpu.core_type<tc>, window_params = [{transform_indices = @transform_0, window_bounds = array<i64: 1, 512, 64>}, {transform_indices = @transform_1, window_bounds = array<i64: 3, 512>}, {pipeline_mode = #tpu.pipeline_mode<synchronous>, transform_indices = @transform_2, window_bounds = array<i64: 8, 64>}, {pipeline_mode = #tpu.pipeline_mode<synchronous>, transform_indices = @transform_3, window_bounds = array<i64: 8, 3>}, {pipeline_mode = #tpu.pipeline_mode<synchronous>, transform_indices = @transform_4, window_bounds = array<i64: 8, 1>}, {transform_indices = @transform_5, window_bounds = array<i64: 1, 8, 512>}]} {
    %c0 = arith.constant 0 : index
    %c0_0 = arith.constant 0 : index
    %c0_1 = arith.constant 0 : index
    %0 = vector.load %arg2[%c0, %c0_0, %c0_1] : memref<1x512x64xf32, #tpu.memory_space<vmem>>, vector<1x512x64xf32>
    %1 = vector.shape_cast %0 : vector<1x512x64xf32> to vector<512x64xf32>
    %c0_2 = arith.constant 0 : index
    %c0_3 = arith.constant 0 : index
    %2 = vector.load %arg4[%c0_2, %c0_3] : memref<8x64xf32, #tpu.memory_space<vmem>>, vector<8x64xf32>
    %cst = arith.constant dense<0.000000e+00> : vector<8x512xf32>
    %3 = tpu.matmul %2, %1, %cst {dimension_numbers = #tpu.dot_dimension_numbers<[1], [1], [0], [0], [0, 0, 1, 0], [], []>} : vector<8x64xf32>, vector<512x64xf32>, vector<8x512xf32> -> vector<8x512xf32>
    %c0_4 = arith.constant 0 : index
    %c0_5 = arith.constant 0 : index
    %4 = vector.load %arg3[%c0_4, %c0_5] : memref<3x512xf32, #tpu.memory_space<vmem>>, vector<3x512xf32>
    %c0_6 = arith.constant 0 : index
    %c0_7 = arith.constant 0 : index
    %5 = vector.load %arg5[%c0_6, %c0_7] : memref<8x3xf32, #tpu.memory_space<vmem>>, vector<8x3xf32>
    %6 = vector.extract_strided_slice %5 {offsets = [0, 0], sizes = [8, 1], strides = [1, 1]} : vector<8x3xf32> to vector<8x1xf32>
    %7 = vector.extract_strided_slice %4 {offsets = [0, 0], sizes = [1, 512], strides = [1, 1]} : vector<3x512xf32> to vector<1x512xf32>
    %8 = vector.broadcast %6 : vector<8x1xf32> to vector<8x512xf32>
    %9 = vector.broadcast %7 : vector<1x512xf32> to vector<8x512xf32>
    %10 = arith.mulf %8, %9 : vector<8x512xf32>
    %11 = arith.addf %3, %10 : vector<8x512xf32>
    %12 = vector.extract_strided_slice %5 {offsets = [0, 1], sizes = [8, 1], strides = [1, 1]} : vector<8x3xf32> to vector<8x1xf32>
    %13 = vector.extract_strided_slice %4 {offsets = [1, 0], sizes = [1, 512], strides = [1, 1]} : vector<3x512xf32> to vector<1x512xf32>
    %14 = vector.broadcast %12 : vector<8x1xf32> to vector<8x512xf32>
    %15 = vector.broadcast %13 : vector<1x512xf32> to vector<8x512xf32>
    %16 = arith.mulf %14, %15 : vector<8x512xf32>
    %17 = arith.addf %11, %16 : vector<8x512xf32>
    %18 = vector.extract_strided_slice %5 {offsets = [0, 2], sizes = [8, 1], strides = [1, 1]} : vector<8x3xf32> to vector<8x1xf32>
    %19 = vector.extract_strided_slice %4 {offsets = [2, 0], sizes = [1, 512], strides = [1, 1]} : vector<3x512xf32> to vector<1x512xf32>
    %20 = vector.broadcast %18 : vector<8x1xf32> to vector<8x512xf32>
    %21 = vector.broadcast %19 : vector<1x512xf32> to vector<8x512xf32>
    %22 = arith.mulf %20, %21 : vector<8x512xf32>
    %23 = arith.addf %17, %22 : vector<8x512xf32>
    %c0_8 = arith.constant 0 : index
    %c0_9 = arith.constant 0 : index
    %24 = vector.load %arg6[%c0_8, %c0_9] : memref<8x1xf32, #tpu.memory_space<vmem>>, vector<8x1xf32>
    %25 = vector.broadcast %24 : vector<8x1xf32> to vector<8x512xf32>
    %26 = arith.addf %23, %25 : vector<8x512xf32>
    %c0_10 = arith.constant 0 : index
    %c0_11 = arith.constant 0 : index
    %c0_12 = arith.constant 0 : index
    %27 = vector.load %arg7[%c0_10, %c0_11, %c0_12] : memref<1x8x512xf32, #tpu.memory_space<vmem>>, vector<1x8x512xf32>
    %28 = vector.shape_cast %27 : vector<1x8x512xf32> to vector<8x512xf32>
    %29 = vector.shape_cast %26 : vector<8x512xf32> to vector<1x8x512xf32>
    tpu.vector_store %arg7[%c0_10, %c0_11, %c0_12], %29 {strides = array<i32>} : memref<1x8x512xf32, #tpu.memory_space<vmem>>, vector<1x8x512xf32>,
    return
  }
  func.func @transform_0(%arg0: i32, %arg1: i32) -> (i32, i32, i32) {
    %c0_i32 = arith.constant 0 : i32
    %c0_i32_0 = arith.constant 0 : i32
    return %arg0, %arg1, %c0_i32 : i32, i32, i32
  }
  func.func @transform_1(%arg0: i32, %arg1: i32) -> (i32, i32) {
    %c0_i32 = arith.constant 0 : i32
    %c0_i32_0 = arith.constant 0 : i32
    return %c0_i32, %arg1 : i32, i32
  }
  func.func @transform_2(%arg0: i32, %arg1: i32) -> (i32, i32) {
    %c0_i32 = arith.constant 0 : i32
    %c0_i32_0 = arith.constant 0 : i32
    %c0_i32_1 = arith.constant 0 : i32
    return %c0_i32, %c0_i32_0 : i32, i32
  }
  func.func @transform_3(%arg0: i32, %arg1: i32) -> (i32, i32) {
    %c0_i32 = arith.constant 0 : i32
    %c0_i32_0 = arith.constant 0 : i32
    %c0_i32_1 = arith.constant 0 : i32
    return %c0_i32, %c0_i32_0 : i32, i32
  }
  func.func @transform_4(%arg0: i32, %arg1: i32) -> (i32, i32) {
    %c0_i32 = arith.constant 0 : i32
    %c0_i32_0 = arith.constant 0 : i32
    %c0_i32_1 = arith.constant 0 : i32
    return %c0_i32, %c0_i32_0 : i32, i32
  }
  func.func @transform_5(%arg0: i32, %arg1: i32) -> (i32, i32, i32) {
    %c0_i32 = arith.constant 0 : i32
    %c0_i32_0 = arith.constant 0 : i32
    return %arg0, %c0_i32, %arg1 : i32, i32, i32
  }
}

module attributes {stable_mosaic.version = 11 : i64} {
  func.func @_spectral_kernel(%arg0: i32, %arg1: i32, %arg2: memref<1x8x256xf32, #tpu.memory_space<vmem>>, %arg3: memref<1x8x256xf32, #tpu.memory_space<vmem>>, %arg4: memref<8x8x256xf32, #tpu.memory_space<vmem>>, %arg5: memref<8x8x256xf32, #tpu.memory_space<vmem>>, %arg6: memref<1x8x256xf32, #tpu.memory_space<vmem>>, %arg7: memref<1x8x256xf32, #tpu.memory_space<vmem>>) attributes {dimension_semantics = [#tpu.dimension_semantics<parallel>, #tpu.dimension_semantics<parallel>], iteration_bounds = array<i64: 1, 2>, scalar_prefetch = 0 : i64, scratch_operands = 0 : i64, tpu.core_type = #tpu.core_type<tc>, window_params = [{transform_indices = @transform_0, window_bounds = array<i64: 1, 8, 256>}, {transform_indices = @transform_1, window_bounds = array<i64: 1, 8, 256>}, {transform_indices = @transform_2, window_bounds = array<i64: 8, 8, 256>}, {transform_indices = @transform_3, window_bounds = array<i64: 8, 8, 256>}, {transform_indices = @transform_4, window_bounds = array<i64: 1, 8, 256>}, {transform_indices = @transform_5, window_bounds = array<i64: 1, 8, 256>}]} {
    %c0 = arith.constant 0 : index
    %c0_0 = arith.constant 0 : index
    %c0_1 = arith.constant 0 : index
    %0 = vector.load %arg2[%c0, %c0_0, %c0_1] : memref<1x8x256xf32, #tpu.memory_space<vmem>>, vector<1x8x256xf32>
    %1 = vector.shape_cast %0 : vector<1x8x256xf32> to vector<8x256xf32>
    %c0_2 = arith.constant 0 : index
    %c0_3 = arith.constant 0 : index
    %c0_4 = arith.constant 0 : index
    %2 = vector.load %arg3[%c0_2, %c0_3, %c0_4] : memref<1x8x256xf32, #tpu.memory_space<vmem>>, vector<1x8x256xf32>
    %3 = vector.shape_cast %2 : vector<1x8x256xf32> to vector<8x256xf32>
    %c0_5 = arith.constant 0 : index
    %c0_6 = arith.constant 0 : index
    %c0_7 = arith.constant 0 : index
    %4 = vector.load %arg4[%c0_5, %c0_6, %c0_7] : memref<8x8x256xf32, #tpu.memory_space<vmem>>, vector<1x8x256xf32>
    %5 = vector.shape_cast %4 : vector<1x8x256xf32> to vector<8x256xf32>
    %c0_8 = arith.constant 0 : index
    %c0_9 = arith.constant 0 : index
    %c0_10 = arith.constant 0 : index
    %6 = vector.load %arg5[%c0_8, %c0_9, %c0_10] : memref<8x8x256xf32, #tpu.memory_space<vmem>>, vector<1x8x256xf32>
    %7 = vector.shape_cast %6 : vector<1x8x256xf32> to vector<8x256xf32>
    %8 = arith.mulf %1, %5 : vector<8x256xf32>
    %9 = arith.mulf %3, %7 : vector<8x256xf32>
    %10 = arith.subf %8, %9 : vector<8x256xf32>
    %cst = arith.constant dense<0.000000e+00> : vector<256xf32>
    %11 = vector.multi_reduction <add>, %10, %cst [0] : vector<8x256xf32> to vector<256xf32>
    %12 = vector.shape_cast %11 : vector<256xf32> to vector<1x256xf32>
    %c0_11 = arith.constant 0 : index
    %c0_12 = arith.constant 0 : index
    %c0_13 = arith.constant 0 : index
    %13 = vector.load %arg6[%c0_11, %c0_12, %c0_13] : memref<1x8x256xf32, #tpu.memory_space<vmem>>, vector<1x1x256xf32>
    %14 = vector.shape_cast %13 : vector<1x1x256xf32> to vector<1x256xf32>
    %15 = vector.shape_cast %12 : vector<1x256xf32> to vector<1x1x256xf32>
    tpu.vector_store %arg6[%c0_11, %c0_12, %c0_13], %15 {strides = array<i32>} : memref<1x8x256xf32, #tpu.memory_space<vmem>>, vector<1x1x256xf32>,
    %16 = arith.mulf %1, %7 : vector<8x256xf32>
    %17 = arith.mulf %3, %5 : vector<8x256xf32>
    %18 = arith.addf %16, %17 : vector<8x256xf32>
    %cst_14 = arith.constant dense<0.000000e+00> : vector<256xf32>
    %19 = vector.multi_reduction <add>, %18, %cst_14 [0] : vector<8x256xf32> to vector<256xf32>
    %20 = vector.shape_cast %19 : vector<256xf32> to vector<1x256xf32>
    %c0_15 = arith.constant 0 : index
    %c0_16 = arith.constant 0 : index
    %c0_17 = arith.constant 0 : index
    %21 = vector.load %arg7[%c0_15, %c0_16, %c0_17] : memref<1x8x256xf32, #tpu.memory_space<vmem>>, vector<1x1x256xf32>
    %22 = vector.shape_cast %21 : vector<1x1x256xf32> to vector<1x256xf32>
    %23 = vector.shape_cast %20 : vector<1x256xf32> to vector<1x1x256xf32>
    tpu.vector_store %arg7[%c0_15, %c0_16, %c0_17], %23 {strides = array<i32>} : memref<1x8x256xf32, #tpu.memory_space<vmem>>, vector<1x1x256xf32>,
    %c1 = arith.constant 1 : index
    %c0_18 = arith.constant 0 : index
    %c0_19 = arith.constant 0 : index
    %24 = vector.load %arg4[%c1, %c0_18, %c0_19] : memref<8x8x256xf32, #tpu.memory_space<vmem>>, vector<1x8x256xf32>
    %25 = vector.shape_cast %24 : vector<1x8x256xf32> to vector<8x256xf32>
    %c1_20 = arith.constant 1 : index
    %c0_21 = arith.constant 0 : index
    %c0_22 = arith.constant 0 : index
    %26 = vector.load %arg5[%c1_20, %c0_21, %c0_22] : memref<8x8x256xf32, #tpu.memory_space<vmem>>, vector<1x8x256xf32>
    %27 = vector.shape_cast %26 : vector<1x8x256xf32> to vector<8x256xf32>
    %28 = arith.mulf %1, %25 : vector<8x256xf32>
    %29 = arith.mulf %3, %27 : vector<8x256xf32>
    %30 = arith.subf %28, %29 : vector<8x256xf32>
    %cst_23 = arith.constant dense<0.000000e+00> : vector<256xf32>
    %31 = vector.multi_reduction <add>, %30, %cst_23 [0] : vector<8x256xf32> to vector<256xf32>
    %32 = vector.shape_cast %31 : vector<256xf32> to vector<1x256xf32>
    %c0_24 = arith.constant 0 : index
    %c1_25 = arith.constant 1 : index
    %c0_26 = arith.constant 0 : index
    %33 = vector.load %arg6[%c0_24, %c1_25, %c0_26] : memref<1x8x256xf32, #tpu.memory_space<vmem>>, vector<1x1x256xf32>
    %34 = vector.shape_cast %33 : vector<1x1x256xf32> to vector<1x256xf32>
    %35 = vector.shape_cast %32 : vector<1x256xf32> to vector<1x1x256xf32>
    tpu.vector_store %arg6[%c0_24, %c1_25, %c0_26], %35 {strides = array<i32>} : memref<1x8x256xf32, #tpu.memory_space<vmem>>, vector<1x1x256xf32>,
    %36 = arith.mulf %1, %27 : vector<8x256xf32>
    %37 = arith.mulf %3, %25 : vector<8x256xf32>
    %38 = arith.addf %36, %37 : vector<8x256xf32>
    %cst_27 = arith.constant dense<0.000000e+00> : vector<256xf32>
    %39 = vector.multi_reduction <add>, %38, %cst_27 [0] : vector<8x256xf32> to vector<256xf32>
    %40 = vector.shape_cast %39 : vector<256xf32> to vector<1x256xf32>
    %c0_28 = arith.constant 0 : index
    %c1_29 = arith.constant 1 : index
    %c0_30 = arith.constant 0 : index
    %41 = vector.load %arg7[%c0_28, %c1_29, %c0_30] : memref<1x8x256xf32, #tpu.memory_space<vmem>>, vector<1x1x256xf32>
    %42 = vector.shape_cast %41 : vector<1x1x256xf32> to vector<1x256xf32>
    %43 = vector.shape_cast %40 : vector<1x256xf32> to vector<1x1x256xf32>
    tpu.vector_store %arg7[%c0_28, %c1_29, %c0_30], %43 {strides = array<i32>} : memref<1x8x256xf32, #tpu.memory_space<vmem>>, vector<1x1x256xf32>,
    %c2 = arith.constant 2 : index
    %c0_31 = arith.constant 0 : index
    %c0_32 = arith.constant 0 : index
    %44 = vector.load %arg4[%c2, %c0_31, %c0_32] : memref<8x8x256xf32, #tpu.memory_space<vmem>>, vector<1x8x256xf32>
    %45 = vector.shape_cast %44 : vector<1x8x256xf32> to vector<8x256xf32>
    %c2_33 = arith.constant 2 : index
    %c0_34 = arith.constant 0 : index
    %c0_35 = arith.constant 0 : index
    %46 = vector.load %arg5[%c2_33, %c0_34, %c0_35] : memref<8x8x256xf32, #tpu.memory_space<vmem>>, vector<1x8x256xf32>
    %47 = vector.shape_cast %46 : vector<1x8x256xf32> to vector<8x256xf32>
    %48 = arith.mulf %1, %45 : vector<8x256xf32>
    %49 = arith.mulf %3, %47 : vector<8x256xf32>
    %50 = arith.subf %48, %49 : vector<8x256xf32>
    %cst_36 = arith.constant dense<0.000000e+00> : vector<256xf32>
    %51 = vector.multi_reduction <add>, %50, %cst_36 [0] : vector<8x256xf32> to vector<256xf32>
    %52 = vector.shape_cast %51 : vector<256xf32> to vector<1x256xf32>
    %c0_37 = arith.constant 0 : index
    %c2_38 = arith.constant 2 : index
    %c0_39 = arith.constant 0 : index
    %53 = vector.load %arg6[%c0_37, %c2_38, %c0_39] : memref<1x8x256xf32, #tpu.memory_space<vmem>>, vector<1x1x256xf32>
    %54 = vector.shape_cast %53 : vector<1x1x256xf32> to vector<1x256xf32>
    %55 = vector.shape_cast %52 : vector<1x256xf32> to vector<1x1x256xf32>
    tpu.vector_store %arg6[%c0_37, %c2_38, %c0_39], %55 {strides = array<i32>} : memref<1x8x256xf32, #tpu.memory_space<vmem>>, vector<1x1x256xf32>,
    %56 = arith.mulf %1, %47 : vector<8x256xf32>
    %57 = arith.mulf %3, %45 : vector<8x256xf32>
    %58 = arith.addf %56, %57 : vector<8x256xf32>
    %cst_40 = arith.constant dense<0.000000e+00> : vector<256xf32>
    %59 = vector.multi_reduction <add>, %58, %cst_40 [0] : vector<8x256xf32> to vector<256xf32>
    %60 = vector.shape_cast %59 : vector<256xf32> to vector<1x256xf32>
    %c0_41 = arith.constant 0 : index
    %c2_42 = arith.constant 2 : index
    %c0_43 = arith.constant 0 : index
    %61 = vector.load %arg7[%c0_41, %c2_42, %c0_43] : memref<1x8x256xf32, #tpu.memory_space<vmem>>, vector<1x1x256xf32>
    %62 = vector.shape_cast %61 : vector<1x1x256xf32> to vector<1x256xf32>
    %63 = vector.shape_cast %60 : vector<1x256xf32> to vector<1x1x256xf32>
    tpu.vector_store %arg7[%c0_41, %c2_42, %c0_43], %63 {strides = array<i32>} : memref<1x8x256xf32, #tpu.memory_space<vmem>>, vector<1x1x256xf32>,
    %c3 = arith.constant 3 : index
    %c0_44 = arith.constant 0 : index
    %c0_45 = arith.constant 0 : index
    %64 = vector.load %arg4[%c3, %c0_44, %c0_45] : memref<8x8x256xf32, #tpu.memory_space<vmem>>, vector<1x8x256xf32>
    %65 = vector.shape_cast %64 : vector<1x8x256xf32> to vector<8x256xf32>
    %c3_46 = arith.constant 3 : index
    %c0_47 = arith.constant 0 : index
    %c0_48 = arith.constant 0 : index
    %66 = vector.load %arg5[%c3_46, %c0_47, %c0_48] : memref<8x8x256xf32, #tpu.memory_space<vmem>>, vector<1x8x256xf32>
    %67 = vector.shape_cast %66 : vector<1x8x256xf32> to vector<8x256xf32>
    %68 = arith.mulf %1, %65 : vector<8x256xf32>
    %69 = arith.mulf %3, %67 : vector<8x256xf32>
    %70 = arith.subf %68, %69 : vector<8x256xf32>
    %cst_49 = arith.constant dense<0.000000e+00> : vector<256xf32>
    %71 = vector.multi_reduction <add>, %70, %cst_49 [0] : vector<8x256xf32> to vector<256xf32>
    %72 = vector.shape_cast %71 : vector<256xf32> to vector<1x256xf32>
    %c0_50 = arith.constant 0 : index
    %c3_51 = arith.constant 3 : index
    %c0_52 = arith.constant 0 : index
    %73 = vector.load %arg6[%c0_50, %c3_51, %c0_52] : memref<1x8x256xf32, #tpu.memory_space<vmem>>, vector<1x1x256xf32>
    %74 = vector.shape_cast %73 : vector<1x1x256xf32> to vector<1x256xf32>
    %75 = vector.shape_cast %72 : vector<1x256xf32> to vector<1x1x256xf32>
    tpu.vector_store %arg6[%c0_50, %c3_51, %c0_52], %75 {strides = array<i32>} : memref<1x8x256xf32, #tpu.memory_space<vmem>>, vector<1x1x256xf32>,
    %76 = arith.mulf %1, %67 : vector<8x256xf32>
    %77 = arith.mulf %3, %65 : vector<8x256xf32>
    %78 = arith.addf %76, %77 : vector<8x256xf32>
    %cst_53 = arith.constant dense<0.000000e+00> : vector<256xf32>
    %79 = vector.multi_reduction <add>, %78, %cst_53 [0] : vector<8x256xf32> to vector<256xf32>
    %80 = vector.shape_cast %79 : vector<256xf32> to vector<1x256xf32>
    %c0_54 = arith.constant 0 : index
    %c3_55 = arith.constant 3 : index
    %c0_56 = arith.constant 0 : index
    %81 = vector.load %arg7[%c0_54, %c3_55, %c0_56] : memref<1x8x256xf32, #tpu.memory_space<vmem>>, vector<1x1x256xf32>
    %82 = vector.shape_cast %81 : vector<1x1x256xf32> to vector<1x256xf32>
    %83 = vector.shape_cast %80 : vector<1x256xf32> to vector<1x1x256xf32>
    tpu.vector_store %arg7[%c0_54, %c3_55, %c0_56], %83 {strides = array<i32>} : memref<1x8x256xf32, #tpu.memory_space<vmem>>, vector<1x1x256xf32>,
    %c4 = arith.constant 4 : index
    %c0_57 = arith.constant 0 : index
    %c0_58 = arith.constant 0 : index
    %84 = vector.load %arg4[%c4, %c0_57, %c0_58] : memref<8x8x256xf32, #tpu.memory_space<vmem>>, vector<1x8x256xf32>
    %85 = vector.shape_cast %84 : vector<1x8x256xf32> to vector<8x256xf32>
    %c4_59 = arith.constant 4 : index
    %c0_60 = arith.constant 0 : index
    %c0_61 = arith.constant 0 : index
    %86 = vector.load %arg5[%c4_59, %c0_60, %c0_61] : memref<8x8x256xf32, #tpu.memory_space<vmem>>, vector<1x8x256xf32>
    %87 = vector.shape_cast %86 : vector<1x8x256xf32> to vector<8x256xf32>
    %88 = arith.mulf %1, %85 : vector<8x256xf32>
    %89 = arith.mulf %3, %87 : vector<8x256xf32>
    %90 = arith.subf %88, %89 : vector<8x256xf32>
    %cst_62 = arith.constant dense<0.000000e+00> : vector<256xf32>
    %91 = vector.multi_reduction <add>, %90, %cst_62 [0] : vector<8x256xf32> to vector<256xf32>
    %92 = vector.shape_cast %91 : vector<256xf32> to vector<1x256xf32>
    %c0_63 = arith.constant 0 : index
    %c4_64 = arith.constant 4 : index
    %c0_65 = arith.constant 0 : index
    %93 = vector.load %arg6[%c0_63, %c4_64, %c0_65] : memref<1x8x256xf32, #tpu.memory_space<vmem>>, vector<1x1x256xf32>
    %94 = vector.shape_cast %93 : vector<1x1x256xf32> to vector<1x256xf32>
    %95 = vector.shape_cast %92 : vector<1x256xf32> to vector<1x1x256xf32>
    tpu.vector_store %arg6[%c0_63, %c4_64, %c0_65], %95 {strides = array<i32>} : memref<1x8x256xf32, #tpu.memory_space<vmem>>, vector<1x1x256xf32>,
    %96 = arith.mulf %1, %87 : vector<8x256xf32>
    %97 = arith.mulf %3, %85 : vector<8x256xf32>
    %98 = arith.addf %96, %97 : vector<8x256xf32>
    %cst_66 = arith.constant dense<0.000000e+00> : vector<256xf32>
    %99 = vector.multi_reduction <add>, %98, %cst_66 [0] : vector<8x256xf32> to vector<256xf32>
    %100 = vector.shape_cast %99 : vector<256xf32> to vector<1x256xf32>
    %c0_67 = arith.constant 0 : index
    %c4_68 = arith.constant 4 : index
    %c0_69 = arith.constant 0 : index
    %101 = vector.load %arg7[%c0_67, %c4_68, %c0_69] : memref<1x8x256xf32, #tpu.memory_space<vmem>>, vector<1x1x256xf32>
    %102 = vector.shape_cast %101 : vector<1x1x256xf32> to vector<1x256xf32>
    %103 = vector.shape_cast %100 : vector<1x256xf32> to vector<1x1x256xf32>
    tpu.vector_store %arg7[%c0_67, %c4_68, %c0_69], %103 {strides = array<i32>} : memref<1x8x256xf32, #tpu.memory_space<vmem>>, vector<1x1x256xf32>,
    %c5 = arith.constant 5 : index
    %c0_70 = arith.constant 0 : index
    %c0_71 = arith.constant 0 : index
    %104 = vector.load %arg4[%c5, %c0_70, %c0_71] : memref<8x8x256xf32, #tpu.memory_space<vmem>>, vector<1x8x256xf32>
    %105 = vector.shape_cast %104 : vector<1x8x256xf32> to vector<8x256xf32>
    %c5_72 = arith.constant 5 : index
    %c0_73 = arith.constant 0 : index
    %c0_74 = arith.constant 0 : index
    %106 = vector.load %arg5[%c5_72, %c0_73, %c0_74] : memref<8x8x256xf32, #tpu.memory_space<vmem>>, vector<1x8x256xf32>
    %107 = vector.shape_cast %106 : vector<1x8x256xf32> to vector<8x256xf32>
    %108 = arith.mulf %1, %105 : vector<8x256xf32>
    %109 = arith.mulf %3, %107 : vector<8x256xf32>
    %110 = arith.subf %108, %109 : vector<8x256xf32>
    %cst_75 = arith.constant dense<0.000000e+00> : vector<256xf32>
    %111 = vector.multi_reduction <add>, %110, %cst_75 [0] : vector<8x256xf32> to vector<256xf32>
    %112 = vector.shape_cast %111 : vector<256xf32> to vector<1x256xf32>
    %c0_76 = arith.constant 0 : index
    %c5_77 = arith.constant 5 : index
    %c0_78 = arith.constant 0 : index
    %113 = vector.load %arg6[%c0_76, %c5_77, %c0_78] : memref<1x8x256xf32, #tpu.memory_space<vmem>>, vector<1x1x256xf32>
    %114 = vector.shape_cast %113 : vector<1x1x256xf32> to vector<1x256xf32>
    %115 = vector.shape_cast %112 : vector<1x256xf32> to vector<1x1x256xf32>
    tpu.vector_store %arg6[%c0_76, %c5_77, %c0_78], %115 {strides = array<i32>} : memref<1x8x256xf32, #tpu.memory_space<vmem>>, vector<1x1x256xf32>,
    %116 = arith.mulf %1, %107 : vector<8x256xf32>
    %117 = arith.mulf %3, %105 : vector<8x256xf32>
    %118 = arith.addf %116, %117 : vector<8x256xf32>
    %cst_79 = arith.constant dense<0.000000e+00> : vector<256xf32>
    %119 = vector.multi_reduction <add>, %118, %cst_79 [0] : vector<8x256xf32> to vector<256xf32>
    %120 = vector.shape_cast %119 : vector<256xf32> to vector<1x256xf32>
    %c0_80 = arith.constant 0 : index
    %c5_81 = arith.constant 5 : index
    %c0_82 = arith.constant 0 : index
    %121 = vector.load %arg7[%c0_80, %c5_81, %c0_82] : memref<1x8x256xf32, #tpu.memory_space<vmem>>, vector<1x1x256xf32>
    %122 = vector.shape_cast %121 : vector<1x1x256xf32> to vector<1x256xf32>
    %123 = vector.shape_cast %120 : vector<1x256xf32> to vector<1x1x256xf32>
    tpu.vector_store %arg7[%c0_80, %c5_81, %c0_82], %123 {strides = array<i32>} : memref<1x8x256xf32, #tpu.memory_space<vmem>>, vector<1x1x256xf32>,
    %c6 = arith.constant 6 : index
    %c0_83 = arith.constant 0 : index
    %c0_84 = arith.constant 0 : index
    %124 = vector.load %arg4[%c6, %c0_83, %c0_84] : memref<8x8x256xf32, #tpu.memory_space<vmem>>, vector<1x8x256xf32>
    %125 = vector.shape_cast %124 : vector<1x8x256xf32> to vector<8x256xf32>
    %c6_85 = arith.constant 6 : index
    %c0_86 = arith.constant 0 : index
    %c0_87 = arith.constant 0 : index
    %126 = vector.load %arg5[%c6_85, %c0_86, %c0_87] : memref<8x8x256xf32, #tpu.memory_space<vmem>>, vector<1x8x256xf32>
    %127 = vector.shape_cast %126 : vector<1x8x256xf32> to vector<8x256xf32>
    %128 = arith.mulf %1, %125 : vector<8x256xf32>
    %129 = arith.mulf %3, %127 : vector<8x256xf32>
    %130 = arith.subf %128, %129 : vector<8x256xf32>
    %cst_88 = arith.constant dense<0.000000e+00> : vector<256xf32>
    %131 = vector.multi_reduction <add>, %130, %cst_88 [0] : vector<8x256xf32> to vector<256xf32>
    %132 = vector.shape_cast %131 : vector<256xf32> to vector<1x256xf32>
    %c0_89 = arith.constant 0 : index
    %c6_90 = arith.constant 6 : index
    %c0_91 = arith.constant 0 : index
    %133 = vector.load %arg6[%c0_89, %c6_90, %c0_91] : memref<1x8x256xf32, #tpu.memory_space<vmem>>, vector<1x1x256xf32>
    %134 = vector.shape_cast %133 : vector<1x1x256xf32> to vector<1x256xf32>
    %135 = vector.shape_cast %132 : vector<1x256xf32> to vector<1x1x256xf32>
    tpu.vector_store %arg6[%c0_89, %c6_90, %c0_91], %135 {strides = array<i32>} : memref<1x8x256xf32, #tpu.memory_space<vmem>>, vector<1x1x256xf32>,
    %136 = arith.mulf %1, %127 : vector<8x256xf32>
    %137 = arith.mulf %3, %125 : vector<8x256xf32>
    %138 = arith.addf %136, %137 : vector<8x256xf32>
    %cst_92 = arith.constant dense<0.000000e+00> : vector<256xf32>
    %139 = vector.multi_reduction <add>, %138, %cst_92 [0] : vector<8x256xf32> to vector<256xf32>
    %140 = vector.shape_cast %139 : vector<256xf32> to vector<1x256xf32>
    %c0_93 = arith.constant 0 : index
    %c6_94 = arith.constant 6 : index
    %c0_95 = arith.constant 0 : index
    %141 = vector.load %arg7[%c0_93, %c6_94, %c0_95] : memref<1x8x256xf32, #tpu.memory_space<vmem>>, vector<1x1x256xf32>
    %142 = vector.shape_cast %141 : vector<1x1x256xf32> to vector<1x256xf32>
    %143 = vector.shape_cast %140 : vector<1x256xf32> to vector<1x1x256xf32>
    tpu.vector_store %arg7[%c0_93, %c6_94, %c0_95], %143 {strides = array<i32>} : memref<1x8x256xf32, #tpu.memory_space<vmem>>, vector<1x1x256xf32>,
    %c7 = arith.constant 7 : index
    %c0_96 = arith.constant 0 : index
    %c0_97 = arith.constant 0 : index
    %144 = vector.load %arg4[%c7, %c0_96, %c0_97] : memref<8x8x256xf32, #tpu.memory_space<vmem>>, vector<1x8x256xf32>
    %145 = vector.shape_cast %144 : vector<1x8x256xf32> to vector<8x256xf32>
    %c7_98 = arith.constant 7 : index
    %c0_99 = arith.constant 0 : index
    %c0_100 = arith.constant 0 : index
    %146 = vector.load %arg5[%c7_98, %c0_99, %c0_100] : memref<8x8x256xf32, #tpu.memory_space<vmem>>, vector<1x8x256xf32>
    %147 = vector.shape_cast %146 : vector<1x8x256xf32> to vector<8x256xf32>
    %148 = arith.mulf %1, %145 : vector<8x256xf32>
    %149 = arith.mulf %3, %147 : vector<8x256xf32>
    %150 = arith.subf %148, %149 : vector<8x256xf32>
    %cst_101 = arith.constant dense<0.000000e+00> : vector<256xf32>
    %151 = vector.multi_reduction <add>, %150, %cst_101 [0] : vector<8x256xf32> to vector<256xf32>
    %152 = vector.shape_cast %151 : vector<256xf32> to vector<1x256xf32>
    %c0_102 = arith.constant 0 : index
    %c7_103 = arith.constant 7 : index
    %c0_104 = arith.constant 0 : index
    %153 = vector.load %arg6[%c0_102, %c7_103, %c0_104] : memref<1x8x256xf32, #tpu.memory_space<vmem>>, vector<1x1x256xf32>
    %154 = vector.shape_cast %153 : vector<1x1x256xf32> to vector<1x256xf32>
    %155 = vector.shape_cast %152 : vector<1x256xf32> to vector<1x1x256xf32>
    tpu.vector_store %arg6[%c0_102, %c7_103, %c0_104], %155 {strides = array<i32>} : memref<1x8x256xf32, #tpu.memory_space<vmem>>, vector<1x1x256xf32>,
    %156 = arith.mulf %1, %147 : vector<8x256xf32>
    %157 = arith.mulf %3, %145 : vector<8x256xf32>
    %158 = arith.addf %156, %157 : vector<8x256xf32>
    %cst_105 = arith.constant dense<0.000000e+00> : vector<256xf32>
    %159 = vector.multi_reduction <add>, %158, %cst_105 [0] : vector<8x256xf32> to vector<256xf32>
    %160 = vector.shape_cast %159 : vector<256xf32> to vector<1x256xf32>
    %c0_106 = arith.constant 0 : index
    %c7_107 = arith.constant 7 : index
    %c0_108 = arith.constant 0 : index
    %161 = vector.load %arg7[%c0_106, %c7_107, %c0_108] : memref<1x8x256xf32, #tpu.memory_space<vmem>>, vector<1x1x256xf32>
    %162 = vector.shape_cast %161 : vector<1x1x256xf32> to vector<1x256xf32>
    %163 = vector.shape_cast %160 : vector<1x256xf32> to vector<1x1x256xf32>
    tpu.vector_store %arg7[%c0_106, %c7_107, %c0_108], %163 {strides = array<i32>} : memref<1x8x256xf32, #tpu.memory_space<vmem>>, vector<1x1x256xf32>,
    return
  }
  func.func @transform_0(%arg0: i32, %arg1: i32) -> (i32, i32, i32) {
    %c0_i32 = arith.constant 0 : i32
    %c0_i32_0 = arith.constant 0 : i32
    %c0_i32_1 = arith.constant 0 : i32
    return %arg1, %c0_i32, %c0_i32_0 : i32, i32, i32
  }
  func.func @transform_1(%arg0: i32, %arg1: i32) -> (i32, i32, i32) {
    %c0_i32 = arith.constant 0 : i32
    %c0_i32_0 = arith.constant 0 : i32
    %c0_i32_1 = arith.constant 0 : i32
    return %arg1, %c0_i32, %c0_i32_0 : i32, i32, i32
  }
  func.func @transform_2(%arg0: i32, %arg1: i32) -> (i32, i32, i32) {
    %c0_i32 = arith.constant 0 : i32
    %c0_i32_0 = arith.constant 0 : i32
    %c0_i32_1 = arith.constant 0 : i32
    return %arg0, %c0_i32, %c0_i32_0 : i32, i32, i32
  }
  func.func @transform_3(%arg0: i32, %arg1: i32) -> (i32, i32, i32) {
    %c0_i32 = arith.constant 0 : i32
    %c0_i32_0 = arith.constant 0 : i32
    %c0_i32_1 = arith.constant 0 : i32
    return %arg0, %c0_i32, %c0_i32_0 : i32, i32, i32
  }
  func.func @transform_4(%arg0: i32, %arg1: i32) -> (i32, i32, i32) {
    %c0_i32 = arith.constant 0 : i32
    %c0_i32_0 = arith.constant 0 : i32
    return %arg1, %arg0, %c0_i32 : i32, i32, i32
  }
  func.func @transform_5(%arg0: i32, %arg1: i32) -> (i32, i32, i32) {
    %c0_i32 = arith.constant 0 : i32
    %c0_i32_0 = arith.constant 0 : i32
    return %arg1, %arg0, %c0_i32 : i32, i32, i32
  }
}

module attributes {stable_mosaic.version = 11 : i64} {
  func.func @_conv1x1_kernel(%arg0: i32, %arg1: i32, %arg2: memref<1x8x896xf32, #tpu.memory_space<vmem>>, %arg3: memref<1x8x896xf32, #tpu.memory_space<vmem>>, %arg4: memref<8x8xf32, #tpu.memory_space<vmem>>, %arg5: memref<8x1xf32, #tpu.memory_space<vmem>>, %arg6: memref<1x8x896xf32, #tpu.memory_space<vmem>>) attributes {dimension_semantics = [#tpu.dimension_semantics<parallel>, #tpu.dimension_semantics<parallel>], iteration_bounds = array<i64: 2, 1>, scalar_prefetch = 0 : i64, scratch_operands = 0 : i64, tpu.core_type = #tpu.core_type<tc>, window_params = [{transform_indices = @transform_0, window_bounds = array<i64: 1, 8, 896>}, {transform_indices = @transform_1, window_bounds = array<i64: 1, 8, 896>}, {pipeline_mode = #tpu.pipeline_mode<synchronous>, transform_indices = @transform_2, window_bounds = array<i64: 8, 8>}, {pipeline_mode = #tpu.pipeline_mode<synchronous>, transform_indices = @transform_3, window_bounds = array<i64: 8, 1>}, {transform_indices = @transform_4, window_bounds = array<i64: 1, 8, 896>}]} {
    %c0 = arith.constant 0 : index
    %c0_0 = arith.constant 0 : index
    %0 = vector.load %arg4[%c0, %c0_0] : memref<8x8xf32, #tpu.memory_space<vmem>>, vector<8x8xf32>
    %c0_1 = arith.constant 0 : index
    %c0_2 = arith.constant 0 : index
    %c0_3 = arith.constant 0 : index
    %1 = vector.load %arg2[%c0_1, %c0_2, %c0_3] : memref<1x8x896xf32, #tpu.memory_space<vmem>>, vector<1x8x896xf32>
    %2 = vector.shape_cast %1 : vector<1x8x896xf32> to vector<8x896xf32>
    %cst = arith.constant dense<0.000000e+00> : vector<8x896xf32>
    %3 = tpu.matmul %0, %2, %cst {dimension_numbers = #tpu.dot_dimension_numbers<[1], [0], [0], [1], [0, 0, 1, 1], [], []>} : vector<8x8xf32>, vector<8x896xf32>, vector<8x896xf32> -> vector<8x896xf32>
    %c0_4 = arith.constant 0 : index
    %c0_5 = arith.constant 0 : index
    %4 = vector.load %arg5[%c0_4, %c0_5] : memref<8x1xf32, #tpu.memory_space<vmem>>, vector<8x1xf32>
    %5 = vector.broadcast %4 : vector<8x1xf32> to vector<8x896xf32>
    %6 = arith.addf %3, %5 : vector<8x896xf32>
    %c0_6 = arith.constant 0 : index
    %c0_7 = arith.constant 0 : index
    %c0_8 = arith.constant 0 : index
    %7 = vector.load %arg3[%c0_6, %c0_7, %c0_8] : memref<1x8x896xf32, #tpu.memory_space<vmem>>, vector<1x8x896xf32>
    %8 = vector.shape_cast %7 : vector<1x8x896xf32> to vector<8x896xf32>
    %9 = arith.addf %6, %8 : vector<8x896xf32>
    %cst_9 = arith.constant 5.000000e-01 : f32
    %10 = vector.broadcast %cst_9 : f32 to vector<8x896xf32>
    %11 = arith.mulf %10, %9 : vector<8x896xf32>
    %cst_10 = arith.constant 0.707106769 : f32
    %12 = vector.broadcast %cst_10 : f32 to vector<8x896xf32>
    %13 = arith.mulf %9, %12 : vector<8x896xf32>
    %14 = math.erf %13 : vector<8x896xf32>
    %cst_11 = arith.constant 1.000000e+00 : f32
    %15 = vector.broadcast %cst_11 : f32 to vector<8x896xf32>
    %16 = arith.addf %15, %14 : vector<8x896xf32>
    %17 = arith.mulf %11, %16 : vector<8x896xf32>
    %c0_12 = arith.constant 0 : index
    %c0_13 = arith.constant 0 : index
    %c0_14 = arith.constant 0 : index
    %18 = vector.load %arg6[%c0_12, %c0_13, %c0_14] : memref<1x8x896xf32, #tpu.memory_space<vmem>>, vector<1x8x896xf32>
    %19 = vector.shape_cast %18 : vector<1x8x896xf32> to vector<8x896xf32>
    %20 = vector.shape_cast %17 : vector<8x896xf32> to vector<1x8x896xf32>
    tpu.vector_store %arg6[%c0_12, %c0_13, %c0_14], %20 {strides = array<i32>} : memref<1x8x896xf32, #tpu.memory_space<vmem>>, vector<1x8x896xf32>,
    return
  }
  func.func @transform_0(%arg0: i32, %arg1: i32) -> (i32, i32, i32) {
    %c0_i32 = arith.constant 0 : i32
    %c0_i32_0 = arith.constant 0 : i32
    return %arg0, %c0_i32, %arg1 : i32, i32, i32
  }
  func.func @transform_1(%arg0: i32, %arg1: i32) -> (i32, i32, i32) {
    %c0_i32 = arith.constant 0 : i32
    %c0_i32_0 = arith.constant 0 : i32
    return %arg0, %c0_i32, %arg1 : i32, i32, i32
  }
  func.func @transform_2(%arg0: i32, %arg1: i32) -> (i32, i32) {
    %c0_i32 = arith.constant 0 : i32
    %c0_i32_0 = arith.constant 0 : i32
    %c0_i32_1 = arith.constant 0 : i32
    return %c0_i32, %c0_i32_0 : i32, i32
  }
  func.func @transform_3(%arg0: i32, %arg1: i32) -> (i32, i32) {
    %c0_i32 = arith.constant 0 : i32
    %c0_i32_0 = arith.constant 0 : i32
    %c0_i32_1 = arith.constant 0 : i32
    return %c0_i32, %c0_i32_0 : i32, i32
  }
  func.func @transform_4(%arg0: i32, %arg1: i32) -> (i32, i32, i32) {
    %c0_i32 = arith.constant 0 : i32
    %c0_i32_0 = arith.constant 0 : i32
    return %arg0, %c0_i32, %arg1 : i32, i32, i32
  }
}

module attributes {stable_mosaic.version = 11 : i64} {
  func.func @_conv1x1_kernel(%arg0: i32, %arg1: i32, %arg2: memref<1x8x896xf32, #tpu.memory_space<vmem>>, %arg3: memref<1x8x896xf32, #tpu.memory_space<vmem>>, %arg4: memref<8x8xf32, #tpu.memory_space<vmem>>, %arg5: memref<8x1xf32, #tpu.memory_space<vmem>>, %arg6: memref<1x8x896xf32, #tpu.memory_space<vmem>>) attributes {dimension_semantics = [#tpu.dimension_semantics<parallel>, #tpu.dimension_semantics<parallel>], iteration_bounds = array<i64: 2, 1>, scalar_prefetch = 0 : i64, scratch_operands = 0 : i64, tpu.core_type = #tpu.core_type<tc>, window_params = [{transform_indices = @transform_0, window_bounds = array<i64: 1, 8, 896>}, {transform_indices = @transform_1, window_bounds = array<i64: 1, 8, 896>}, {pipeline_mode = #tpu.pipeline_mode<synchronous>, transform_indices = @transform_2, window_bounds = array<i64: 8, 8>}, {pipeline_mode = #tpu.pipeline_mode<synchronous>, transform_indices = @transform_3, window_bounds = array<i64: 8, 1>}, {transform_indices = @transform_4, window_bounds = array<i64: 1, 8, 896>}]} {
    %c0 = arith.constant 0 : index
    %c0_0 = arith.constant 0 : index
    %0 = vector.load %arg4[%c0, %c0_0] : memref<8x8xf32, #tpu.memory_space<vmem>>, vector<8x8xf32>
    %c0_1 = arith.constant 0 : index
    %c0_2 = arith.constant 0 : index
    %c0_3 = arith.constant 0 : index
    %1 = vector.load %arg2[%c0_1, %c0_2, %c0_3] : memref<1x8x896xf32, #tpu.memory_space<vmem>>, vector<1x8x896xf32>
    %2 = vector.shape_cast %1 : vector<1x8x896xf32> to vector<8x896xf32>
    %cst = arith.constant dense<0.000000e+00> : vector<8x896xf32>
    %3 = tpu.matmul %0, %2, %cst {dimension_numbers = #tpu.dot_dimension_numbers<[1], [0], [0], [1], [0, 0, 1, 1], [], []>} : vector<8x8xf32>, vector<8x896xf32>, vector<8x896xf32> -> vector<8x896xf32>
    %c0_4 = arith.constant 0 : index
    %c0_5 = arith.constant 0 : index
    %4 = vector.load %arg5[%c0_4, %c0_5] : memref<8x1xf32, #tpu.memory_space<vmem>>, vector<8x1xf32>
    %5 = vector.broadcast %4 : vector<8x1xf32> to vector<8x896xf32>
    %6 = arith.addf %3, %5 : vector<8x896xf32>
    %c0_6 = arith.constant 0 : index
    %c0_7 = arith.constant 0 : index
    %c0_8 = arith.constant 0 : index
    %7 = vector.load %arg3[%c0_6, %c0_7, %c0_8] : memref<1x8x896xf32, #tpu.memory_space<vmem>>, vector<1x8x896xf32>
    %8 = vector.shape_cast %7 : vector<1x8x896xf32> to vector<8x896xf32>
    %9 = arith.addf %6, %8 : vector<8x896xf32>
    %c0_9 = arith.constant 0 : index
    %c0_10 = arith.constant 0 : index
    %c0_11 = arith.constant 0 : index
    %10 = vector.load %arg6[%c0_9, %c0_10, %c0_11] : memref<1x8x896xf32, #tpu.memory_space<vmem>>, vector<1x8x896xf32>
    %11 = vector.shape_cast %10 : vector<1x8x896xf32> to vector<8x896xf32>
    %12 = vector.shape_cast %9 : vector<8x896xf32> to vector<1x8x896xf32>
    tpu.vector_store %arg6[%c0_9, %c0_10, %c0_11], %12 {strides = array<i32>} : memref<1x8x896xf32, #tpu.memory_space<vmem>>, vector<1x8x896xf32>,
    return
  }
  func.func @transform_0(%arg0: i32, %arg1: i32) -> (i32, i32, i32) {
    %c0_i32 = arith.constant 0 : i32
    %c0_i32_0 = arith.constant 0 : i32
    return %arg0, %c0_i32, %arg1 : i32, i32, i32
  }
  func.func @transform_1(%arg0: i32, %arg1: i32) -> (i32, i32, i32) {
    %c0_i32 = arith.constant 0 : i32
    %c0_i32_0 = arith.constant 0 : i32
    return %arg0, %c0_i32, %arg1 : i32, i32, i32
  }
  func.func @transform_2(%arg0: i32, %arg1: i32) -> (i32, i32) {
    %c0_i32 = arith.constant 0 : i32
    %c0_i32_0 = arith.constant 0 : i32
    %c0_i32_1 = arith.constant 0 : i32
    return %c0_i32, %c0_i32_0 : i32, i32
  }
  func.func @transform_3(%arg0: i32, %arg1: i32) -> (i32, i32) {
    %c0_i32 = arith.constant 0 : i32
    %c0_i32_0 = arith.constant 0 : i32
    %c0_i32_1 = arith.constant 0 : i32
    return %c0_i32, %c0_i32_0 : i32, i32
  }
  func.func @transform_4(%arg0: i32, %arg1: i32) -> (i32, i32, i32) {
    %c0_i32 = arith.constant 0 : i32
    %c0_i32_0 = arith.constant 0 : i32
    return %arg0, %c0_i32, %arg1 : i32, i32, i32
  }
}

module attributes {stable_mosaic.version = 11 : i64} {
  func.func @_head_kernel(%arg0: i32, %arg1: i32, %arg2: memref<1x8x896xf32, #tpu.memory_space<vmem>>, %arg3: memref<128x8xf32, #tpu.memory_space<vmem>>, %arg4: memref<128x1xf32, #tpu.memory_space<vmem>>, %arg5: memref<2x128xf32, #tpu.memory_space<vmem>>, %arg6: memref<2x1xf32, #tpu.memory_space<vmem>>, %arg7: memref<1x2x896xf32, #tpu.memory_space<vmem>>) attributes {dimension_semantics = [#tpu.dimension_semantics<parallel>, #tpu.dimension_semantics<parallel>], iteration_bounds = array<i64: 2, 1>, scalar_prefetch = 0 : i64, scratch_operands = 0 : i64, tpu.core_type = #tpu.core_type<tc>, window_params = [{transform_indices = @transform_0, window_bounds = array<i64: 1, 8, 896>}, {pipeline_mode = #tpu.pipeline_mode<synchronous>, transform_indices = @transform_1, window_bounds = array<i64: 128, 8>}, {pipeline_mode = #tpu.pipeline_mode<synchronous>, transform_indices = @transform_2, window_bounds = array<i64: 128, 1>}, {pipeline_mode = #tpu.pipeline_mode<synchronous>, transform_indices = @transform_3, window_bounds = array<i64: 2, 128>}, {pipeline_mode = #tpu.pipeline_mode<synchronous>, transform_indices = @transform_4, window_bounds = array<i64: 2, 1>}, {transform_indices = @transform_5, window_bounds = array<i64: 1, 2, 896>}]} {
    %c0 = arith.constant 0 : index
    %c0_0 = arith.constant 0 : index
    %0 = vector.load %arg3[%c0, %c0_0] : memref<128x8xf32, #tpu.memory_space<vmem>>, vector<128x8xf32>
    %c0_1 = arith.constant 0 : index
    %c0_2 = arith.constant 0 : index
    %c0_3 = arith.constant 0 : index
    %1 = vector.load %arg2[%c0_1, %c0_2, %c0_3] : memref<1x8x896xf32, #tpu.memory_space<vmem>>, vector<1x8x896xf32>
    %2 = vector.shape_cast %1 : vector<1x8x896xf32> to vector<8x896xf32>
    %cst = arith.constant dense<0.000000e+00> : vector<128x896xf32>
    %3 = tpu.matmul %0, %2, %cst {dimension_numbers = #tpu.dot_dimension_numbers<[1], [0], [0], [1], [0, 0, 1, 1], [], []>} : vector<128x8xf32>, vector<8x896xf32>, vector<128x896xf32> -> vector<128x896xf32>
    %c0_4 = arith.constant 0 : index
    %c0_5 = arith.constant 0 : index
    %4 = vector.load %arg4[%c0_4, %c0_5] : memref<128x1xf32, #tpu.memory_space<vmem>>, vector<128x1xf32>
    %5 = vector.broadcast %4 : vector<128x1xf32> to vector<128x896xf32>
    %6 = arith.addf %3, %5 : vector<128x896xf32>
    %cst_6 = arith.constant 5.000000e-01 : f32
    %7 = vector.broadcast %cst_6 : f32 to vector<128x896xf32>
    %8 = arith.mulf %7, %6 : vector<128x896xf32>
    %cst_7 = arith.constant 0.707106769 : f32
    %9 = vector.broadcast %cst_7 : f32 to vector<128x896xf32>
    %10 = arith.mulf %6, %9 : vector<128x896xf32>
    %11 = math.erf %10 : vector<128x896xf32>
    %cst_8 = arith.constant 1.000000e+00 : f32
    %12 = vector.broadcast %cst_8 : f32 to vector<128x896xf32>
    %13 = arith.addf %12, %11 : vector<128x896xf32>
    %14 = arith.mulf %8, %13 : vector<128x896xf32>
    %c0_9 = arith.constant 0 : index
    %c0_10 = arith.constant 0 : index
    %15 = vector.load %arg5[%c0_9, %c0_10] : memref<2x128xf32, #tpu.memory_space<vmem>>, vector<2x128xf32>
    %cst_11 = arith.constant dense<0.000000e+00> : vector<2x896xf32>
    %16 = tpu.matmul %15, %14, %cst_11 {dimension_numbers = #tpu.dot_dimension_numbers<[1], [0], [0], [1], [0, 0, 1, 1], [], []>} : vector<2x128xf32>, vector<128x896xf32>, vector<2x896xf32> -> vector<2x896xf32>
    %c0_12 = arith.constant 0 : index
    %c0_13 = arith.constant 0 : index
    %17 = vector.load %arg6[%c0_12, %c0_13] : memref<2x1xf32, #tpu.memory_space<vmem>>, vector<2x1xf32>
    %18 = vector.broadcast %17 : vector<2x1xf32> to vector<2x896xf32>
    %19 = arith.addf %16, %18 : vector<2x896xf32>
    %c0_14 = arith.constant 0 : index
    %c0_15 = arith.constant 0 : index
    %c0_16 = arith.constant 0 : index
    %20 = vector.load %arg7[%c0_14, %c0_15, %c0_16] : memref<1x2x896xf32, #tpu.memory_space<vmem>>, vector<1x2x896xf32>
    %21 = vector.shape_cast %20 : vector<1x2x896xf32> to vector<2x896xf32>
    %22 = vector.shape_cast %19 : vector<2x896xf32> to vector<1x2x896xf32>
    tpu.vector_store %arg7[%c0_14, %c0_15, %c0_16], %22 {strides = array<i32>} : memref<1x2x896xf32, #tpu.memory_space<vmem>>, vector<1x2x896xf32>,
    return
  }
  func.func @transform_0(%arg0: i32, %arg1: i32) -> (i32, i32, i32) {
    %c0_i32 = arith.constant 0 : i32
    %c0_i32_0 = arith.constant 0 : i32
    return %arg0, %c0_i32, %arg1 : i32, i32, i32
  }
  func.func @transform_1(%arg0: i32, %arg1: i32) -> (i32, i32) {
    %c0_i32 = arith.constant 0 : i32
    %c0_i32_0 = arith.constant 0 : i32
    %c0_i32_1 = arith.constant 0 : i32
    return %c0_i32, %c0_i32_0 : i32, i32
  }
  func.func @transform_2(%arg0: i32, %arg1: i32) -> (i32, i32) {
    %c0_i32 = arith.constant 0 : i32
    %c0_i32_0 = arith.constant 0 : i32
    %c0_i32_1 = arith.constant 0 : i32
    return %c0_i32, %c0_i32_0 : i32, i32
  }
  func.func @transform_3(%arg0: i32, %arg1: i32) -> (i32, i32) {
    %c0_i32 = arith.constant 0 : i32
    %c0_i32_0 = arith.constant 0 : i32
    %c0_i32_1 = arith.constant 0 : i32
    return %c0_i32, %c0_i32_0 : i32, i32
  }
  func.func @transform_4(%arg0: i32, %arg1: i32) -> (i32, i32) {
    %c0_i32 = arith.constant 0 : i32
    %c0_i32_0 = arith.constant 0 : i32
    %c0_i32_1 = arith.constant 0 : i32
    return %c0_i32, %c0_i32_0 : i32, i32
  }
  func.func @transform_5(%arg0: i32, %arg1: i32) -> (i32, i32, i32) {
    %c0_i32 = arith.constant 0 : i32
    %c0_i32_0 = arith.constant 0 : i32
    return %arg0, %c0_i32, %arg1 : i32, i32, i32
  }
}

</mosaic_0001>

<llo_original>
// kernel: fno3d_binseg_forward.10
$region0: #{fno3d_binseg_forward.10}
  #allocation0 [shape = 'u32[]', space=smem, size = 0x4, offset = 0x4, fixed_abs, tag = 'smem constant byte address 0x4 - core index']
  #allocation1 [shape = 'u32[144,128]{1,0:T(1,128)}', space=vmem, size = 0x12000, scoped, tag = 'internal scratch']
  %s0 = inlined_call_operand.hbm [shape: f32[2,512,64], index: 0, kind: input, shape index: {}]
  %s1 = inlined_call_operand.vmem [shape: f32[3,512], index: 1, kind: input, shape index: {}]
  %s2 = inlined_call_operand.vmem [shape: f32[8,64], index: 2, kind: input, shape index: {}]
  %s3 = inlined_call_operand.vmem [shape: f32[8,3], index: 3, kind: input, shape index: {}]
  %s4 = inlined_call_operand.vmem [shape: f32[8,1], index: 4, kind: input, shape index: {}]
  %s5 = inlined_call_operand.vmem [shape: f32[2,8,512], index: 5, kind: output, shape index: {}]
  %s6 = sld [smem:[#allocation0]]
  $region57: #{fno3d_binseg_forward.10} parent=0
    _
  %s8 = ssub.s32 1, %s6
  %s9 = scalar_select 0, %s8, %s6
  $region1: #{fno3d_binseg_forward.10} parent=0
    #allocation2 [shape = 'u8[524288]{0}', space=vmem, size = 0x80000, scoped, tag = 'input window, operand 0']
    #allocation3 [shape = 's32[2]{0}', space=sflag, size = 0x8, scoped, tag = 'scoped memory for fno3d_binseg_forward.10']
    %10 = vsyncpa [#allocation3], 0
    %s11 = scalar_lea.sflag [#allocation3], 1
    %12 = vsyncpa %s11, 0
    loop: start=0, step=1, limit=4
    $region2: #{fno3d_binseg_forward.10} parent=1 // loop_pre_header
      _
    $region3: #{fno3d_binseg_forward.10} parent=1 // loop_header
      %s14 = sphi 0, %s18
      %p15 = scmp.ge.s32.totalorder %s14, 4
      %s21 = sphi 0, %s33
      %s22 = sphi 0, %s29
      %s23 = sphi 0, %s21
      %s24 = sphi 0, %s22
      %s25 = sphi 0, %s23
      %s26 = sphi 0, %s24
      %s38 = sphi 0, %s40
      %s41 = sphi 0, %s38
      %s42 = sphi 0, %s41
      %s58 = sphi 0, %s42
      %s64 = sphi 0, %s66
      %s67 = sphi 0, %s64
      %s68 = sphi 0, %s67
      %s84 = sphi 0, %s68
      %s88 = sphi 0, %s88
      %s90 = sphi 0, %s88
      %s91 = sphi 0, %s90
      %s105 = sphi 0, %s91
      %s109 = sphi 0, %s109
      %s111 = sphi 0, %s109
      %s112 = sphi 0, %s111
      %s126 = sphi 0, %s112
      %s130 = sphi 0, %s130
      %s132 = sphi 0, %s130
      %s133 = sphi 0, %s132
      %s147 = sphi 0, %s133
      %s155 = sphi 0, %s157
      %s158 = sphi 0, %s155
      %s159 = sphi 0, %s158
      %s175 = sphi 0, %s159
    $region4: #{fno3d_binseg_forward.10} parent=1 // loop_header_branch
      %17 = sbr.rel (%p15) target = $region8
    $region5: #{fno3d_binseg_forward.10} parent=1 // loop_body
      %s19 = ssub.s32 %s14, 1
      %s20 = ssub.s32 %s14, 2
      %s27 = sadd.s32 1, %s22
      %p28 = scmp.ge.s32.totalorder %s27, 1
      %s29 = scalar_select %p28, 0, %s27
      %s30 = sadd.s32 1, %s21
      %s31 = scalar_select %p28, %s30, %s21
      %p32 = scmp.ge.s32.totalorder %s31, 2
      %s33 = scalar_select %p32, 0, %s31
      %s34 = ssub.s32 %s21, %s33
      %s35 = ssub.s32 %s22, %s29
      %s36 = sor.u32 %s34, %s35
      %p37 = scmp.eq.s32.totalorder %s36, 0
      %s39 = sadd.s32 %s38, 1
      %s40 = scalar_select %p37, %s38, %s39
      %p43 = pneg %p37
      %p44 = scmp.eq.s32.totalorder %s14, 1
      %p45 = por %p43, %p44
      %p46 = scmp.ne.s32.totalorder %s38, %s41
      %p47 = scmp.eq.s32.totalorder %s14, 0
      %p48 = por %p46, %p47
      %p49 = scmp.ne.s32.totalorder %s38, %s41
      %p50 = scmp.eq.s32.totalorder %s19, 1
      %p51 = por %p49, %p50
      %p52 = scmp.ne.s32.totalorder %s41, %s42
      %p53 = scmp.eq.s32.totalorder %s19, 0
      %p54 = por %p52, %p53
      %p55 = scmp.ne.s32.totalorder %s41, %s42
      %p56 = scmp.eq.s32.totalorder %s20, 1
      %p57 = por %p55, %p56
      %p59 = scmp.ne.s32.totalorder %s42, %s58
      %p60 = scmp.eq.s32.totalorder %s20, 0
      %p61 = por %p59, %p60
      %s62 = ssub.s32 %s22, %s29
      %p63 = scmp.eq.s32.totalorder %s62, 0
      %s65 = sadd.s32 %s64, 1
      %s66 = scalar_select %p63, %s64, %s65
      %p69 = pneg %p63
      %p70 = scmp.eq.s32.totalorder %s14, 1
      %p71 = por %p69, %p70
      %p72 = scmp.ne.s32.totalorder %s64, %s67
      %p73 = scmp.eq.s32.totalorder %s14, 0
      %p74 = por %p72, %p73
      %p75 = scmp.ne.s32.totalorder %s64, %s67
      %p76 = scmp.eq.s32.totalorder %s19, 1
      %p77 = por %p75, %p76
      %p78 = scmp.ne.s32.totalorder %s67, %s68
      %p79 = scmp.eq.s32.totalorder %s19, 0
      %p80 = por %p78, %p79
      %p81 = scmp.ne.s32.totalorder %s67, %s68
      %p82 = scmp.eq.s32.totalorder %s20, 1
      %p83 = por %p81, %p82
      %p85 = scmp.ne.s32.totalorder %s68, %s84
      %p86 = scmp.eq.s32.totalorder %s20, 0
      %p87 = por %p85, %p86
      %s89 = sadd.s32 %s88, 1
      %p92 = scmp.eq.s32.totalorder %s14, 1
      %p93 = scmp.ne.s32.totalorder %s88, %s90
      %p94 = scmp.eq.s32.totalorder %s14, 0
      %p95 = por %p93, %p94
      %p96 = scmp.ne.s32.totalorder %s88, %s90
      %p97 = scmp.eq.s32.totalorder %s19, 1
      %p98 = por %p96, %p97
      %p99 = scmp.ne.s32.totalorder %s90, %s91
      %p100 = scmp.eq.s32.totalorder %s19, 0
      %p101 = por %p99, %p100
      %p102 = scmp.ne.s32.totalorder %s90, %s91
      %p103 = scmp.eq.s32.totalorder %s20, 1
      %p104 = por %p102, %p103
      %p106 = scmp.ne.s32.totalorder %s91, %s105
      %p107 = scmp.eq.s32.totalorder %s20, 0
      %p108 = por %p106, %p107
      %s110 = sadd.s32 %s109, 1
      %p113 = scmp.eq.s32.totalorder %s14, 1
      %p114 = scmp.ne.s32.totalorder %s109, %s111
      %p115 = scmp.eq.s32.totalorder %s14, 0
      %p116 = por %p114, %p115
      %p117 = scmp.ne.s32.totalorder %s109, %s111
      %p118 = scmp.eq.s32.totalorder %s19, 1
      %p119 = por %p117, %p118
      %p120 = scmp.ne.s32.totalorder %s111, %s112
      %p121 = scmp.eq.s32.totalorder %s19, 0
      %p122 = por %p120, %p121
      %p123 = scmp.ne.s32.totalorder %s111, %s112
      %p124 = scmp.eq.s32.totalorder %s20, 1
      %p125 = por %p123, %p124
      %p127 = scmp.ne.s32.totalorder %s112, %s126
      %p128 = scmp.eq.s32.totalorder %s20, 0
      %p129 = por %p127, %p128
      %s131 = sadd.s32 %s130, 1
      %p134 = scmp.eq.s32.totalorder %s14, 1
      %p135 = scmp.ne.s32.totalorder %s130, %s132
      %p136 = scmp.eq.s32.totalorder %s14, 0
      %p137 = por %p135, %p136
      %p138 = scmp.ne.s32.totalorder %s130, %s132
      %p139 = scmp.eq.s32.totalorder %s19, 1
      %p140 = por %p138, %p139
      %p141 = scmp.ne.s32.totalorder %s132, %s133
      %p142 = scmp.eq.s32.totalorder %s19, 0
      %p143 = por %p141, %p142
      %p144 = scmp.ne.s32.totalorder %s132, %s133
      %p145 = scmp.eq.s32.totalorder %s20, 1
      %p146 = por %p144, %p145
      %p148 = scmp.ne.s32.totalorder %s133, %s147
      %p149 = scmp.eq.s32.totalorder %s20, 0
      %p150 = por %p148, %p149
      %s151 = ssub.s32 %s21, %s33
      %s152 = ssub.s32 %s22, %s29
      %s153 = sor.u32 %s151, %s152
      %p154 = scmp.eq.s32.totalorder %s153, 0
      %s156 = sadd.s32 %s155, 1
      %s157 = scalar_select %p154, %s155, %s156
      %p160 = pneg %p154
      %p161 = scmp.eq.s32.totalorder %s14, 1
      %p162 = por %p160, %p161
      %p163 = scmp.ne.s32.totalorder %s155, %s158
      %p164 = scmp.eq.s32.totalorder %s14, 0
      %p165 = por %p163, %p164
      %p166 = scmp.ne.s32.totalorder %s155, %s158
      %p167 = scmp.eq.s32.totalorder %s19, 1
      %p168 = por %p166, %p167
      %p169 = scmp.ne.s32.totalorder %s158, %s159
      %p170 = scmp.eq.s32.totalorder %s19, 0
      %p171 = por %p169, %p170
      %p172 = scmp.ne.s32.totalorder %s158, %s159
      %p173 = scmp.eq.s32.totalorder %s20, 1
      %p174 = por %p172, %p173
      %p176 = scmp.ne.s32.totalorder %s159, %s175
      %p177 = scmp.eq.s32.totalorder %s20, 0
      %p178 = por %p176, %p177
      %p179 = scmp.le.s32.totalorder 1, %s14
      %p180 = scmp.lt.s32.totalorder %s14, 3
      %p181 = pnand %p179, %p180
      %p182 = pneg %p181
      // Predicated region
      $region9: #{fno3d_binseg_forward.10} parent=5 // pred_check
        _
      $region10: #{fno3d_binseg_forward.10} parent=5 // pred_check_branch
        %184 = sbr.rel (%p181) target = $region12
      $region11: #{fno3d_binseg_forward.10} parent=5 // pred_region
        %s185 = ssub.s32 %s14, 1
        // Predicated region
        $region13: #{fno3d_binseg_forward.10} parent=11 // pred_check
          %p186 = pneg %p80
        $region14: #{fno3d_binseg_forward.10} parent=11 // pred_check_branch
          %188 = sbr.rel (%p186) target = $region16
        $region15: #{fno3d_binseg_forward.10} parent=11 // pred_region
          %s189 = smul.u32 4, %s24
          %p190 = scmp.lt.s32.totalorder %s189, 3
          %s191 = scalar_select %p190, %s189, 3
          %s192 = smul.addr %s191, 4
          %s193 = scalar_lea.vmem %s1, %s192
          %s194 = smul.u32 4, %s24
        $region16: #{fno3d_binseg_forward.10} parent=11 // pred_fallthru
          _
        // Predicated region
        $region17: #{fno3d_binseg_forward.10} parent=11 // pred_check
          %p195 = pneg %p101
        $region18: #{fno3d_binseg_forward.10} parent=11 // pred_check_branch
          %197 = sbr.rel (%p195) target = $region20
        $region19: #{fno3d_binseg_forward.10} parent=11 // pred_region
          _
        $region20: #{fno3d_binseg_forward.10} parent=11 // pred_fallthru
          _
        // Predicated region
        $region21: #{fno3d_binseg_forward.10} parent=11 // pred_check
          %p198 = pneg %p122
        $region22: #{fno3d_binseg_forward.10} parent=11 // pred_check_branch
          %200 = sbr.rel (%p198) target = $region24
        $region23: #{fno3d_binseg_forward.10} parent=11 // pred_region
          _
        $region24: #{fno3d_binseg_forward.10} parent=11 // pred_fallthru
          _
        // Predicated region
        $region25: #{fno3d_binseg_forward.10} parent=11 // pred_check
          %p201 = pneg %p143
        $region26: #{fno3d_binseg_forward.10} parent=11 // pred_check_branch
          %203 = sbr.rel (%p201) target = $region28
        $region27: #{fno3d_binseg_forward.10} parent=11 // pred_region
          _
        $region28: #{fno3d_binseg_forward.10} parent=11 // pred_fallthru
          _
      $region12: #{fno3d_binseg_forward.10} parent=5 // pred_fallthru
        _
      %p204 = scmp.lt.s32.totalorder %s14, 2
      // Predicated region
      $region29: #{fno3d_binseg_forward.10} parent=5 // pred_check
        %p205 = pneg %p204
      $region30: #{fno3d_binseg_forward.10} parent=5 // pred_check_branch
        %207 = sbr.rel (%p205) target = $region32
      $region31: #{fno3d_binseg_forward.10} parent=5 // pred_region
        // Predicated region
        $region33: #{fno3d_binseg_forward.10} parent=31 // pred_check
          %p208 = pneg %p48
        $region34: #{fno3d_binseg_forward.10} parent=31 // pred_check_branch
          %210 = sbr.rel (%p208) target = $region36
        $region35: #{fno3d_binseg_forward.10} parent=31 // pred_region
          %s211 = sand.u32 %s38, 1
          %s212 = scalar_lea.sflag [#allocation3], %s211
          %s213 = sand.u32 %s38, 1
          %s214 = smul.addr %s213, 512
          %s215 = scalar_lea.vmem [#allocation2], %s214
          %s216 = smul.u32 64, %s22
          %s218 = ssub.s32 8192, 8192
          %219 = vsyncadd %s212, %s218
          %s220 = smul.addr %s21, 64
          %s221 = sadd.s32 %s216, %s220
          %s222 = smul.addr %s221, 128
          %s223 = scalar_lea.hbm %s0, %s222
          %s224 = sshll.u32 %s215, 4
          %s225 = int_to_ptr.vmem [resolvable:$true] %s224
          %230 = dma.hbm_to_vmem [thread:$0]  %s223, 8192, %s225, %s212, 128, 128, 8
        $region36: #{fno3d_binseg_forward.10} parent=31 // pred_fallthru
          _
      $region32: #{fno3d_binseg_forward.10} parent=5 // pred_fallthru
        _
      %p231 = scmp.le.s32.totalorder 1, %s14
      %p232 = scmp.lt.s32.totalorder %s14, 3
      %p233 = pnand %p231, %p232
      %p234 = pneg %p233
      // Predicated region
      $region37: #{fno3d_binseg_forward.10} parent=5 // pred_check
        _
      $region38: #{fno3d_binseg_forward.10} parent=5 // pred_check_branch
        %236 = sbr.rel (%p233) target = $region40
      $region39: #{fno3d_binseg_forward.10} parent=5 // pred_region
        %s237 = ssub.s32 %s14, 1
        %s238 = sand.u32 %s41, 1
        %s239 = scalar_lea.sflag [#allocation3], %s238
        %s240 = sand.u32 %s41, 1
        %s241 = smul.addr %s240, 512
        %s242 = scalar_lea.vmem [#allocation2], %s241
        // Predicated region
        $region41: #{fno3d_binseg_forward.10} parent=39 // pred_check
          %p243 = pneg %p54
        $region42: #{fno3d_binseg_forward.10} parent=39 // pred_check_branch
          %245 = sbr.rel (%p243) target = $region44
        $region43: #{fno3d_binseg_forward.10} parent=39 // pred_region
          %246 = dma.done %s239, 8192
        $region44: #{fno3d_binseg_forward.10} parent=39 // pred_fallthru
          _
        %s247 = sand.u32 %s41, 1
        %s248 = scalar_lea.sflag [#allocation3], %s247
        %s249 = sand.u32 %s41, 1
        %s250 = smul.addr %s249, 512
        %s251 = scalar_lea.vmem [#allocation2], %s250
        %p252 = pneg %p54
        %p253 = pneg %p51
        %s254 = smul.u32 4, %s24
        %p255 = scmp.lt.s32.totalorder %s254, 3
        %s256 = scalar_select %p255, %s254, 3
        %s257 = smul.addr %s256, 4
        %s258 = scalar_lea.vmem %s1, %s257
        %p259 = pneg %p80
        %p260 = pneg %p77
        %p261 = pneg %p101
        %p262 = pneg %p98
        %p263 = pneg %p122
        %p264 = pneg %p119
        %p265 = pneg %p143
        %p266 = pneg %p140
        %p267 = pneg %p171
        %p268 = pneg %p168
        %s269 = smul.u32 4, %s24
        %p270 = scmp.lt.s32.totalorder %s23, 1
        %s271 = scalar_select %p270, %s23, 1
        %p272 = scmp.lt.s32.totalorder %s269, 3
        %s273 = scalar_select %p272, %s269, 3
        %s274 = smul.addr %s271, 4
        %s275 = sadd.s32 %s273, %s274
        %s276 = smul.addr %s275, 8
        %s277 = scalar_lea.vmem %s5, %s276
        %s278 = smul.u32 64, %s24
        %s279 = smul.u32 4, %s24
        %p280 = scmp.lt.s32.totalorder %s279, 3
        %s281 = scalar_select %p280, %s279, 3
        %s282 = smul.addr %s281, 4
        %s283 = scalar_lea.vmem %s1, %s282
        %s284 = smul.u32 4, %s24
        %s285 = smul.u32 4, %s24
        %p286 = scmp.lt.s32.totalorder %s23, 1
        %s287 = scalar_select %p286, %s23, 1
        %p288 = scmp.lt.s32.totalorder %s285, 3
        %s289 = scalar_select %p288, %s285, 3
        %s290 = smul.addr %s287, 4
        %s291 = sadd.s32 %s289, %s290
        %s292 = smul.addr %s291, 8
        %s293 = scalar_lea.vmem %s5, %s292
        %s294 = smul.u32 4, %s24
        %v295 = vld [vmem:[%s242] sm:$0xff]
        %v296 = vld [vmem:[%s242 + $0x8] sm:$0xff]
        %v297 = vld [vmem:[%s242 + $0x10] sm:$0xff]
        %v298 = vld [vmem:[%s242 + $0x18] sm:$0xff]
        %v299 = vld [vmem:[%s242 + $0x20] sm:$0xff]
        %v300 = vld [vmem:[%s242 + $0x28] sm:$0xff]
        %v301 = vld [vmem:[%s242 + $0x30] sm:$0xff]
        %v302 = vld [vmem:[%s242 + $0x38] sm:$0xff]
        %v303 = vld [vmem:[%s242 + $0x40] sm:$0xff]
        %v304 = vld [vmem:[%s242 + $0x48] sm:$0xff]
        %v305 = vld [vmem:[%s242 + $0x50] sm:$0xff]
        %v306 = vld [vmem:[%s242 + $0x58] sm:$0xff]
        %v307 = vld [vmem:[%s242 + $0x60] sm:$0xff]
        %v308 = vld [vmem:[%s242 + $0x68] sm:$0xff]
        %v309 = vld [vmem:[%s242 + $0x70] sm:$0xff]
        %v310 = vld [vmem:[%s242 + $0x78] sm:$0xff]
        %v311 = vld [vmem:[%s242 + $0x80] sm:$0xff]
        %v312 = vld [vmem:[%s242 + $0x88] sm:$0xff]
        %v313 = vld [vmem:[%s242 + $0x90] sm:$0xff]
        %v314 = vld [vmem:[%s242 + $0x98] sm:$0xff]
        %v315 = vld [vmem:[%s242 + $0xa0] sm:$0xff]
        %v316 = vld [vmem:[%s242 + $0xa8] sm:$0xff]
        %v317 = vld [vmem:[%s242 + $0xb0] sm:$0xff]
        %v318 = vld [vmem:[%s242 + $0xb8] sm:$0xff]
        %v319 = vld [vmem:[%s242 + $0xc0] sm:$0xff]
        %v320 = vld [vmem:[%s242 + $0xc8] sm:$0xff]
        %v321 = vld [vmem:[%s242 + $0xd0] sm:$0xff]
        %v322 = vld [vmem:[%s242 + $0xd8] sm:$0xff]
        %v323 = vld [vmem:[%s242 + $0xe0] sm:$0xff]
        %v324 = vld [vmem:[%s242 + $0xe8] sm:$0xff]
        %v325 = vld [vmem:[%s242 + $0xf0] sm:$0xff]
        %v326 = vld [vmem:[%s242 + $0xf8] sm:$0xff]
        %v327 = vld [vmem:[%s242 + $0x100] sm:$0xff]
        %v328 = vld [vmem:[%s242 + $0x108] sm:$0xff]
        %v329 = vld [vmem:[%s242 + $0x110] sm:$0xff]
        %v330 = vld [vmem:[%s242 + $0x118] sm:$0xff]
        %v331 = vld [vmem:[%s242 + $0x120] sm:$0xff]
        %v332 = vld [vmem:[%s242 + $0x128] sm:$0xff]
        %v333 = vld [vmem:[%s242 + $0x130] sm:$0xff]
        %v334 = vld [vmem:[%s242 + $0x138] sm:$0xff]
        %v335 = vld [vmem:[%s242 + $0x140] sm:$0xff]
        %v336 = vld [vmem:[%s242 + $0x148] sm:$0xff]
        %v337 = vld [vmem:[%s242 + $0x150] sm:$0xff]
        %v338 = vld [vmem:[%s242 + $0x158] sm:$0xff]
        %v339 = vld [vmem:[%s242 + $0x160] sm:$0xff]
        %v340 = vld [vmem:[%s242 + $0x168] sm:$0xff]
        %v341 = vld [vmem:[%s242 + $0x170] sm:$0xff]
        %v342 = vld [vmem:[%s242 + $0x178] sm:$0xff]
        %v343 = vld [vmem:[%s242 + $0x180] sm:$0xff]
        %v344 = vld [vmem:[%s242 + $0x188] sm:$0xff]
        %v345 = vld [vmem:[%s242 + $0x190] sm:$0xff]
        %v346 = vld [vmem:[%s242 + $0x198] sm:$0xff]
        %v347 = vld [vmem:[%s242 + $0x1a0] sm:$0xff]
        %v348 = vld [vmem:[%s242 + $0x1a8] sm:$0xff]
        %v349 = vld [vmem:[%s242 + $0x1b0] sm:$0xff]
        %v350 = vld [vmem:[%s242 + $0x1b8] sm:$0xff]
        %v351 = vld [vmem:[%s242 + $0x1c0] sm:$0xff]
        %v352 = vld [vmem:[%s242 + $0x1c8] sm:$0xff]
        %v353 = vld [vmem:[%s242 + $0x1d0] sm:$0xff]
        %v354 = vld [vmem:[%s242 + $0x1d8] sm:$0xff]
        %v355 = vld [vmem:[%s242 + $0x1e0] sm:$0xff]
        %v356 = vld [vmem:[%s242 + $0x1e8] sm:$0xff]
        %v357 = vld [vmem:[%s242 + $0x1f0] sm:$0xff]
        %v358 = vld [vmem:[%s242 + $0x1f8] sm:$0xff]
        %v359 = vld [vmem:[%s2] sm:$0xff]
        %v360 = vld [vmem:[%s283] sm:$0x77]
        %v361 = vld [vmem:[%s283 + $0x8] sm:$0x77]
        %v362 = vld [vmem:[%s3] sm:$0xff]
        %364 = vset.pattern.permute.xlu0 0
        %365 = vperm.xlu0 %364, %v362
        %v366 = vpop.permute.xlu0 %365
        %v370 = vlaneseq
        %v371 = vshrl.u32 %v370, 7
        %v372 = vsub.s32 0, %v371
        %v373 = vrot.slane %v360, %v372
        %v374 = vlaneseq
        %v375 = vshrl.u32 %v374, 7
        %v376 = vsub.s32 4, %v375
        %v377 = vrot.slane %v360, %v376
        %v378 = vlaneseq
        %v379 = vshrl.u32 %v378, 7
        %v380 = vsub.s32 0, %v379
        %v381 = vrot.slane %v361, %v380
        %v382 = vlaneseq
        %v383 = vshrl.u32 %v382, 7
        %v384 = vsub.s32 4, %v383
        %v385 = vrot.slane %v361, %v384
        %v390 = vlaneseq
        %v391 = vshrl.u32 %v390, 7
        %v392 = vsub.s32 0, %v391
        %v393 = vrot.slane %v373, %v392
        %v394 = vlaneseq
        %v395 = vshrl.u32 %v394, 7
        %v396 = vsub.s32 0, %v395
        %v397 = vrot.slane %v377, %v396
        %v398 = vlaneseq
        %v399 = vshrl.u32 %v398, 7
        %v400 = vsub.s32 0, %v399
        %v401 = vrot.slane %v381, %v400
        %v402 = vlaneseq
        %v403 = vshrl.u32 %v402, 7
        %v404 = vsub.s32 0, %v403
        %v405 = vrot.slane %v385, %v404
        %v406 = vmul.f32 %v366, %v393
        %v407 = vmul.f32 %v366, %v397
        %v408 = vmul.f32 %v366, %v401
        %v409 = vmul.f32 %v366, %v405
        %vm410 = vcmask 523264
        %v412 = vsel %vm410, %v359, 0
        %v415 = vsel %vm410, %v295, 0
        %v418 = vsel %vm410, %v296, 0
        %v421 = vsel %vm410, %v297, 0
        %v424 = vsel %vm410, %v298, 0
        %v427 = vsel %vm410, %v299, 0
        %v430 = vsel %vm410, %v300, 0
        %v433 = vsel %vm410, %v301, 0
        %v436 = vsel %vm410, %v302, 0
        %v439 = vsel %vm410, %v303, 0
        %v442 = vsel %vm410, %v304, 0
        %v445 = vsel %vm410, %v305, 0
        %v448 = vsel %vm410, %v306, 0
        %v451 = vsel %vm410, %v307, 0
        %v454 = vsel %vm410, %v308, 0
        %v457 = vsel %vm410, %v309, 0
        %v460 = vsel %vm410, %v310, 0
        %v463 = vsel %vm410, %v311, 0
        %v466 = vsel %vm410, %v312, 0
        %v469 = vsel %vm410, %v313, 0
        %v472 = vsel %vm410, %v314, 0
        %v475 = vsel %vm410, %v315, 0
        %v478 = vsel %vm410, %v316, 0
        %v481 = vsel %vm410, %v317, 0
        %v484 = vsel %vm410, %v318, 0
        %v487 = vsel %vm410, %v319, 0
        %v490 = vsel %vm410, %v320, 0
        %v493 = vsel %vm410, %v321, 0
        %v496 = vsel %vm410, %v322, 0
        %v499 = vsel %vm410, %v323, 0
        %v502 = vsel %vm410, %v324, 0
        %v505 = vsel %vm410, %v325, 0
        %v508 = vsel %vm410, %v326, 0
        %v511 = vsel %vm410, %v327, 0
        %v514 = vsel %vm410, %v328, 0
        %v517 = vsel %vm410, %v329, 0
        %v520 = vsel %vm410, %v330, 0
        %v523 = vsel %vm410, %v331, 0
        %v526 = vsel %vm410, %v332, 0
        %v529 = vsel %vm410, %v333, 0
        %v532 = vsel %vm410, %v334, 0
        %v535 = vsel %vm410, %v335, 0
        %v538 = vsel %vm410, %v336, 0
        %v541 = vsel %vm410, %v337, 0
        %v544 = vsel %vm410, %v338, 0
        %v547 = vsel %vm410, %v339, 0
        %v550 = vsel %vm410, %v340, 0
        %v553 = vsel %vm410, %v341, 0
        %v556 = vsel %vm410, %v342, 0
        %v559 = vsel %vm410, %v343, 0
        %v562 = vsel %vm410, %v344, 0
        %v565 = vsel %vm410, %v345, 0
        %v568 = vsel %vm410, %v346, 0
        %v571 = vsel %vm410, %v347, 0
        %v574 = vsel %vm410, %v348, 0
        %v577 = vsel %vm410, %v349, 0
        %v580 = vsel %vm410, %v350, 0
        %v583 = vsel %vm410, %v351, 0
        %v586 = vsel %vm410, %v352, 0
        %v589 = vsel %vm410, %v353, 0
        %v592 = vsel %vm410, %v354, 0
        %v595 = vsel %vm410, %v355, 0
        %v598 = vsel %vm410, %v356, 0
        %v601 = vsel %vm410, %v357, 0
        %v604 = vsel %vm410, %v358, 0
        %606 = vmatprep.subr.mxu0 0.0
        %607 = vmatpush1.xpose.msra.mxu0 %v415
        %608 = vmatprep.subr.mxu0 0.0
        %609 = vmatpush1.xpose.msra.mxu0 %v418
        %610 = vmatprep.subr.mxu0 0.0
        %611 = vmatpush1.xpose.msra.mxu0 %v421
        %612 = vmatprep.subr.mxu0 0.0
        %613 = vmatpush1.xpose.msra.mxu0 %v424
        %614 = vmatprep.subr.mxu0 0.0
        %615 = vmatpush1.xpose.msra.mxu0 %v427
        %616 = vmatprep.subr.mxu0 0.0
        %617 = vmatpush1.xpose.msra.mxu0 %v430
        %618 = vmatprep.subr.mxu0 0.0
        %619 = vmatpush1.xpose.msra.mxu0 %v433
        %620 = vmatprep.subr.mxu0 0.0
        %621 = vmatpush1.xpose.msra.mxu0 %v436
        %622 = vmatprep.subr.mxu0 0.0
        %623 = vmatpush1.xpose.msra.mxu0 %v439
        %624 = vmatprep.subr.mxu0 0.0
        %625 = vmatpush1.xpose.msra.mxu0 %v442
        %626 = vmatprep.subr.mxu0 0.0
        %627 = vmatpush1.xpose.msra.mxu0 %v445
        %628 = vmatprep.subr.mxu0 0.0
        %629 = vmatpush1.xpose.msra.mxu0 %v448
        %630 = vmatprep.subr.mxu0 0.0
        %631 = vmatpush1.xpose.msra.mxu0 %v451
        %632 = vmatprep.subr.mxu0 0.0
        %633 = vmatpush1.xpose.msra.mxu0 %v454
        %634 = vmatprep.subr.mxu0 0.0
        %635 = vmatpush1.xpose.msra.mxu0 %v457
        %636 = vmatprep.subr.mxu0 0.0
        %637 = vmatpush1.xpose.msra.mxu0 %v460
        %638 = vmatprep.subr.mxu0 0.0
        %639 = vmatpush1.xpose.msra.mxu0 %v463
        %640 = vmatprep.subr.mxu0 0.0
        %641 = vmatpush1.xpose.msra.mxu0 %v466
        %642 = vmatprep.subr.mxu0 0.0
        %643 = vmatpush1.xpose.msra.mxu0 %v469
        %644 = vmatprep.subr.mxu0 0.0
        %645 = vmatpush1.xpose.msra.mxu0 %v472
        %646 = vmatprep.subr.mxu0 0.0
        %647 = vmatpush1.xpose.msra.mxu0 %v475
        %648 = vmatprep.subr.mxu0 0.0
        %649 = vmatpush1.xpose.msra.mxu0 %v478
        %650 = vmatprep.subr.mxu0 0.0
        %651 = vmatpush1.xpose.msra.mxu0 %v481
        %652 = vmatprep.subr.mxu0 0.0
        %653 = vmatpush1.xpose.msra.mxu0 %v484
        %654 = vmatprep.subr.mxu0 0.0
        %655 = vmatpush1.xpose.msra.mxu0 %v487
        %656 = vmatprep.subr.mxu0 0.0
        %657 = vmatpush1.xpose.msra.mxu0 %v490
        %658 = vmatprep.subr.mxu0 0.0
        %659 = vmatpush1.xpose.msra.mxu0 %v493
        %660 = vmatprep.subr.mxu0 0.0
        %661 = vmatpush1.xpose.msra.mxu0 %v496
        %662 = vmatprep.subr.mxu0 0.0
        %663 = vmatpush1.xpose.msra.mxu0 %v499
        %664 = vmatprep.subr.mxu0 0.0
        %665 = vmatpush1.xpose.msra.mxu0 %v502
        %666 = vmatprep.subr.mxu0 0.0
        %667 = vmatpush1.xpose.msra.mxu0 %v505
        %668 = vmatprep.subr.mxu0 0.0
        %669 = vmatpush1.xpose.msra.mxu0 %v508
        %670 = vmatprep.mubr.f32.mxu0 0.0
        %671 = vmatmul.mubr.f32.gmra.mrb[0].mxu0 %v412
        %v672 = vpop.f32.mrb[0].mxu0
        %v673 = vadd.f32 %v406, %v672
        %v674 = vpop.f32.mrb[0].mxu0
        %v675 = vadd.f32 %v407, %v674
        %676 = vdwg.mxu0
        %677 = vmatprep.subr.mxu0 0.0
        %678 = vmatpush1.xpose.msra.mxu0 %v511
        %679 = vmatprep.subr.mxu0 0.0
        %680 = vmatpush1.xpose.msra.mxu0 %v514
        %681 = vmatprep.subr.mxu0 0.0
        %682 = vmatpush1.xpose.msra.mxu0 %v517
        %683 = vmatprep.subr.mxu0 0.0
        %684 = vmatpush1.xpose.msra.mxu0 %v520
        %685 = vmatprep.subr.mxu0 0.0
        %686 = vmatpush1.xpose.msra.mxu0 %v523
        %687 = vmatprep.subr.mxu0 0.0
        %688 = vmatpush1.xpose.msra.mxu0 %v526
        %689 = vmatprep.subr.mxu0 0.0
        %690 = vmatpush1.xpose.msra.mxu0 %v529
        %691 = vmatprep.subr.mxu0 0.0
        %692 = vmatpush1.xpose.msra.mxu0 %v532
        %693 = vmatprep.subr.mxu0 0.0
        %694 = vmatpush1.xpose.msra.mxu0 %v535
        %695 = vmatprep.subr.mxu0 0.0
        %696 = vmatpush1.xpose.msra.mxu0 %v538
        %697 = vmatprep.subr.mxu0 0.0
        %698 = vmatpush1.xpose.msra.mxu0 %v541
        %699 = vmatprep.subr.mxu0 0.0
        %700 = vmatpush1.xpose.msra.mxu0 %v544
        %701 = vmatprep.subr.mxu0 0.0
        %702 = vmatpush1.xpose.msra.mxu0 %v547
        %703 = vmatprep.subr.mxu0 0.0
        %704 = vmatpush1.xpose.msra.mxu0 %v550
        %705 = vmatprep.subr.mxu0 0.0
        %706 = vmatpush1.xpose.msra.mxu0 %v553
        %707 = vmatprep.subr.mxu0 0.0
        %708 = vmatpush1.xpose.msra.mxu0 %v556
        %709 = vmatprep.subr.mxu0 0.0
        %710 = vmatpush1.xpose.msra.mxu0 %v559
        %711 = vmatprep.subr.mxu0 0.0
        %712 = vmatpush1.xpose.msra.mxu0 %v562
        %713 = vmatprep.subr.mxu0 0.0
        %714 = vmatpush1.xpose.msra.mxu0 %v565
        %715 = vmatprep.subr.mxu0 0.0
        %716 = vmatpush1.xpose.msra.mxu0 %v568
        %717 = vmatprep.subr.mxu0 0.0
        %718 = vmatpush1.xpose.msra.mxu0 %v571
        %719 = vmatprep.subr.mxu0 0.0
        %720 = vmatpush1.xpose.msra.mxu0 %v574
        %721 = vmatprep.subr.mxu0 0.0
        %722 = vmatpush1.xpose.msra.mxu0 %v577
        %723 = vmatprep.subr.mxu0 0.0
        %724 = vmatpush1.xpose.msra.mxu0 %v580
        %725 = vmatprep.subr.mxu0 0.0
        %726 = vmatpush1.xpose.msra.mxu0 %v583
        %727 = vmatprep.subr.mxu0 0.0
        %728 = vmatpush1.xpose.msra.mxu0 %v586
        %729 = vmatprep.subr.mxu0 0.0
        %730 = vmatpush1.xpose.msra.mxu0 %v589
        %731 = vmatprep.subr.mxu0 0.0
        %732 = vmatpush1.xpose.msra.mxu0 %v592
        %733 = vmatprep.subr.mxu0 0.0
        %734 = vmatpush1.xpose.msra.mxu0 %v595
        %735 = vmatprep.subr.mxu0 0.0
        %736 = vmatpush1.xpose.msra.mxu0 %v598
        %737 = vmatprep.subr.mxu0 0.0
        %738 = vmatpush1.xpose.msra.mxu0 %v601
        %739 = vmatprep.subr.mxu0 0.0
        %740 = vmatpush1.xpose.msra.mxu0 %v604
        %741 = vmatprep.mubr.f32.mxu0 0.0
        %742 = vmatmul.mubr.f32.gmra.mrb[0].mxu0 %v412
        %v743 = vpop.f32.mrb[0].mxu0
        %v744 = vadd.f32 %v408, %v743
        %v745 = vpop.f32.mrb[0].mxu0
        %v746 = vadd.f32 %v409, %v745
        %747 = vdwg.mxu0
        %748 = vset.pattern.permute.xlu0 1
        %749 = vperm.xlu0 %748, %v362
        %v750 = vpop.permute.xlu0 %749
        %v752 = vlaneseq
        %v753 = vshrl.u32 %v752, 7
        %v754 = vsub.s32 1, %v753
        %v755 = vrot.slane %v360, %v754
        %v756 = vlaneseq
        %v757 = vshrl.u32 %v756, 7
        %v758 = vsub.s32 5, %v757
        %v759 = vrot.slane %v360, %v758
        %v760 = vlaneseq
        %v761 = vshrl.u32 %v760, 7
        %v762 = vsub.s32 1, %v761
        %v763 = vrot.slane %v361, %v762
        %v764 = vlaneseq
        %v765 = vshrl.u32 %v764, 7
        %v766 = vsub.s32 5, %v765
        %v767 = vrot.slane %v361, %v766
        %v772 = vlaneseq
        %v773 = vshrl.u32 %v772, 7
        %v774 = vsub.s32 1, %v773
        %v775 = vrot.slane %v755, %v774
        %v776 = vlaneseq
        %v777 = vshrl.u32 %v776, 7
        %v778 = vsub.s32 1, %v777
        %v779 = vrot.slane %v759, %v778
        %v780 = vlaneseq
        %v781 = vshrl.u32 %v780, 7
        %v782 = vsub.s32 1, %v781
        %v783 = vrot.slane %v763, %v782
        %v784 = vlaneseq
        %v785 = vshrl.u32 %v784, 7
        %v786 = vsub.s32 1, %v785
        %v787 = vrot.slane %v767, %v786
        %v788 = vmul.f32 %v750, %v775
        %v789 = vmul.f32 %v750, %v779
        %v790 = vmul.f32 %v750, %v783
        %v791 = vmul.f32 %v750, %v787
        %v792 = vadd.f32 %v673, %v788
        %v793 = vadd.f32 %v675, %v789
        %v794 = vadd.f32 %v744, %v790
        %v795 = vadd.f32 %v746, %v791
        %796 = vset.pattern.permute.xlu0 2
        %797 = vperm.xlu0 %796, %v362
        %v798 = vpop.permute.xlu0 %797
        %v800 = vlaneseq
        %v801 = vshrl.u32 %v800, 7
        %v802 = vsub.s32 2, %v801
        %v803 = vrot.slane %v360, %v802
        %v804 = vlaneseq
        %v805 = vshrl.u32 %v804, 7
        %v806 = vsub.s32 6, %v805
        %v807 = vrot.slane %v360, %v806
        %v808 = vlaneseq
        %v809 = vshrl.u32 %v808, 7
        %v810 = vsub.s32 2, %v809
        %v811 = vrot.slane %v361, %v810
        %v812 = vlaneseq
        %v813 = vshrl.u32 %v812, 7
        %v814 = vsub.s32 6, %v813
        %v815 = vrot.slane %v361, %v814
        %v820 = vlaneseq
        %v821 = vshrl.u32 %v820, 7
        %v822 = vsub.s32 2, %v821
        %v823 = vrot.slane %v803, %v822
        %v824 = vlaneseq
        %v825 = vshrl.u32 %v824, 7
        %v826 = vsub.s32 2, %v825
        %v827 = vrot.slane %v807, %v826
        %v828 = vlaneseq
        %v829 = vshrl.u32 %v828, 7
        %v830 = vsub.s32 2, %v829
        %v831 = vrot.slane %v811, %v830
        %v832 = vlaneseq
        %v833 = vshrl.u32 %v832, 7
        %v834 = vsub.s32 2, %v833
        %v835 = vrot.slane %v815, %v834
        %v836 = vmul.f32 %v798, %v823
        %v837 = vmul.f32 %v798, %v827
        %v838 = vmul.f32 %v798, %v831
        %v839 = vmul.f32 %v798, %v835
        %v840 = vadd.f32 %v792, %v836
        %v841 = vadd.f32 %v793, %v837
        %v842 = vadd.f32 %v794, %v838
        %v843 = vadd.f32 %v795, %v839
        %v844 = vld [vmem:[%s4] sm:$0xff]
        %846 = vset.pattern.permute.xlu0 0
        %847 = vperm.xlu0 %846, %v844
        %v848 = vpop.permute.xlu0 %847
        %v850 = vadd.f32 %v840, %v848
        %v851 = vadd.f32 %v841, %v848
        %v852 = vadd.f32 %v842, %v848
        %v853 = vadd.f32 %v843, %v848
        %854 = vst [vmem:[%s293] sm:$0xff] %v850
        %855 = vst [vmem:[%s293 + $0x8] sm:$0xff] %v851
        %856 = vst [vmem:[%s293 + $0x10] sm:$0xff] %v852
        %857 = vst [vmem:[%s293 + $0x18] sm:$0xff] %v853
        %s858 = smul.u32 4, %s24
        %p859 = scmp.lt.s32.totalorder %s23, 1
        %s860 = scalar_select %p859, %s23, 1
        %p861 = scmp.lt.s32.totalorder %s858, 3
        %s862 = scalar_select %p861, %s858, 3
        %s863 = smul.addr %s860, 4
        %s864 = sadd.s32 %s862, %s863
        %s865 = smul.addr %s864, 8
        %s866 = scalar_lea.vmem %s5, %s865
        // Predicated region
        $region45: #{fno3d_binseg_forward.10} parent=39 // pred_check
          %p867 = pneg %p168
        $region46: #{fno3d_binseg_forward.10} parent=39 // pred_check_branch
          %869 = sbr.rel (%p867) target = $region48
        $region47: #{fno3d_binseg_forward.10} parent=39 // pred_region
          %s870 = smul.u32 4, %s24
        $region48: #{fno3d_binseg_forward.10} parent=39 // pred_fallthru
          _
      $region40: #{fno3d_binseg_forward.10} parent=5 // pred_fallthru
        _
      %p871 = scmp.le.s32.totalorder 2, %s14
      // Predicated region
      $region49: #{fno3d_binseg_forward.10} parent=5 // pred_check
        %p872 = pneg %p871
      $region50: #{fno3d_binseg_forward.10} parent=5 // pred_check_branch
        %874 = sbr.rel (%p872) target = $region52
      $region51: #{fno3d_binseg_forward.10} parent=5 // pred_region
        %s875 = ssub.s32 %s14, 2
        // Predicated region
        $region53: #{fno3d_binseg_forward.10} parent=51 // pred_check
          %p876 = pneg %p174
        $region54: #{fno3d_binseg_forward.10} parent=51 // pred_check_branch
          %878 = sbr.rel (%p876) target = $region56
        $region55: #{fno3d_binseg_forward.10} parent=51 // pred_region
          %s879 = smul.u32 4, %s26
          %p880 = scmp.lt.s32.totalorder %s25, 1
          %s881 = scalar_select %p880, %s25, 1
          %p882 = scmp.lt.s32.totalorder %s879, 3
          %s883 = scalar_select %p882, %s879, 3
          %s884 = smul.addr %s881, 4
          %s885 = sadd.s32 %s883, %s884
          %s886 = smul.addr %s885, 8
          %s887 = scalar_lea.vmem %s5, %s886
        $region56: #{fno3d_binseg_forward.10} parent=51 // pred_fallthru
          _
      $region52: #{fno3d_binseg_forward.10} parent=5 // pred_fallthru
        _
    $region6: #{fno3d_binseg_forward.10} parent=1 // loop_footer
      %s18 = sadd.s32 1, %s14
    $region7: #{fno3d_binseg_forward.10} parent=1 // loop_footer_branch
      %13 = sbr.rel target = $region3
    $region8: #{fno3d_binseg_forward.10} parent=1 // loop_exit
      _
    %888 = vsyncpa [#allocation3], 1
    %s889 = scalar_lea.sflag [#allocation3], 1
    %890 = vsyncpa %s889, 1

// kernel: fno3d_binseg_forward.11
$region0: #{fno3d_binseg_forward.11}
  #allocation0 [shape = 'u32[]', space=smem, size = 0x4, offset = 0x4, fixed_abs, tag = 'smem constant byte address 0x4 - core index']
  #allocation1 [shape = 'u32[144,128]{1,0:T(1,128)}', space=vmem, size = 0x12000, scoped, tag = 'internal scratch']
  %s0 = inlined_call_operand.vmem [shape: f32[2,8,256], index: 0, kind: input, shape index: {}]
  %s1 = inlined_call_operand.vmem [shape: f32[2,8,256], index: 1, kind: input, shape index: {}]
  %s2 = inlined_call_operand.vmem [shape: f32[8,8,256], index: 2, kind: input, shape index: {}]
  %s3 = inlined_call_operand.vmem [shape: f32[8,8,256], index: 3, kind: input, shape index: {}]
  %s4 = inlined_call_operand.vmem [shape: f32[2,8,256], index: 4, kind: output, shape index: {0}]
  %s5 = inlined_call_operand.vmem [shape: f32[2,8,256], index: 5, kind: output, shape index: {1}]
  %6 = xla_tuple %s4, %s5
  %s7 = sld [smem:[#allocation0]]
  $region57: #{fno3d_binseg_forward.11} parent=0
    _
  %s9 = ssub.s32 1, %s7
  %s10 = scalar_select 0, %s9, %s7
  loop: start=0, step=1, limit=4
  $region2: #{fno3d_binseg_forward.11} parent=0 // loop_pre_header
    _
  $region3: #{fno3d_binseg_forward.11} parent=0 // loop_header
    %s12 = sphi 0, %s16
    %p13 = scmp.ge.s32.totalorder %s12, 4
    %s19 = sphi 0, %s31
    %s20 = sphi 0, %s27
    %s21 = sphi 0, %s19
    %s22 = sphi 0, %s20
    %s23 = sphi 0, %s21
    %s24 = sphi 0, %s22
    %s34 = sphi 0, %s36
    %s37 = sphi 0, %s34
    %s38 = sphi 0, %s37
    %s54 = sphi 0, %s38
    %s60 = sphi 0, %s62
    %s63 = sphi 0, %s60
    %s64 = sphi 0, %s63
    %s80 = sphi 0, %s64
    %s86 = sphi 0, %s88
    %s89 = sphi 0, %s86
    %s90 = sphi 0, %s89
    %s106 = sphi 0, %s90
    %s112 = sphi 0, %s114
    %s115 = sphi 0, %s112
    %s116 = sphi 0, %s115
    %s132 = sphi 0, %s116
    %s140 = sphi 0, %s142
    %s143 = sphi 0, %s140
    %s144 = sphi 0, %s143
    %s160 = sphi 0, %s144
    %s168 = sphi 0, %s170
    %s171 = sphi 0, %s168
    %s172 = sphi 0, %s171
    %s188 = sphi 0, %s172
  $region4: #{fno3d_binseg_forward.11} parent=0 // loop_header_branch
    %15 = sbr.rel (%p13) target = $region8
  $region5: #{fno3d_binseg_forward.11} parent=0 // loop_body
    %s17 = ssub.s32 %s12, 1
    %s18 = ssub.s32 %s12, 2
    %s25 = sadd.s32 1, %s20
    %p26 = scmp.ge.s32.totalorder %s25, 2
    %s27 = scalar_select %p26, 0, %s25
    %s28 = sadd.s32 1, %s19
    %s29 = scalar_select %p26, %s28, %s19
    %p30 = scmp.ge.s32.totalorder %s29, 1
    %s31 = scalar_select %p30, 0, %s29
    %s32 = ssub.s32 %s20, %s27
    %p33 = scmp.eq.s32.totalorder %s32, 0
    %s35 = sadd.s32 %s34, 1
    %s36 = scalar_select %p33, %s34, %s35
    %p39 = pneg %p33
    %p40 = scmp.eq.s32.totalorder %s12, 1
    %p41 = por %p39, %p40
    %p42 = scmp.ne.s32.totalorder %s34, %s37
    %p43 = scmp.eq.s32.totalorder %s12, 0
    %p44 = por %p42, %p43
    %p45 = scmp.ne.s32.totalorder %s34, %s37
    %p46 = scmp.eq.s32.totalorder %s17, 1
    %p47 = por %p45, %p46
    %p48 = scmp.ne.s32.totalorder %s37, %s38
    %p49 = scmp.eq.s32.totalorder %s17, 0
    %p50 = por %p48, %p49
    %p51 = scmp.ne.s32.totalorder %s37, %s38
    %p52 = scmp.eq.s32.totalorder %s18, 1
    %p53 = por %p51, %p52
    %p55 = scmp.ne.s32.totalorder %s38, %s54
    %p56 = scmp.eq.s32.totalorder %s18, 0
    %p57 = por %p55, %p56
    %s58 = ssub.s32 %s20, %s27
    %p59 = scmp.eq.s32.totalorder %s58, 0
    %s61 = sadd.s32 %s60, 1
    %s62 = scalar_select %p59, %s60, %s61
    %p65 = pneg %p59
    %p66 = scmp.eq.s32.totalorder %s12, 1
    %p67 = por %p65, %p66
    %p68 = scmp.ne.s32.totalorder %s60, %s63
    %p69 = scmp.eq.s32.totalorder %s12, 0
    %p70 = por %p68, %p69
    %p71 = scmp.ne.s32.totalorder %s60, %s63
    %p72 = scmp.eq.s32.totalorder %s17, 1
    %p73 = por %p71, %p72
    %p74 = scmp.ne.s32.totalorder %s63, %s64
    %p75 = scmp.eq.s32.totalorder %s17, 0
    %p76 = por %p74, %p75
    %p77 = scmp.ne.s32.totalorder %s63, %s64
    %p78 = scmp.eq.s32.totalorder %s18, 1
    %p79 = por %p77, %p78
    %p81 = scmp.ne.s32.totalorder %s64, %s80
    %p82 = scmp.eq.s32.totalorder %s18, 0
    %p83 = por %p81, %p82
    %s84 = ssub.s32 %s19, %s31
    %p85 = scmp.eq.s32.totalorder %s84, 0
    %s87 = sadd.s32 %s86, 1
    %s88 = scalar_select %p85, %s86, %s87
    %p91 = pneg %p85
    %p92 = scmp.eq.s32.totalorder %s12, 1
    %p93 = por %p91, %p92
    %p94 = scmp.ne.s32.totalorder %s86, %s89
    %p95 = scmp.eq.s32.totalorder %s12, 0
    %p96 = por %p94, %p95
    %p97 = scmp.ne.s32.totalorder %s86, %s89
    %p98 = scmp.eq.s32.totalorder %s17, 1
    %p99 = por %p97, %p98
    %p100 = scmp.ne.s32.totalorder %s89, %s90
    %p101 = scmp.eq.s32.totalorder %s17, 0
    %p102 = por %p100, %p101
    %p103 = scmp.ne.s32.totalorder %s89, %s90
    %p104 = scmp.eq.s32.totalorder %s18, 1
    %p105 = por %p103, %p104
    %p107 = scmp.ne.s32.totalorder %s90, %s106
    %p108 = scmp.eq.s32.totalorder %s18, 0
    %p109 = por %p107, %p108
    %s110 = ssub.s32 %s19, %s31
    %p111 = scmp.eq.s32.totalorder %s110, 0
    %s113 = sadd.s32 %s112, 1
    %s114 = scalar_select %p111, %s112, %s113
    %p117 = pneg %p111
    %p118 = scmp.eq.s32.totalorder %s12, 1
    %p119 = por %p117, %p118
    %p120 = scmp.ne.s32.totalorder %s112, %s115
    %p121 = scmp.eq.s32.totalorder %s12, 0
    %p122 = por %p120, %p121
    %p123 = scmp.ne.s32.totalorder %s112, %s115
    %p124 = scmp.eq.s32.totalorder %s17, 1
    %p125 = por %p123, %p124
    %p126 = scmp.ne.s32.totalorder %s115, %s116
    %p127 = scmp.eq.s32.totalorder %s17, 0
    %p128 = por %p126, %p127
    %p129 = scmp.ne.s32.totalorder %s115, %s116
    %p130 = scmp.eq.s32.totalorder %s18, 1
    %p131 = por %p129, %p130
    %p133 = scmp.ne.s32.totalorder %s116, %s132
    %p134 = scmp.eq.s32.totalorder %s18, 0
    %p135 = por %p133, %p134
    %s136 = ssub.s32 %s20, %s27
    %s137 = ssub.s32 %s19, %s31
    %s138 = sor.u32 %s136, %s137
    %p139 = scmp.eq.s32.totalorder %s138, 0
    %s141 = sadd.s32 %s140, 1
    %s142 = scalar_select %p139, %s140, %s141
    %p145 = pneg %p139
    %p146 = scmp.eq.s32.totalorder %s12, 1
    %p147 = por %p145, %p146
    %p148 = scmp.ne.s32.totalorder %s140, %s143
    %p149 = scmp.eq.s32.totalorder %s12, 0
    %p150 = por %p148, %p149
    %p151 = scmp.ne.s32.totalorder %s140, %s143
    %p152 = scmp.eq.s32.totalorder %s17, 1
    %p153 = por %p151, %p152
    %p154 = scmp.ne.s32.totalorder %s143, %s144
    %p155 = scmp.eq.s32.totalorder %s17, 0
    %p156 = por %p154, %p155
    %p157 = scmp.ne.s32.totalorder %s143, %s144
    %p158 = scmp.eq.s32.totalorder %s18, 1
    %p159 = por %p157, %p158
    %p161 = scmp.ne.s32.totalorder %s144, %s160
    %p162 = scmp.eq.s32.totalorder %s18, 0
    %p163 = por %p161, %p162
    %s164 = ssub.s32 %s20, %s27
    %s165 = ssub.s32 %s19, %s31
    %s166 = sor.u32 %s164, %s165
    %p167 = scmp.eq.s32.totalorder %s166, 0
    %s169 = sadd.s32 %s168, 1
    %s170 = scalar_select %p167, %s168, %s169
    %p173 = pneg %p167
    %p174 = scmp.eq.s32.totalorder %s12, 1
    %p175 = por %p173, %p174
    %p176 = scmp.ne.s32.totalorder %s168, %s171
    %p177 = scmp.eq.s32.totalorder %s12, 0
    %p178 = por %p176, %p177
    %p179 = scmp.ne.s32.totalorder %s168, %s171
    %p180 = scmp.eq.s32.totalorder %s17, 1
    %p181 = por %p179, %p180
    %p182 = scmp.ne.s32.totalorder %s171, %s172
    %p183 = scmp.eq.s32.totalorder %s17, 0
    %p184 = por %p182, %p183
    %p185 = scmp.ne.s32.totalorder %s171, %s172
    %p186 = scmp.eq.s32.totalorder %s18, 1
    %p187 = por %p185, %p186
    %p189 = scmp.ne.s32.totalorder %s172, %s188
    %p190 = scmp.eq.s32.totalorder %s18, 0
    %p191 = por %p189, %p190
    %p192 = scmp.le.s32.totalorder 1, %s12
    %p193 = scmp.lt.s32.totalorder %s12, 3
    %p194 = pnand %p192, %p193
    %p195 = pneg %p194
    // Predicated region
    $region9: #{fno3d_binseg_forward.11} parent=5 // pred_check
      _
    $region10: #{fno3d_binseg_forward.11} parent=5 // pred_check_branch
      %197 = sbr.rel (%p194) target = $region12
    $region11: #{fno3d_binseg_forward.11} parent=5 // pred_region
      %s198 = ssub.s32 %s12, 1
      // Predicated region
      $region13: #{fno3d_binseg_forward.11} parent=11 // pred_check
        %p199 = pneg %p102
      $region14: #{fno3d_binseg_forward.11} parent=11 // pred_check_branch
        %201 = sbr.rel (%p199) target = $region16
      $region15: #{fno3d_binseg_forward.11} parent=11 // pred_region
        %s202 = smul.u32 8, %s21
        %p203 = scmp.lt.s32.totalorder %s202, 7
        %s204 = scalar_select %p203, %s202, 7
        %s205 = smul.addr %s204, 2
        %s206 = smul.addr %s205, 8
        %s207 = scalar_lea.vmem %s2, %s206
        %s208 = smul.u32 8, %s21
      $region16: #{fno3d_binseg_forward.11} parent=11 // pred_fallthru
        _
      // Predicated region
      $region17: #{fno3d_binseg_forward.11} parent=11 // pred_check
        %p209 = pneg %p128
      $region18: #{fno3d_binseg_forward.11} parent=11 // pred_check_branch
        %211 = sbr.rel (%p209) target = $region20
      $region19: #{fno3d_binseg_forward.11} parent=11 // pred_region
        %s212 = smul.u32 8, %s21
        %p213 = scmp.lt.s32.totalorder %s212, 7
        %s214 = scalar_select %p213, %s212, 7
        %s215 = smul.addr %s214, 2
        %s216 = smul.addr %s215, 8
        %s217 = scalar_lea.vmem %s3, %s216
        %s218 = smul.u32 8, %s21
      $region20: #{fno3d_binseg_forward.11} parent=11 // pred_fallthru
        _
    $region12: #{fno3d_binseg_forward.11} parent=5 // pred_fallthru
      _
    %p219 = scmp.lt.s32.totalorder %s12, 2
    // Predicated region
    $region21: #{fno3d_binseg_forward.11} parent=5 // pred_check
      %p220 = pneg %p219
    $region22: #{fno3d_binseg_forward.11} parent=5 // pred_check_branch
      %222 = sbr.rel (%p220) target = $region24
    $region23: #{fno3d_binseg_forward.11} parent=5 // pred_region
      // Predicated region
      $region25: #{fno3d_binseg_forward.11} parent=23 // pred_check
        %p223 = pneg %p44
      $region26: #{fno3d_binseg_forward.11} parent=23 // pred_check_branch
        %225 = sbr.rel (%p223) target = $region28
      $region27: #{fno3d_binseg_forward.11} parent=23 // pred_region
        %p226 = scmp.lt.s32.totalorder %s20, 1
        %s227 = scalar_select %p226, %s20, 1
        %s228 = smul.addr %s227, 2
        %s229 = smul.addr %s228, 8
        %s230 = scalar_lea.vmem %s0, %s229
      $region28: #{fno3d_binseg_forward.11} parent=23 // pred_fallthru
        _
      // Predicated region
      $region29: #{fno3d_binseg_forward.11} parent=23 // pred_check
        %p231 = pneg %p70
      $region30: #{fno3d_binseg_forward.11} parent=23 // pred_check_branch
        %233 = sbr.rel (%p231) target = $region32
      $region31: #{fno3d_binseg_forward.11} parent=23 // pred_region
        %p234 = scmp.lt.s32.totalorder %s20, 1
        %s235 = scalar_select %p234, %s20, 1
        %s236 = smul.addr %s235, 2
        %s237 = smul.addr %s236, 8
        %s238 = scalar_lea.vmem %s1, %s237
      $region32: #{fno3d_binseg_forward.11} parent=23 // pred_fallthru
        _
    $region24: #{fno3d_binseg_forward.11} parent=5 // pred_fallthru
      _
    %p239 = scmp.le.s32.totalorder 1, %s12
    %p240 = scmp.lt.s32.totalorder %s12, 3
    %p241 = pnand %p239, %p240
    %p242 = pneg %p241
    // Predicated region
    $region33: #{fno3d_binseg_forward.11} parent=5 // pred_check
      _
    $region34: #{fno3d_binseg_forward.11} parent=5 // pred_check_branch
      %244 = sbr.rel (%p241) target = $region36
    $region35: #{fno3d_binseg_forward.11} parent=5 // pred_region
      %s245 = ssub.s32 %s12, 1
      %p246 = scmp.lt.s32.totalorder %s22, 1
      %s247 = scalar_select %p246, %s22, 1
      %s248 = smul.addr %s247, 2
      %s249 = smul.addr %s248, 8
      %s250 = scalar_lea.vmem %s0, %s249
      %p251 = pneg %p50
      %p252 = pneg %p47
      %p253 = scmp.lt.s32.totalorder %s22, 1
      %s254 = scalar_select %p253, %s22, 1
      %s255 = smul.addr %s254, 2
      %s256 = smul.addr %s255, 8
      %s257 = scalar_lea.vmem %s1, %s256
      %p258 = pneg %p76
      %p259 = pneg %p73
      %s260 = smul.u32 8, %s21
      %p261 = scmp.lt.s32.totalorder %s260, 7
      %s262 = scalar_select %p261, %s260, 7
      %s263 = smul.addr %s262, 2
      %s264 = smul.addr %s263, 8
      %s265 = scalar_lea.vmem %s2, %s264
      %p266 = pneg %p102
      %p267 = pneg %p99
      %s268 = smul.u32 8, %s21
      %p269 = scmp.lt.s32.totalorder %s268, 7
      %s270 = scalar_select %p269, %s268, 7
      %s271 = smul.addr %s270, 2
      %s272 = smul.addr %s271, 8
      %s273 = scalar_lea.vmem %s3, %s272
      %p274 = pneg %p128
      %p275 = pneg %p125
      %p276 = pneg %p156
      %p277 = pneg %p153
      %p278 = scmp.lt.s32.totalorder %s22, 1
      %s279 = scalar_select %p278, %s22, 1
      %p280 = scmp.lt.s32.totalorder %s21, 0
      %s281 = scalar_select %p280, %s21, 0
      %s282 = smul.addr %s281, 2
      %s283 = smul.addr %s279, 2
      %s284 = sadd.s32 %s282, %s283
      %s285 = smul.addr %s284, 8
      %s286 = scalar_lea.vmem %s4, %s285
      %p287 = pneg %p184
      %p288 = pneg %p181
      %p289 = scmp.lt.s32.totalorder %s22, 1
      %s290 = scalar_select %p289, %s22, 1
      %p291 = scmp.lt.s32.totalorder %s21, 0
      %s292 = scalar_select %p291, %s21, 0
      %s293 = smul.addr %s292, 2
      %s294 = smul.addr %s290, 2
      %s295 = sadd.s32 %s293, %s294
      %s296 = smul.addr %s295, 8
      %s297 = scalar_lea.vmem %s5, %s296
      %p298 = scmp.lt.s32.totalorder %s22, 1
      %s299 = scalar_select %p298, %s22, 1
      %s300 = smul.addr %s299, 2
      %s301 = smul.addr %s300, 8
      %s302 = scalar_lea.vmem %s0, %s301
      %p303 = scmp.lt.s32.totalorder %s22, 1
      %s304 = scalar_select %p303, %s22, 1
      %s305 = smul.addr %s304, 2
      %s306 = smul.addr %s305, 8
      %s307 = scalar_lea.vmem %s1, %s306
      %s308 = smul.u32 8, %s21
      %p309 = scmp.lt.s32.totalorder %s308, 7
      %s310 = scalar_select %p309, %s308, 7
      %s311 = smul.addr %s310, 2
      %s312 = smul.addr %s311, 8
      %s313 = scalar_lea.vmem %s2, %s312
      %s314 = smul.u32 8, %s21
      %s315 = smul.u32 8, %s21
      %p316 = scmp.lt.s32.totalorder %s315, 7
      %s317 = scalar_select %p316, %s315, 7
      %s318 = smul.addr %s317, 2
      %s319 = smul.addr %s318, 8
      %s320 = scalar_lea.vmem %s3, %s319
      %s321 = smul.u32 8, %s21
      %p322 = scmp.lt.s32.totalorder %s22, 1
      %s323 = scalar_select %p322, %s22, 1
      %p324 = scmp.lt.s32.totalorder %s21, 0
      %s325 = scalar_select %p324, %s21, 0
      %s326 = smul.addr %s325, 2
      %s327 = smul.addr %s323, 2
      %s328 = sadd.s32 %s326, %s327
      %s329 = smul.addr %s328, 8
      %s330 = scalar_lea.vmem %s4, %s329
      %p331 = scmp.lt.s32.totalorder %s22, 1
      %s332 = scalar_select %p331, %s22, 1
      %p333 = scmp.lt.s32.totalorder %s21, 0
      %s334 = scalar_select %p333, %s21, 0
      %s335 = smul.addr %s334, 2
      %s336 = smul.addr %s332, 2
      %s337 = sadd.s32 %s335, %s336
      %s338 = smul.addr %s337, 8
      %s339 = scalar_lea.vmem %s5, %s338
      %v340 = vld [vmem:[%s302] sm:$0xff]
      %v341 = vld [vmem:[%s302 + $0x8] sm:$0xff]
      %v342 = vld [vmem:[%s307] sm:$0xff]
      %v343 = vld [vmem:[%s307 + $0x8] sm:$0xff]
      %v344 = vld [vmem:[%s313] sm:$0xff]
      %v345 = vld [vmem:[%s313 + $0x8] sm:$0xff]
      %v346 = vld [vmem:[%s320] sm:$0xff]
      %v347 = vld [vmem:[%s320 + $0x8] sm:$0xff]
      %v348 = vmul.f32 %v340, %v344
      %v349 = vmul.f32 %v341, %v345
      %v350 = vmul.f32 %v342, %v346
      %v351 = vmul.f32 %v343, %v347
      %v352 = vsub.f32 %v348, %v350
      %v353 = vsub.f32 %v349, %v351
      %v354 = vrot.slane %v352, 4
      %v355 = vadd.f32 %v352, %v354
      %v356 = vrot.slane %v355, 2
      %v357 = vadd.f32 %v355, %v356
      %v358 = vrot.slane %v357, 1
      %v359 = vadd.f32 %v357, %v358
      %v360 = vrot.slane %v353, 4
      %v361 = vadd.f32 %v353, %v360
      %v362 = vrot.slane %v361, 2
      %v363 = vadd.f32 %v361, %v362
      %v364 = vrot.slane %v363, 1
      %v365 = vadd.f32 %v363, %v364
      %v368 = vcombine.low %v359, %v365
      %v370 = vunpack.c.l.s4 1966171168
      %v371 = vunpack.c.0.s8 %v370
      %v372 = vlaneseq
      %v373 = vshrl.u32 %v372, 7
      %v374 = vsub.s32 %v371, %v373
      %v375 = vrot.slane %v368, %v374
      %v377 = vunpack.c.l.s4 1966171168
      %v378 = vunpack.c.0.s8 %v377
      %v379 = vlaneseq
      %v380 = vshrl.u32 %v379, 7
      %v381 = vsub.s32 %v378, %v380
      %v382 = vrot.slane %v375, %v381
      %v384 = vlaneseq
      %vm385 = vcmp.ge.s32.totalorder %v384, 0
      %vm386 = vcmp.lt.s32.totalorder %v384, 256
      %vm387 = vmand %vm385, %vm386
      %388 = vst.msk [vmem:[%s330] ss:$8 sm:$0x3] %vm387, %v382
      %389 = vst.msk [vmem:[%s330] ss:$8 sm:$0x0] %vm387, %v382
      %v390 = vmul.f32 %v340, %v346
      %v391 = vmul.f32 %v341, %v347
      %v392 = vmul.f32 %v342, %v344
      %v393 = vmul.f32 %v343, %v345
      %v394 = vadd.f32 %v390, %v392
      %v395 = vadd.f32 %v391, %v393
      %v396 = vrot.slane %v394, 4
      %v397 = vadd.f32 %v394, %v396
      %v398 = vrot.slane %v397, 2
      %v399 = vadd.f32 %v397, %v398
      %v400 = vrot.slane %v399, 1
      %v401 = vadd.f32 %v399, %v400
      %v402 = vrot.slane %v395, 4
      %v403 = vadd.f32 %v395, %v402
      %v404 = vrot.slane %v403, 2
      %v405 = vadd.f32 %v403, %v404
      %v406 = vrot.slane %v405, 1
      %v407 = vadd.f32 %v405, %v406
      %v410 = vcombine.low %v401, %v407
      %v412 = vunpack.c.l.s4 1966171168
      %v413 = vunpack.c.0.s8 %v412
      %v414 = vlaneseq
      %v415 = vshrl.u32 %v414, 7
      %v416 = vsub.s32 %v413, %v415
      %v417 = vrot.slane %v410, %v416
      %v419 = vunpack.c.l.s4 1966171168
      %v420 = vunpack.c.0.s8 %v419
      %v421 = vlaneseq
      %v422 = vshrl.u32 %v421, 7
      %v423 = vsub.s32 %v420, %v422
      %v424 = vrot.slane %v417, %v423
      %426 = vst.msk [vmem:[%s339] ss:$8 sm:$0x3] %vm387, %v424
      %427 = vst.msk [vmem:[%s339] ss:$8 sm:$0x0] %vm387, %v424
      %s428 = scalar_lea.vmem %s313, 16
      %v429 = vld [vmem:[%s428] sm:$0xff]
      %v430 = vld [vmem:[%s428 + $0x8] sm:$0xff]
      %s431 = scalar_lea.vmem %s320, 16
      %v432 = vld [vmem:[%s431] sm:$0xff]
      %v433 = vld [vmem:[%s431 + $0x8] sm:$0xff]
      %v434 = vmul.f32 %v340, %v429
      %v435 = vmul.f32 %v341, %v430
      %v436 = vmul.f32 %v342, %v432
      %v437 = vmul.f32 %v343, %v433
      %v438 = vsub.f32 %v434, %v436
      %v439 = vsub.f32 %v435, %v437
      %v440 = vrot.slane %v438, 4
      %v441 = vadd.f32 %v438, %v440
      %v442 = vrot.slane %v441, 2
      %v443 = vadd.f32 %v441, %v442
      %v444 = vrot.slane %v443, 1
      %v445 = vadd.f32 %v443, %v444
      %v446 = vrot.slane %v439, 4
      %v447 = vadd.f32 %v439, %v446
      %v448 = vrot.slane %v447, 2
      %v449 = vadd.f32 %v447, %v448
      %v450 = vrot.slane %v449, 1
      %v451 = vadd.f32 %v449, %v450
      %v454 = vcombine.low %v445, %v451
      %v456 = vunpack.c.l.s4 1966171168
      %v457 = vunpack.c.0.s8 %v456
      %v458 = vlaneseq
      %v459 = vshrl.u32 %v458, 7
      %v460 = vsub.s32 %v457, %v459
      %v461 = vrot.slane %v454, %v460
      %v463 = vunpack.c.l.s4 1966171168
      %v464 = vunpack.c.0.s8 %v463
      %v465 = vlaneseq
      %v466 = vshrl.u32 %v465, 7
      %v467 = vsub.s32 %v464, %v466
      %v468 = vrot.slane %v461, %v467
      %s470 = scalar_lea.vmem %s330, 1
      %471 = vst.msk [vmem:[%s470] ss:$8 sm:$0x3] %vm387, %v468
      %472 = vst.msk [vmem:[%s470] ss:$8 sm:$0x0] %vm387, %v468
      %v473 = vmul.f32 %v340, %v432
      %v474 = vmul.f32 %v341, %v433
      %v475 = vmul.f32 %v342, %v429
      %v476 = vmul.f32 %v343, %v430
      %v477 = vadd.f32 %v473, %v475
      %v478 = vadd.f32 %v474, %v476
      %v479 = vrot.slane %v477, 4
      %v480 = vadd.f32 %v477, %v479
      %v481 = vrot.slane %v480, 2
      %v482 = vadd.f32 %v480, %v481
      %v483 = vrot.slane %v482, 1
      %v484 = vadd.f32 %v482, %v483
      %v485 = vrot.slane %v478, 4
      %v486 = vadd.f32 %v478, %v485
      %v487 = vrot.slane %v486, 2
      %v488 = vadd.f32 %v486, %v487
      %v489 = vrot.slane %v488, 1
      %v490 = vadd.f32 %v488, %v489
      %v493 = vcombine.low %v484, %v490
      %v495 = vunpack.c.l.s4 1966171168
      %v496 = vunpack.c.0.s8 %v495
      %v497 = vlaneseq
      %v498 = vshrl.u32 %v497, 7
      %v499 = vsub.s32 %v496, %v498
      %v500 = vrot.slane %v493, %v499
      %v502 = vunpack.c.l.s4 1966171168
      %v503 = vunpack.c.0.s8 %v502
      %v504 = vlaneseq
      %v505 = vshrl.u32 %v504, 7
      %v506 = vsub.s32 %v503, %v505
      %v507 = vrot.slane %v500, %v506
      %s509 = scalar_lea.vmem %s339, 1
      %510 = vst.msk [vmem:[%s509] ss:$8 sm:$0x3] %vm387, %v507
      %511 = vst.msk [vmem:[%s509] ss:$8 sm:$0x0] %vm387, %v507
      %s512 = scalar_lea.vmem %s313, 32
      %v513 = vld [vmem:[%s512] sm:$0xff]
      %v514 = vld [vmem:[%s512 + $0x8] sm:$0xff]
      %s515 = scalar_lea.vmem %s320, 32
      %v516 = vld [vmem:[%s515] sm:$0xff]
      %v517 = vld [vmem:[%s515 + $0x8] sm:$0xff]
      %v518 = vmul.f32 %v340, %v513
      %v519 = vmul.f32 %v341, %v514
      %v520 = vmul.f32 %v342, %v516
      %v521 = vmul.f32 %v343, %v517
      %v522 = vsub.f32 %v518, %v520
      %v523 = vsub.f32 %v519, %v521
      %v524 = vrot.slane %v522, 4
      %v525 = vadd.f32 %v522, %v524
      %v526 = vrot.slane %v525, 2
      %v527 = vadd.f32 %v525, %v526
      %v528 = vrot.slane %v527, 1
      %v529 = vadd.f32 %v527, %v528
      %v530 = vrot.slane %v523, 4
      %v531 = vadd.f32 %v523, %v530
      %v532 = vrot.slane %v531, 2
      %v533 = vadd.f32 %v531, %v532
      %v534 = vrot.slane %v533, 1
      %v535 = vadd.f32 %v533, %v534
      %v538 = vcombine.low %v529, %v535
      %v540 = vunpack.c.l.s4 1966171168
      %v541 = vunpack.c.0.s8 %v540
      %v542 = vlaneseq
      %v543 = vshrl.u32 %v542, 7
      %v544 = vsub.s32 %v541, %v543
      %v545 = vrot.slane %v538, %v544
      %v547 = vunpack.c.l.s4 1966171168
      %v548 = vunpack.c.0.s8 %v547
      %v549 = vlaneseq
      %v550 = vshrl.u32 %v549, 7
      %v551 = vsub.s32 %v548, %v550
      %v552 = vrot.slane %v545, %v551
      %s554 = scalar_lea.vmem %s330, 2
      %555 = vst.msk [vmem:[%s554] ss:$8 sm:$0x3] %vm387, %v552
      %556 = vst.msk [vmem:[%s554] ss:$8 sm:$0x0] %vm387, %v552
      %v557 = vmul.f32 %v340, %v516
      %v558 = vmul.f32 %v341, %v517
      %v559 = vmul.f32 %v342, %v513
      %v560 = vmul.f32 %v343, %v514
      %v561 = vadd.f32 %v557, %v559
      %v562 = vadd.f32 %v558, %v560
      %v563 = vrot.slane %v561, 4
      %v564 = vadd.f32 %v561, %v563
      %v565 = vrot.slane %v564, 2
      %v566 = vadd.f32 %v564, %v565
      %v567 = vrot.slane %v566, 1
      %v568 = vadd.f32 %v566, %v567
      %v569 = vrot.slane %v562, 4
      %v570 = vadd.f32 %v562, %v569
      %v571 = vrot.slane %v570, 2
      %v572 = vadd.f32 %v570, %v571
      %v573 = vrot.slane %v572, 1
      %v574 = vadd.f32 %v572, %v573
      %v577 = vcombine.low %v568, %v574
      %v579 = vunpack.c.l.s4 1966171168
      %v580 = vunpack.c.0.s8 %v579
      %v581 = vlaneseq
      %v582 = vshrl.u32 %v581, 7
      %v583 = vsub.s32 %v580, %v582
      %v584 = vrot.slane %v577, %v583
      %v586 = vunpack.c.l.s4 1966171168
      %v587 = vunpack.c.0.s8 %v586
      %v588 = vlaneseq
      %v589 = vshrl.u32 %v588, 7
      %v590 = vsub.s32 %v587, %v589
      %v591 = vrot.slane %v584, %v590
      %s593 = scalar_lea.vmem %s339, 2
      %594 = vst.msk [vmem:[%s593] ss:$8 sm:$0x3] %vm387, %v591
      %595 = vst.msk [vmem:[%s593] ss:$8 sm:$0x0] %vm387, %v591
      %s596 = scalar_lea.vmem %s313, 48
      %v597 = vld [vmem:[%s596] sm:$0xff]
      %v598 = vld [vmem:[%s596 + $0x8] sm:$0xff]
      %s599 = scalar_lea.vmem %s320, 48
      %v600 = vld [vmem:[%s599] sm:$0xff]
      %v601 = vld [vmem:[%s599 + $0x8] sm:$0xff]
      %v602 = vmul.f32 %v340, %v597
      %v603 = vmul.f32 %v341, %v598
      %v604 = vmul.f32 %v342, %v600
      %v605 = vmul.f32 %v343, %v601
      %v606 = vsub.f32 %v602, %v604
      %v607 = vsub.f32 %v603, %v605
      %v608 = vrot.slane %v606, 4
      %v609 = vadd.f32 %v606, %v608
      %v610 = vrot.slane %v609, 2
      %v611 = vadd.f32 %v609, %v610
      %v612 = vrot.slane %v611, 1
      %v613 = vadd.f32 %v611, %v612
      %v614 = vrot.slane %v607, 4
      %v615 = vadd.f32 %v607, %v614
      %v616 = vrot.slane %v615, 2
      %v617 = vadd.f32 %v615, %v616
      %v618 = vrot.slane %v617, 1
      %v619 = vadd.f32 %v617, %v618
      %v622 = vcombine.low %v613, %v619
      %v624 = vunpack.c.l.s4 1966171168
      %v625 = vunpack.c.0.s8 %v624
      %v626 = vlaneseq
      %v627 = vshrl.u32 %v626, 7
      %v628 = vsub.s32 %v625, %v627
      %v629 = vrot.slane %v622, %v628
      %v631 = vunpack.c.l.s4 1966171168
      %v632 = vunpack.c.0.s8 %v631
      %v633 = vlaneseq
      %v634 = vshrl.u32 %v633, 7
      %v635 = vsub.s32 %v632, %v634
      %v636 = vrot.slane %v629, %v635
      %s638 = scalar_lea.vmem %s330, 3
      %639 = vst.msk [vmem:[%s638] ss:$8 sm:$0x3] %vm387, %v636
      %640 = vst.msk [vmem:[%s638] ss:$8 sm:$0x0] %vm387, %v636
      %v641 = vmul.f32 %v340, %v600
      %v642 = vmul.f32 %v341, %v601
      %v643 = vmul.f32 %v342, %v597
      %v644 = vmul.f32 %v343, %v598
      %v645 = vadd.f32 %v641, %v643
      %v646 = vadd.f32 %v642, %v644
      %v647 = vrot.slane %v645, 4
      %v648 = vadd.f32 %v645, %v647
      %v649 = vrot.slane %v648, 2
      %v650 = vadd.f32 %v648, %v649
      %v651 = vrot.slane %v650, 1
      %v652 = vadd.f32 %v650, %v651
      %v653 = vrot.slane %v646, 4
      %v654 = vadd.f32 %v646, %v653
      %v655 = vrot.slane %v654, 2
      %v656 = vadd.f32 %v654, %v655
      %v657 = vrot.slane %v656, 1
      %v658 = vadd.f32 %v656, %v657
      %v661 = vcombine.low %v652, %v658
      %v663 = vunpack.c.l.s4 1966171168
      %v664 = vunpack.c.0.s8 %v663
      %v665 = vlaneseq
      %v666 = vshrl.u32 %v665, 7
      %v667 = vsub.s32 %v664, %v666
      %v668 = vrot.slane %v661, %v667
      %v670 = vunpack.c.l.s4 1966171168
      %v671 = vunpack.c.0.s8 %v670
      %v672 = vlaneseq
      %v673 = vshrl.u32 %v672, 7
      %v674 = vsub.s32 %v671, %v673
      %v675 = vrot.slane %v668, %v674
      %s677 = scalar_lea.vmem %s339, 3
      %678 = vst.msk [vmem:[%s677] ss:$8 sm:$0x3] %vm387, %v675
      %679 = vst.msk [vmem:[%s677] ss:$8 sm:$0x0] %vm387, %v675
      %s680 = scalar_lea.vmem %s313, 64
      %v681 = vld [vmem:[%s680] sm:$0xff]
      %v682 = vld [vmem:[%s680 + $0x8] sm:$0xff]
      %s683 = scalar_lea.vmem %s320, 64
      %v684 = vld [vmem:[%s683] sm:$0xff]
      %v685 = vld [vmem:[%s683 + $0x8] sm:$0xff]
      %v686 = vmul.f32 %v340, %v681
      %v687 = vmul.f32 %v341, %v682
      %v688 = vmul.f32 %v342, %v684
      %v689 = vmul.f32 %v343, %v685
      %v690 = vsub.f32 %v686, %v688
      %v691 = vsub.f32 %v687, %v689
      %v692 = vrot.slane %v690, 4
      %v693 = vadd.f32 %v690, %v692
      %v694 = vrot.slane %v693, 2
      %v695 = vadd.f32 %v693, %v694
      %v696 = vrot.slane %v695, 1
      %v697 = vadd.f32 %v695, %v696
      %v698 = vrot.slane %v691, 4
      %v699 = vadd.f32 %v691, %v698
      %v700 = vrot.slane %v699, 2
      %v701 = vadd.f32 %v699, %v700
      %v702 = vrot.slane %v701, 1
      %v703 = vadd.f32 %v701, %v702
      %v706 = vcombine.low %v697, %v703
      %v708 = vunpack.c.l.s4 1966171168
      %v709 = vunpack.c.0.s8 %v708
      %v710 = vlaneseq
      %v711 = vshrl.u32 %v710, 7
      %v712 = vsub.s32 %v709, %v711
      %v713 = vrot.slane %v706, %v712
      %v715 = vunpack.c.l.s4 1966171168
      %v716 = vunpack.c.0.s8 %v715
      %v717 = vlaneseq
      %v718 = vshrl.u32 %v717, 7
      %v719 = vsub.s32 %v716, %v718
      %v720 = vrot.slane %v713, %v719
      %s722 = scalar_lea.vmem %s330, 4
      %723 = vst.msk [vmem:[%s722] ss:$8 sm:$0x3] %vm387, %v720
      %724 = vst.msk [vmem:[%s722] ss:$8 sm:$0x0] %vm387, %v720
      %v725 = vmul.f32 %v340, %v684
      %v726 = vmul.f32 %v341, %v685
      %v727 = vmul.f32 %v342, %v681
      %v728 = vmul.f32 %v343, %v682
      %v729 = vadd.f32 %v725, %v727
      %v730 = vadd.f32 %v726, %v728
      %v731 = vrot.slane %v729, 4
      %v732 = vadd.f32 %v729, %v731
      %v733 = vrot.slane %v732, 2
      %v734 = vadd.f32 %v732, %v733
      %v735 = vrot.slane %v734, 1
      %v736 = vadd.f32 %v734, %v735
      %v737 = vrot.slane %v730, 4
      %v738 = vadd.f32 %v730, %v737
      %v739 = vrot.slane %v738, 2
      %v740 = vadd.f32 %v738, %v739
      %v741 = vrot.slane %v740, 1
      %v742 = vadd.f32 %v740, %v741
      %v745 = vcombine.low %v736, %v742
      %v747 = vunpack.c.l.s4 1966171168
      %v748 = vunpack.c.0.s8 %v747
      %v749 = vlaneseq
      %v750 = vshrl.u32 %v749, 7
      %v751 = vsub.s32 %v748, %v750
      %v752 = vrot.slane %v745, %v751
      %v754 = vunpack.c.l.s4 1966171168
      %v755 = vunpack.c.0.s8 %v754
      %v756 = vlaneseq
      %v757 = vshrl.u32 %v756, 7
      %v758 = vsub.s32 %v755, %v757
      %v759 = vrot.slane %v752, %v758
      %s761 = scalar_lea.vmem %s339, 4
      %762 = vst.msk [vmem:[%s761] ss:$8 sm:$0x3] %vm387, %v759
      %763 = vst.msk [vmem:[%s761] ss:$8 sm:$0x0] %vm387, %v759
      %s764 = scalar_lea.vmem %s313, 80
      %v765 = vld [vmem:[%s764] sm:$0xff]
      %v766 = vld [vmem:[%s764 + $0x8] sm:$0xff]
      %s767 = scalar_lea.vmem %s320, 80
      %v768 = vld [vmem:[%s767] sm:$0xff]
      %v769 = vld [vmem:[%s767 + $0x8] sm:$0xff]
      %v770 = vmul.f32 %v340, %v765
      %v771 = vmul.f32 %v341, %v766
      %v772 = vmul.f32 %v342, %v768
      %v773 = vmul.f32 %v343, %v769
      %v774 = vsub.f32 %v770, %v772
      %v775 = vsub.f32 %v771, %v773
      %v776 = vrot.slane %v774, 4
      %v777 = vadd.f32 %v774, %v776
      %v778 = vrot.slane %v777, 2
      %v779 = vadd.f32 %v777, %v778
      %v780 = vrot.slane %v779, 1
      %v781 = vadd.f32 %v779, %v780
      %v782 = vrot.slane %v775, 4
      %v783 = vadd.f32 %v775, %v782
      %v784 = vrot.slane %v783, 2
      %v785 = vadd.f32 %v783, %v784
      %v786 = vrot.slane %v785, 1
      %v787 = vadd.f32 %v785, %v786
      %v790 = vcombine.low %v781, %v787
      %v792 = vunpack.c.l.s4 1966171168
      %v793 = vunpack.c.0.s8 %v792
      %v794 = vlaneseq
      %v795 = vshrl.u32 %v794, 7
      %v796 = vsub.s32 %v793, %v795
      %v797 = vrot.slane %v790, %v796
      %v799 = vunpack.c.l.s4 1966171168
      %v800 = vunpack.c.0.s8 %v799
      %v801 = vlaneseq
      %v802 = vshrl.u32 %v801, 7
      %v803 = vsub.s32 %v800, %v802
      %v804 = vrot.slane %v797, %v803
      %s806 = scalar_lea.vmem %s330, 5
      %807 = vst.msk [vmem:[%s806] ss:$8 sm:$0x3] %vm387, %v804
      %808 = vst.msk [vmem:[%s806] ss:$8 sm:$0x0] %vm387, %v804
      %v809 = vmul.f32 %v340, %v768
      %v810 = vmul.f32 %v341, %v769
      %v811 = vmul.f32 %v342, %v765
      %v812 = vmul.f32 %v343, %v766
      %v813 = vadd.f32 %v809, %v811
      %v814 = vadd.f32 %v810, %v812
      %v815 = vrot.slane %v813, 4
      %v816 = vadd.f32 %v813, %v815
      %v817 = vrot.slane %v816, 2
      %v818 = vadd.f32 %v816, %v817
      %v819 = vrot.slane %v818, 1
      %v820 = vadd.f32 %v818, %v819
      %v821 = vrot.slane %v814, 4
      %v822 = vadd.f32 %v814, %v821
      %v823 = vrot.slane %v822, 2
      %v824 = vadd.f32 %v822, %v823
      %v825 = vrot.slane %v824, 1
      %v826 = vadd.f32 %v824, %v825
      %v829 = vcombine.low %v820, %v826
      %v831 = vunpack.c.l.s4 1966171168
      %v832 = vunpack.c.0.s8 %v831
      %v833 = vlaneseq
      %v834 = vshrl.u32 %v833, 7
      %v835 = vsub.s32 %v832, %v834
      %v836 = vrot.slane %v829, %v835
      %v838 = vunpack.c.l.s4 1966171168
      %v839 = vunpack.c.0.s8 %v838
      %v840 = vlaneseq
      %v841 = vshrl.u32 %v840, 7
      %v842 = vsub.s32 %v839, %v841
      %v843 = vrot.slane %v836, %v842
      %s845 = scalar_lea.vmem %s339, 5
      %846 = vst.msk [vmem:[%s845] ss:$8 sm:$0x3] %vm387, %v843
      %847 = vst.msk [vmem:[%s845] ss:$8 sm:$0x0] %vm387, %v843
      %s848 = scalar_lea.vmem %s313, 96
      %v849 = vld [vmem:[%s848] sm:$0xff]
      %v850 = vld [vmem:[%s848 + $0x8] sm:$0xff]
      %s851 = scalar_lea.vmem %s320, 96
      %v852 = vld [vmem:[%s851] sm:$0xff]
      %v853 = vld [vmem:[%s851 + $0x8] sm:$0xff]
      %v854 = vmul.f32 %v340, %v849
      %v855 = vmul.f32 %v341, %v850
      %v856 = vmul.f32 %v342, %v852
      %v857 = vmul.f32 %v343, %v853
      %v858 = vsub.f32 %v854, %v856
      %v859 = vsub.f32 %v855, %v857
      %v860 = vrot.slane %v858, 4
      %v861 = vadd.f32 %v858, %v860
      %v862 = vrot.slane %v861, 2
      %v863 = vadd.f32 %v861, %v862
      %v864 = vrot.slane %v863, 1
      %v865 = vadd.f32 %v863, %v864
      %v866 = vrot.slane %v859, 4
      %v867 = vadd.f32 %v859, %v866
      %v868 = vrot.slane %v867, 2
      %v869 = vadd.f32 %v867, %v868
      %v870 = vrot.slane %v869, 1
      %v871 = vadd.f32 %v869, %v870
      %v874 = vcombine.low %v865, %v871
      %v876 = vunpack.c.l.s4 1966171168
      %v877 = vunpack.c.0.s8 %v876
      %v878 = vlaneseq
      %v879 = vshrl.u32 %v878, 7
      %v880 = vsub.s32 %v877, %v879
      %v881 = vrot.slane %v874, %v880
      %v883 = vunpack.c.l.s4 1966171168
      %v884 = vunpack.c.0.s8 %v883
      %v885 = vlaneseq
      %v886 = vshrl.u32 %v885, 7
      %v887 = vsub.s32 %v884, %v886
      %v888 = vrot.slane %v881, %v887
      %s890 = scalar_lea.vmem %s330, 6
      %891 = vst.msk [vmem:[%s890] ss:$8 sm:$0x3] %vm387, %v888
      %892 = vst.msk [vmem:[%s890] ss:$8 sm:$0x0] %vm387, %v888
      %v893 = vmul.f32 %v340, %v852
      %v894 = vmul.f32 %v341, %v853
      %v895 = vmul.f32 %v342, %v849
      %v896 = vmul.f32 %v343, %v850
      %v897 = vadd.f32 %v893, %v895
      %v898 = vadd.f32 %v894, %v896
      %v899 = vrot.slane %v897, 4
      %v900 = vadd.f32 %v897, %v899
      %v901 = vrot.slane %v900, 2
      %v902 = vadd.f32 %v900, %v901
      %v903 = vrot.slane %v902, 1
      %v904 = vadd.f32 %v902, %v903
      %v905 = vrot.slane %v898, 4
      %v906 = vadd.f32 %v898, %v905
      %v907 = vrot.slane %v906, 2
      %v908 = vadd.f32 %v906, %v907
      %v909 = vrot.slane %v908, 1
      %v910 = vadd.f32 %v908, %v909
      %v913 = vcombine.low %v904, %v910
      %v915 = vunpack.c.l.s4 1966171168
      %v916 = vunpack.c.0.s8 %v915
      %v917 = vlaneseq
      %v918 = vshrl.u32 %v917, 7
      %v919 = vsub.s32 %v916, %v918
      %v920 = vrot.slane %v913, %v919
      %v922 = vunpack.c.l.s4 1966171168
      %v923 = vunpack.c.0.s8 %v922
      %v924 = vlaneseq
      %v925 = vshrl.u32 %v924, 7
      %v926 = vsub.s32 %v923, %v925
      %v927 = vrot.slane %v920, %v926
      %s929 = scalar_lea.vmem %s339, 6
      %930 = vst.msk [vmem:[%s929] ss:$8 sm:$0x3] %vm387, %v927
      %931 = vst.msk [vmem:[%s929] ss:$8 sm:$0x0] %vm387, %v927
      %s932 = scalar_lea.vmem %s313, 112
      %v933 = vld [vmem:[%s932] sm:$0xff]
      %v934 = vld [vmem:[%s932 + $0x8] sm:$0xff]
      %s935 = scalar_lea.vmem %s320, 112
      %v936 = vld [vmem:[%s935] sm:$0xff]
      %v937 = vld [vmem:[%s935 + $0x8] sm:$0xff]
      %v938 = vmul.f32 %v340, %v933
      %v939 = vmul.f32 %v341, %v934
      %v940 = vmul.f32 %v342, %v936
      %v941 = vmul.f32 %v343, %v937
      %v942 = vsub.f32 %v938, %v940
      %v943 = vsub.f32 %v939, %v941
      %v944 = vrot.slane %v942, 4
      %v945 = vadd.f32 %v942, %v944
      %v946 = vrot.slane %v945, 2
      %v947 = vadd.f32 %v945, %v946
      %v948 = vrot.slane %v947, 1
      %v949 = vadd.f32 %v947, %v948
      %v950 = vrot.slane %v943, 4
      %v951 = vadd.f32 %v943, %v950
      %v952 = vrot.slane %v951, 2
      %v953 = vadd.f32 %v951, %v952
      %v954 = vrot.slane %v953, 1
      %v955 = vadd.f32 %v953, %v954
      %v958 = vcombine.low %v949, %v955
      %v960 = vunpack.c.l.s4 1966171168
      %v961 = vunpack.c.0.s8 %v960
      %v962 = vlaneseq
      %v963 = vshrl.u32 %v962, 7
      %v964 = vsub.s32 %v961, %v963
      %v965 = vrot.slane %v958, %v964
      %v967 = vunpack.c.l.s4 1966171168
      %v968 = vunpack.c.0.s8 %v967
      %v969 = vlaneseq
      %v970 = vshrl.u32 %v969, 7
      %v971 = vsub.s32 %v968, %v970
      %v972 = vrot.slane %v965, %v971
      %s974 = scalar_lea.vmem %s330, 7
      %975 = vst.msk [vmem:[%s974] ss:$8 sm:$0x3] %vm387, %v972
      %976 = vst.msk [vmem:[%s974] ss:$8 sm:$0x0] %vm387, %v972
      %v977 = vmul.f32 %v340, %v936
      %v978 = vmul.f32 %v341, %v937
      %v979 = vmul.f32 %v342, %v933
      %v980 = vmul.f32 %v343, %v934
      %v981 = vadd.f32 %v977, %v979
      %v982 = vadd.f32 %v978, %v980
      %v983 = vrot.slane %v981, 4
      %v984 = vadd.f32 %v981, %v983
      %v985 = vrot.slane %v984, 2
      %v986 = vadd.f32 %v984, %v985
      %v987 = vrot.slane %v986, 1
      %v988 = vadd.f32 %v986, %v987
      %v989 = vrot.slane %v982, 4
      %v990 = vadd.f32 %v982, %v989
      %v991 = vrot.slane %v990, 2
      %v992 = vadd.f32 %v990, %v991
      %v993 = vrot.slane %v992, 1
      %v994 = vadd.f32 %v992, %v993
      %v997 = vcombine.low %v988, %v994
      %v999 = vunpack.c.l.s4 1966171168
      %v1000 = vunpack.c.0.s8 %v999
      %v1001 = vlaneseq
      %v1002 = vshrl.u32 %v1001, 7
      %v1003 = vsub.s32 %v1000, %v1002
      %v1004 = vrot.slane %v997, %v1003
      %v1006 = vunpack.c.l.s4 1966171168
      %v1007 = vunpack.c.0.s8 %v1006
      %v1008 = vlaneseq
      %v1009 = vshrl.u32 %v1008, 7
      %v1010 = vsub.s32 %v1007, %v1009
      %v1011 = vrot.slane %v1004, %v1010
      %s1013 = scalar_lea.vmem %s339, 7
      %1014 = vst.msk [vmem:[%s1013] ss:$8 sm:$0x3] %vm387, %v1011
      %1015 = vst.msk [vmem:[%s1013] ss:$8 sm:$0x0] %vm387, %v1011
      %p1016 = scmp.lt.s32.totalorder %s22, 1
      %s1017 = scalar_select %p1016, %s22, 1
      %p1018 = scmp.lt.s32.totalorder %s21, 0
      %s1019 = scalar_select %p1018, %s21, 0
      %s1020 = smul.addr %s1019, 2
      %s1021 = smul.addr %s1017, 2
      %s1022 = sadd.s32 %s1020, %s1021
      %s1023 = smul.addr %s1022, 8
      %s1024 = scalar_lea.vmem %s4, %s1023
      %p1025 = scmp.lt.s32.totalorder %s22, 1
      %s1026 = scalar_select %p1025, %s22, 1
      %p1027 = scmp.lt.s32.totalorder %s21, 0
      %s1028 = scalar_select %p1027, %s21, 0
      %s1029 = smul.addr %s1028, 2
      %s1030 = smul.addr %s1026, 2
      %s1031 = sadd.s32 %s1029, %s1030
      %s1032 = smul.addr %s1031, 8
      %s1033 = scalar_lea.vmem %s5, %s1032
      // Predicated region
      $region37: #{fno3d_binseg_forward.11} parent=35 // pred_check
        %p1034 = pneg %p153
      $region38: #{fno3d_binseg_forward.11} parent=35 // pred_check_branch
        %1036 = sbr.rel (%p1034) target = $region40
      $region39: #{fno3d_binseg_forward.11} parent=35 // pred_region
        _
      $region40: #{fno3d_binseg_forward.11} parent=35 // pred_fallthru
        _
      // Predicated region
      $region41: #{fno3d_binseg_forward.11} parent=35 // pred_check
        %p1037 = pneg %p181
      $region42: #{fno3d_binseg_forward.11} parent=35 // pred_check_branch
        %1039 = sbr.rel (%p1037) target = $region44
      $region43: #{fno3d_binseg_forward.11} parent=35 // pred_region
        _
      $region44: #{fno3d_binseg_forward.11} parent=35 // pred_fallthru
        _
    $region36: #{fno3d_binseg_forward.11} parent=5 // pred_fallthru
      _
    %p1040 = scmp.le.s32.totalorder 2, %s12
    // Predicated region
    $region45: #{fno3d_binseg_forward.11} parent=5 // pred_check
      %p1041 = pneg %p1040
    $region46: #{fno3d_binseg_forward.11} parent=5 // pred_check_branch
      %1043 = sbr.rel (%p1041) target = $region48
    $region47: #{fno3d_binseg_forward.11} parent=5 // pred_region
      %s1044 = ssub.s32 %s12, 2
      // Predicated region
      $region49: #{fno3d_binseg_forward.11} parent=47 // pred_check
        %p1045 = pneg %p159
      $region50: #{fno3d_binseg_forward.11} parent=47 // pred_check_branch
        %1047 = sbr.rel (%p1045) target = $region52
      $region51: #{fno3d_binseg_forward.11} parent=47 // pred_region
        %p1048 = scmp.lt.s32.totalorder %s24, 1
        %s1049 = scalar_select %p1048, %s24, 1
        %p1050 = scmp.lt.s32.totalorder %s23, 0
        %s1051 = scalar_select %p1050, %s23, 0
        %s1052 = smul.addr %s1051, 2
        %s1053 = smul.addr %s1049, 2
        %s1054 = sadd.s32 %s1052, %s1053
        %s1055 = smul.addr %s1054, 8
        %s1056 = scalar_lea.vmem %s4, %s1055
      $region52: #{fno3d_binseg_forward.11} parent=47 // pred_fallthru
        _
      // Predicated region
      $region53: #{fno3d_binseg_forward.11} parent=47 // pred_check
        %p1057 = pneg %p187
      $region54: #{fno3d_binseg_forward.11} parent=47 // pred_check_branch
        %1059 = sbr.rel (%p1057) target = $region56
      $region55: #{fno3d_binseg_forward.11} parent=47 // pred_region
        %p1060 = scmp.lt.s32.totalorder %s24, 1
        %s1061 = scalar_select %p1060, %s24, 1
        %p1062 = scmp.lt.s32.totalorder %s23, 0
        %s1063 = scalar_select %p1062, %s23, 0
        %s1064 = smul.addr %s1063, 2
        %s1065 = smul.addr %s1061, 2
        %s1066 = sadd.s32 %s1064, %s1065
        %s1067 = smul.addr %s1066, 8
        %s1068 = scalar_lea.vmem %s5, %s1067
      $region56: #{fno3d_binseg_forward.11} parent=47 // pred_fallthru
        _
    $region48: #{fno3d_binseg_forward.11} parent=5 // pred_fallthru
      _
  $region6: #{fno3d_binseg_forward.11} parent=0 // loop_footer
    %s16 = sadd.s32 1, %s12
  $region7: #{fno3d_binseg_forward.11} parent=0 // loop_footer_branch
    %11 = sbr.rel target = $region3
  $region8: #{fno3d_binseg_forward.11} parent=0 // loop_exit
    _

// kernel: reverse.8
$region0: #{reverse.8}
  #allocation0 [shape = 's32[1]{0}', space=sflag, size = 0x4, scoped, tag = 'scoped memory for reverse.8']
  %s0 = inlined_call_operand.vmem [shape: f32[2,8,8,8,6], index: 0, kind: input, shape index: {}]
  %s1 = inlined_call_operand.vmem [shape: f32[2,8,8,8,6], index: 1, kind: output, shape index: {}]
  %s2 = scalar_lea.vmem %s0, 40
  %v3 = vld [vmem:[%s2] sm:$0xff]
  %4 = vst [vmem:[%s1] sm:$0xff] %v3
  %s5 = scalar_lea.vmem %s0, 424
  %v6 = vld [vmem:[%s5] sm:$0xff]
  %s7 = scalar_lea.vmem %s1, 384
  %8 = vst [vmem:[%s7] sm:$0xff] %v6
  %s9 = scalar_lea.vmem %s0, 88
  %v10 = vld [vmem:[%s9] sm:$0xff]
  %s11 = scalar_lea.vmem %s1, 48
  %12 = vst [vmem:[%s11] sm:$0xff] %v10
  %s13 = scalar_lea.vmem %s0, 472
  %v14 = vld [vmem:[%s13] sm:$0xff]
  %s15 = scalar_lea.vmem %s1, 432
  %16 = vst [vmem:[%s15] sm:$0xff] %v14
  %s17 = scalar_lea.vmem %s0, 136
  %v18 = vld [vmem:[%s17] sm:$0xff]
  %s19 = scalar_lea.vmem %s1, 96
  %20 = vst [vmem:[%s19] sm:$0xff] %v18
  %s21 = scalar_lea.vmem %s0, 520
  %v22 = vld [vmem:[%s21] sm:$0xff]
  %s23 = scalar_lea.vmem %s1, 480
  %24 = vst [vmem:[%s23] sm:$0xff] %v22
  %s25 = scalar_lea.vmem %s0, 184
  %v26 = vld [vmem:[%s25] sm:$0xff]
  %s27 = scalar_lea.vmem %s1, 144
  %28 = vst [vmem:[%s27] sm:$0xff] %v26
  %s29 = scalar_lea.vmem %s0, 568
  %v30 = vld [vmem:[%s29] sm:$0xff]
  %s31 = scalar_lea.vmem %s1, 528
  %32 = vst [vmem:[%s31] sm:$0xff] %v30
  %s33 = scalar_lea.vmem %s0, 232
  %v34 = vld [vmem:[%s33] sm:$0xff]
  %s35 = scalar_lea.vmem %s1, 192
  %36 = vst [vmem:[%s35] sm:$0xff] %v34
  %s37 = scalar_lea.vmem %s0, 616
  %v38 = vld [vmem:[%s37] sm:$0xff]
  %s39 = scalar_lea.vmem %s1, 576
  %40 = vst [vmem:[%s39] sm:$0xff] %v38
  %s41 = scalar_lea.vmem %s0, 280
  %v42 = vld [vmem:[%s41] sm:$0xff]
  %s43 = scalar_lea.vmem %s1, 240
  %44 = vst [vmem:[%s43] sm:$0xff] %v42
  %s45 = scalar_lea.vmem %s0, 664
  %v46 = vld [vmem:[%s45] sm:$0xff]
  %s47 = scalar_lea.vmem %s1, 624
  %48 = vst [vmem:[%s47] sm:$0xff] %v46
  %s49 = scalar_lea.vmem %s0, 328
  %v50 = vld [vmem:[%s49] sm:$0xff]
  %s51 = scalar_lea.vmem %s1, 288
  %52 = vst [vmem:[%s51] sm:$0xff] %v50
  %s53 = scalar_lea.vmem %s0, 712
  %v54 = vld [vmem:[%s53] sm:$0xff]
  %s55 = scalar_lea.vmem %s1, 672
  %56 = vst [vmem:[%s55] sm:$0xff] %v54
  %s57 = scalar_lea.vmem %s0, 376
  %v58 = vld [vmem:[%s57] sm:$0xff]
  %s59 = scalar_lea.vmem %s1, 336
  %60 = vst [vmem:[%s59] sm:$0xff] %v58
  %s61 = scalar_lea.vmem %s0, 760
  %v62 = vld [vmem:[%s61] sm:$0xff]
  %s63 = scalar_lea.vmem %s1, 720
  %64 = vst [vmem:[%s63] sm:$0xff] %v62
  %s65 = scalar_lea.vmem %s0, 32
  %v66 = vld [vmem:[%s65] sm:$0xff]
  %s67 = scalar_lea.vmem %s1, 8
  %68 = vst [vmem:[%s67] sm:$0xff] %v66
  %s69 = scalar_lea.vmem %s0, 416
  %v70 = vld [vmem:[%s69] sm:$0xff]
  %s71 = scalar_lea.vmem %s1, 392
  %72 = vst [vmem:[%s71] sm:$0xff] %v70
  %s73 = scalar_lea.vmem %s0, 80
  %v74 = vld [vmem:[%s73] sm:$0xff]
  %s75 = scalar_lea.vmem %s1, 56
  %76 = vst [vmem:[%s75] sm:$0xff] %v74
  %s77 = scalar_lea.vmem %s0, 464
  %v78 = vld [vmem:[%s77] sm:$0xff]
  %s79 = scalar_lea.vmem %s1, 440
  %80 = vst [vmem:[%s79] sm:$0xff] %v78
  %s81 = scalar_lea.vmem %s0, 128
  %v82 = vld [vmem:[%s81] sm:$0xff]
  %s83 = scalar_lea.vmem %s1, 104
  %84 = vst [vmem:[%s83] sm:$0xff] %v82
  %s85 = scalar_lea.vmem %s0, 512
  %v86 = vld [vmem:[%s85] sm:$0xff]
  %s87 = scalar_lea.vmem %s1, 488
  %88 = vst [vmem:[%s87] sm:$0xff] %v86
  %s89 = scalar_lea.vmem %s0, 176
  %v90 = vld [vmem:[%s89] sm:$0xff]
  %s91 = scalar_lea.vmem %s1, 152
  %92 = vst [vmem:[%s91] sm:$0xff] %v90
  %s93 = scalar_lea.vmem %s0, 560
  %v94 = vld [vmem:[%s93] sm:$0xff]
  %s95 = scalar_lea.vmem %s1, 536
  %96 = vst [vmem:[%s95] sm:$0xff] %v94
  %s97 = scalar_lea.vmem %s0, 224
  %v98 = vld [vmem:[%s97] sm:$0xff]
  %s99 = scalar_lea.vmem %s1, 200
  %100 = vst [vmem:[%s99] sm:$0xff] %v98
  %s101 = scalar_lea.vmem %s0, 608
  %v102 = vld [vmem:[%s101] sm:$0xff]
  %s103 = scalar_lea.vmem %s1, 584
  %104 = vst [vmem:[%s103] sm:$0xff] %v102
  %s105 = scalar_lea.vmem %s0, 272
  %v106 = vld [vmem:[%s105] sm:$0xff]
  %s107 = scalar_lea.vmem %s1, 248
  %108 = vst [vmem:[%s107] sm:$0xff] %v106
  %s109 = scalar_lea.vmem %s0, 656
  %v110 = vld [vmem:[%s109] sm:$0xff]
  %s111 = scalar_lea.vmem %s1, 632
  %112 = vst [vmem:[%s111] sm:$0xff] %v110
  %s113 = scalar_lea.vmem %s0, 320
  %v114 = vld [vmem:[%s113] sm:$0xff]
  %s115 = scalar_lea.vmem %s1, 296
  %116 = vst [vmem:[%s115] sm:$0xff] %v114
  %s117 = scalar_lea.vmem %s0, 704
  %v118 = vld [vmem:[%s117] sm:$0xff]
  %s119 = scalar_lea.vmem %s1, 680
  %120 = vst [vmem:[%s119] sm:$0xff] %v118
  %s121 = scalar_lea.vmem %s0, 368
  %v122 = vld [vmem:[%s121] sm:$0xff]
  %s123 = scalar_lea.vmem %s1, 344
  %124 = vst [vmem:[%s123] sm:$0xff] %v122
  %s125 = scalar_lea.vmem %s0, 752
  %v126 = vld [vmem:[%s125] sm:$0xff]
  %s127 = scalar_lea.vmem %s1, 728
  %128 = vst [vmem:[%s127] sm:$0xff] %v126
  %s129 = scalar_lea.vmem %s0, 24
  %v130 = vld [vmem:[%s129] sm:$0xff]
  %s131 = scalar_lea.vmem %s1, 16
  %132 = vst [vmem:[%s131] sm:$0xff] %v130
  %s133 = scalar_lea.vmem %s0, 408
  %v134 = vld [vmem:[%s133] sm:$0xff]
  %s135 = scalar_lea.vmem %s1, 400
  %136 = vst [vmem:[%s135] sm:$0xff] %v134
  %s137 = scalar_lea.vmem %s0, 72
  %v138 = vld [vmem:[%s137] sm:$0xff]
  %s139 = scalar_lea.vmem %s1, 64
  %140 = vst [vmem:[%s139] sm:$0xff] %v138
  %s141 = scalar_lea.vmem %s0, 456
  %v142 = vld [vmem:[%s141] sm:$0xff]
  %s143 = scalar_lea.vmem %s1, 448
  %144 = vst [vmem:[%s143] sm:$0xff] %v142
  %s145 = scalar_lea.vmem %s0, 120
  %v146 = vld [vmem:[%s145] sm:$0xff]
  %s147 = scalar_lea.vmem %s1, 112
  %148 = vst [vmem:[%s147] sm:$0xff] %v146
  %s149 = scalar_lea.vmem %s0, 504
  %v150 = vld [vmem:[%s149] sm:$0xff]
  %s151 = scalar_lea.vmem %s1, 496
  %152 = vst [vmem:[%s151] sm:$0xff] %v150
  %s153 = scalar_lea.vmem %s0, 168
  %v154 = vld [vmem:[%s153] sm:$0xff]
  %s155 = scalar_lea.vmem %s1, 160
  %156 = vst [vmem:[%s155] sm:$0xff] %v154
  %s157 = scalar_lea.vmem %s0, 552
  %v158 = vld [vmem:[%s157] sm:$0xff]
  %s159 = scalar_lea.vmem %s1, 544
  %160 = vst [vmem:[%s159] sm:$0xff] %v158
  %s161 = scalar_lea.vmem %s0, 216
  %v162 = vld [vmem:[%s161] sm:$0xff]
  %s163 = scalar_lea.vmem %s1, 208
  %164 = vst [vmem:[%s163] sm:$0xff] %v162
  %s165 = scalar_lea.vmem %s0, 600
  %v166 = vld [vmem:[%s165] sm:$0xff]
  %s167 = scalar_lea.vmem %s1, 592
  %168 = vst [vmem:[%s167] sm:$0xff] %v166
  %s169 = scalar_lea.vmem %s0, 264
  %v170 = vld [vmem:[%s169] sm:$0xff]
  %s171 = scalar_lea.vmem %s1, 256
  %172 = vst [vmem:[%s171] sm:$0xff] %v170
  %s173 = scalar_lea.vmem %s0, 648
  %v174 = vld [vmem:[%s173] sm:$0xff]
  %s175 = scalar_lea.vmem %s1, 640
  %176 = vst [vmem:[%s175] sm:$0xff] %v174
  %s177 = scalar_lea.vmem %s0, 312
  %v178 = vld [vmem:[%s177] sm:$0xff]
  %s179 = scalar_lea.vmem %s1, 304
  %180 = vst [vmem:[%s179] sm:$0xff] %v178
  %s181 = scalar_lea.vmem %s0, 696
  %v182 = vld [vmem:[%s181] sm:$0xff]
  %s183 = scalar_lea.vmem %s1, 688
  %184 = vst [vmem:[%s183] sm:$0xff] %v182
  %s185 = scalar_lea.vmem %s0, 360
  %v186 = vld [vmem:[%s185] sm:$0xff]
  %s187 = scalar_lea.vmem %s1, 352
  %188 = vst [vmem:[%s187] sm:$0xff] %v186
  %s189 = scalar_lea.vmem %s0, 744
  %v190 = vld [vmem:[%s189] sm:$0xff]
  %s191 = scalar_lea.vmem %s1, 736
  %192 = vst [vmem:[%s191] sm:$0xff] %v190
  %s193 = scalar_lea.vmem %s0, 16
  %v194 = vld [vmem:[%s193] sm:$0xff]
  %s195 = scalar_lea.vmem %s1, 24
  %196 = vst [vmem:[%s195] sm:$0xff] %v194
  %s197 = scalar_lea.vmem %s0, 400
  %v198 = vld [vmem:[%s197] sm:$0xff]
  %s199 = scalar_lea.vmem %s1, 408
  %200 = vst [vmem:[%s199] sm:$0xff] %v198
  %s201 = scalar_lea.vmem %s0, 64
  %v202 = vld [vmem:[%s201] sm:$0xff]
  %s203 = scalar_lea.vmem %s1, 72
  %204 = vst [vmem:[%s203] sm:$0xff] %v202
  %s205 = scalar_lea.vmem %s0, 448
  %v206 = vld [vmem:[%s205] sm:$0xff]
  %s207 = scalar_lea.vmem %s1, 456
  %208 = vst [vmem:[%s207] sm:$0xff] %v206
  %s209 = scalar_lea.vmem %s0, 112
  %v210 = vld [vmem:[%s209] sm:$0xff]
  %s211 = scalar_lea.vmem %s1, 120
  %212 = vst [vmem:[%s211] sm:$0xff] %v210
  %s213 = scalar_lea.vmem %s0, 496
  %v214 = vld [vmem:[%s213] sm:$0xff]
  %s215 = scalar_lea.vmem %s1, 504
  %216 = vst [vmem:[%s215] sm:$0xff] %v214
  %s217 = scalar_lea.vmem %s0, 160
  %v218 = vld [vmem:[%s217] sm:$0xff]
  %s219 = scalar_lea.vmem %s1, 168
  %220 = vst [vmem:[%s219] sm:$0xff] %v218
  %s221 = scalar_lea.vmem %s0, 544
  %v222 = vld [vmem:[%s221] sm:$0xff]
  %s223 = scalar_lea.vmem %s1, 552
  %224 = vst [vmem:[%s223] sm:$0xff] %v222
  %s225 = scalar_lea.vmem %s0, 208
  %v226 = vld [vmem:[%s225] sm:$0xff]
  %s227 = scalar_lea.vmem %s1, 216
  %228 = vst [vmem:[%s227] sm:$0xff] %v226
  %s229 = scalar_lea.vmem %s0, 592
  %v230 = vld [vmem:[%s229] sm:$0xff]
  %s231 = scalar_lea.vmem %s1, 600
  %232 = vst [vmem:[%s231] sm:$0xff] %v230
  %s233 = scalar_lea.vmem %s0, 256
  %v234 = vld [vmem:[%s233] sm:$0xff]
  %s235 = scalar_lea.vmem %s1, 264
  %236 = vst [vmem:[%s235] sm:$0xff] %v234
  %s237 = scalar_lea.vmem %s0, 640
  %v238 = vld [vmem:[%s237] sm:$0xff]
  %s239 = scalar_lea.vmem %s1, 648
  %240 = vst [vmem:[%s239] sm:$0xff] %v238
  %s241 = scalar_lea.vmem %s0, 304
  %v242 = vld [vmem:[%s241] sm:$0xff]
  %s243 = scalar_lea.vmem %s1, 312
  %244 = vst [vmem:[%s243] sm:$0xff] %v242
  %s245 = scalar_lea.vmem %s0, 688
  %v246 = vld [vmem:[%s245] sm:$0xff]
  %s247 = scalar_lea.vmem %s1, 696
  %248 = vst [vmem:[%s247] sm:$0xff] %v246
  %s249 = scalar_lea.vmem %s0, 352
  %v250 = vld [vmem:[%s249] sm:$0xff]
  %s251 = scalar_lea.vmem %s1, 360
  %252 = vst [vmem:[%s251] sm:$0xff] %v250
  %s253 = scalar_lea.vmem %s0, 736
  %v254 = vld [vmem:[%s253] sm:$0xff]
  %s255 = scalar_lea.vmem %s1, 744
  %256 = vst [vmem:[%s255] sm:$0xff] %v254
  %s257 = scalar_lea.vmem %s0, 8
  %v258 = vld [vmem:[%s257] sm:$0xff]
  %s259 = scalar_lea.vmem %s1, 32
  %260 = vst [vmem:[%s259] sm:$0xff] %v258
  %s261 = scalar_lea.vmem %s0, 392
  %v262 = vld [vmem:[%s261] sm:$0xff]
  %s263 = scalar_lea.vmem %s1, 416
  %264 = vst [vmem:[%s263] sm:$0xff] %v262
  %s265 = scalar_lea.vmem %s0, 56
  %v266 = vld [vmem:[%s265] sm:$0xff]
  %s267 = scalar_lea.vmem %s1, 80
  %268 = vst [vmem:[%s267] sm:$0xff] %v266
  %s269 = scalar_lea.vmem %s0, 440
  %v270 = vld [vmem:[%s269] sm:$0xff]
  %s271 = scalar_lea.vmem %s1, 464
  %272 = vst [vmem:[%s271] sm:$0xff] %v270
  %s273 = scalar_lea.vmem %s0, 104
  %v274 = vld [vmem:[%s273] sm:$0xff]
  %s275 = scalar_lea.vmem %s1, 128
  %276 = vst [vmem:[%s275] sm:$0xff] %v274
  %s277 = scalar_lea.vmem %s0, 488
  %v278 = vld [vmem:[%s277] sm:$0xff]
  %s279 = scalar_lea.vmem %s1, 512
  %280 = vst [vmem:[%s279] sm:$0xff] %v278
  %s281 = scalar_lea.vmem %s0, 152
  %v282 = vld [vmem:[%s281] sm:$0xff]
  %s283 = scalar_lea.vmem %s1, 176
  %284 = vst [vmem:[%s283] sm:$0xff] %v282
  %s285 = scalar_lea.vmem %s0, 536
  %v286 = vld [vmem:[%s285] sm:$0xff]
  %s287 = scalar_lea.vmem %s1, 560
  %288 = vst [vmem:[%s287] sm:$0xff] %v286
  %s289 = scalar_lea.vmem %s0, 200
  %v290 = vld [vmem:[%s289] sm:$0xff]
  %s291 = scalar_lea.vmem %s1, 224
  %292 = vst [vmem:[%s291] sm:$0xff] %v290
  %s293 = scalar_lea.vmem %s0, 584
  %v294 = vld [vmem:[%s293] sm:$0xff]
  %s295 = scalar_lea.vmem %s1, 608
  %296 = vst [vmem:[%s295] sm:$0xff] %v294
  %s297 = scalar_lea.vmem %s0, 248
  %v298 = vld [vmem:[%s297] sm:$0xff]
  %s299 = scalar_lea.vmem %s1, 272
  %300 = vst [vmem:[%s299] sm:$0xff] %v298
  %s301 = scalar_lea.vmem %s0, 632
  %v302 = vld [vmem:[%s301] sm:$0xff]
  %s303 = scalar_lea.vmem %s1, 656
  %304 = vst [vmem:[%s303] sm:$0xff] %v302
  %s305 = scalar_lea.vmem %s0, 296
  %v306 = vld [vmem:[%s305] sm:$0xff]
  %s307 = scalar_lea.vmem %s1, 320
  %308 = vst [vmem:[%s307] sm:$0xff] %v306
  %s309 = scalar_lea.vmem %s0, 680
  %v310 = vld [vmem:[%s309] sm:$0xff]
  %s311 = scalar_lea.vmem %s1, 704
  %312 = vst [vmem:[%s311] sm:$0xff] %v310
  %s313 = scalar_lea.vmem %s0, 344
  %v314 = vld [vmem:[%s313] sm:$0xff]
  %s315 = scalar_lea.vmem %s1, 368
  %316 = vst [vmem:[%s315] sm:$0xff] %v314
  %s317 = scalar_lea.vmem %s0, 728
  %v318 = vld [vmem:[%s317] sm:$0xff]
  %s319 = scalar_lea.vmem %s1, 752
  %320 = vst [vmem:[%s319] sm:$0xff] %v318
  %v321 = vld [vmem:[%s0] sm:$0xff]
  %s322 = scalar_lea.vmem %s1, 40
  %323 = vst [vmem:[%s322] sm:$0xff] %v321
  %s324 = scalar_lea.vmem %s0, 384
  %v325 = vld [vmem:[%s324] sm:$0xff]
  %s326 = scalar_lea.vmem %s1, 424
  %327 = vst [vmem:[%s326] sm:$0xff] %v325
  %s328 = scalar_lea.vmem %s0, 48
  %v329 = vld [vmem:[%s328] sm:$0xff]
  %s330 = scalar_lea.vmem %s1, 88
  %331 = vst [vmem:[%s330] sm:$0xff] %v329
  %s332 = scalar_lea.vmem %s0, 432
  %v333 = vld [vmem:[%s332] sm:$0xff]
  %s334 = scalar_lea.vmem %s1, 472
  %335 = vst [vmem:[%s334] sm:$0xff] %v333
  %s336 = scalar_lea.vmem %s0, 96
  %v337 = vld [vmem:[%s336] sm:$0xff]
  %s338 = scalar_lea.vmem %s1, 136
  %339 = vst [vmem:[%s338] sm:$0xff] %v337
  %s340 = scalar_lea.vmem %s0, 480
  %v341 = vld [vmem:[%s340] sm:$0xff]
  %s342 = scalar_lea.vmem %s1, 520
  %343 = vst [vmem:[%s342] sm:$0xff] %v341
  %s344 = scalar_lea.vmem %s0, 144
  %v345 = vld [vmem:[%s344] sm:$0xff]
  %s346 = scalar_lea.vmem %s1, 184
  %347 = vst [vmem:[%s346] sm:$0xff] %v345
  %s348 = scalar_lea.vmem %s0, 528
  %v349 = vld [vmem:[%s348] sm:$0xff]
  %s350 = scalar_lea.vmem %s1, 568
  %351 = vst [vmem:[%s350] sm:$0xff] %v349
  %s352 = scalar_lea.vmem %s0, 192
  %v353 = vld [vmem:[%s352] sm:$0xff]
  %s354 = scalar_lea.vmem %s1, 232
  %355 = vst [vmem:[%s354] sm:$0xff] %v353
  %s356 = scalar_lea.vmem %s0, 576
  %v357 = vld [vmem:[%s356] sm:$0xff]
  %s358 = scalar_lea.vmem %s1, 616
  %359 = vst [vmem:[%s358] sm:$0xff] %v357
  %s360 = scalar_lea.vmem %s0, 240
  %v361 = vld [vmem:[%s360] sm:$0xff]
  %s362 = scalar_lea.vmem %s1, 280
  %363 = vst [vmem:[%s362] sm:$0xff] %v361
  %s364 = scalar_lea.vmem %s0, 624
  %v365 = vld [vmem:[%s364] sm:$0xff]
  %s366 = scalar_lea.vmem %s1, 664
  %367 = vst [vmem:[%s366] sm:$0xff] %v365
  %s368 = scalar_lea.vmem %s0, 288
  %v369 = vld [vmem:[%s368] sm:$0xff]
  %s370 = scalar_lea.vmem %s1, 328
  %371 = vst [vmem:[%s370] sm:$0xff] %v369
  %s372 = scalar_lea.vmem %s0, 672
  %v373 = vld [vmem:[%s372] sm:$0xff]
  %s374 = scalar_lea.vmem %s1, 712
  %375 = vst [vmem:[%s374] sm:$0xff] %v373
  %s376 = scalar_lea.vmem %s0, 336
  %v377 = vld [vmem:[%s376] sm:$0xff]
  %s378 = scalar_lea.vmem %s1, 376
  %379 = vst [vmem:[%s378] sm:$0xff] %v377
  %s380 = scalar_lea.vmem %s0, 720
  %v381 = vld [vmem:[%s380] sm:$0xff]
  %s382 = scalar_lea.vmem %s1, 760
  %383 = vst [vmem:[%s382] sm:$0xff] %v381

// kernel: fno3d_binseg_forward.12
$region0: #{fno3d_binseg_forward.12}
  #allocation0 [shape = 'u32[]', space=smem, size = 0x4, offset = 0x4, fixed_abs, tag = 'smem constant byte address 0x4 - core index']
  #allocation1 [shape = 'u32[144,128]{1,0:T(1,128)}', space=vmem, size = 0x12000, scoped, tag = 'internal scratch']
  %s0 = inlined_call_operand.vmem [shape: f32[2,8,896], index: 0, kind: input, shape index: {}]
  %s1 = inlined_call_operand.vmem [shape: f32[2,8,896], index: 1, kind: input, shape index: {}]
  %s2 = inlined_call_operand.vmem [shape: f32[8,8], index: 2, kind: input, shape index: {}]
  %s3 = inlined_call_operand.vmem [shape: f32[8,1], index: 3, kind: input, shape index: {}]
  %s4 = inlined_call_operand.vmem [shape: f32[2,8,896], index: 4, kind: output, shape index: {}]
  %s5 = sld [smem:[#allocation0]]
  $region49: #{fno3d_binseg_forward.12} parent=0
    _
  %s7 = ssub.s32 1, %s5
  %s8 = scalar_select 0, %s7, %s5
  loop: start=0, step=1, limit=4
  $region2: #{fno3d_binseg_forward.12} parent=0 // loop_pre_header
    _
  $region3: #{fno3d_binseg_forward.12} parent=0 // loop_header
    %s10 = sphi 0, %s14
    %p11 = scmp.ge.s32.totalorder %s10, 4
    %s17 = sphi 0, %s29
    %s18 = sphi 0, %s25
    %s19 = sphi 0, %s17
    %s20 = sphi 0, %s18
    %s21 = sphi 0, %s19
    %s22 = sphi 0, %s20
    %s34 = sphi 0, %s36
    %s37 = sphi 0, %s34
    %s38 = sphi 0, %s37
    %s54 = sphi 0, %s38
    %s62 = sphi 0, %s64
    %s65 = sphi 0, %s62
    %s66 = sphi 0, %s65
    %s82 = sphi 0, %s66
    %s86 = sphi 0, %s86
    %s88 = sphi 0, %s86
    %s89 = sphi 0, %s88
    %s103 = sphi 0, %s89
    %s107 = sphi 0, %s107
    %s109 = sphi 0, %s107
    %s110 = sphi 0, %s109
    %s124 = sphi 0, %s110
    %s132 = sphi 0, %s134
    %s135 = sphi 0, %s132
    %s136 = sphi 0, %s135
    %s152 = sphi 0, %s136
  $region4: #{fno3d_binseg_forward.12} parent=0 // loop_header_branch
    %13 = sbr.rel (%p11) target = $region8
  $region5: #{fno3d_binseg_forward.12} parent=0 // loop_body
    %s15 = ssub.s32 %s10, 1
    %s16 = ssub.s32 %s10, 2
    %s23 = sadd.s32 1, %s18
    %p24 = scmp.ge.s32.totalorder %s23, 1
    %s25 = scalar_select %p24, 0, %s23
    %s26 = sadd.s32 1, %s17
    %s27 = scalar_select %p24, %s26, %s17
    %p28 = scmp.ge.s32.totalorder %s27, 2
    %s29 = scalar_select %p28, 0, %s27
    %s30 = ssub.s32 %s17, %s29
    %s31 = ssub.s32 %s18, %s25
    %s32 = sor.u32 %s30, %s31
    %p33 = scmp.eq.s32.totalorder %s32, 0
    %s35 = sadd.s32 %s34, 1
    %s36 = scalar_select %p33, %s34, %s35
    %p39 = pneg %p33
    %p40 = scmp.eq.s32.totalorder %s10, 1
    %p41 = por %p39, %p40
    %p42 = scmp.ne.s32.totalorder %s34, %s37
    %p43 = scmp.eq.s32.totalorder %s10, 0
    %p44 = por %p42, %p43
    %p45 = scmp.ne.s32.totalorder %s34, %s37
    %p46 = scmp.eq.s32.totalorder %s15, 1
    %p47 = por %p45, %p46
    %p48 = scmp.ne.s32.totalorder %s37, %s38
    %p49 = scmp.eq.s32.totalorder %s15, 0
    %p50 = por %p48, %p49
    %p51 = scmp.ne.s32.totalorder %s37, %s38
    %p52 = scmp.eq.s32.totalorder %s16, 1
    %p53 = por %p51, %p52
    %p55 = scmp.ne.s32.totalorder %s38, %s54
    %p56 = scmp.eq.s32.totalorder %s16, 0
    %p57 = por %p55, %p56
    %s58 = ssub.s32 %s17, %s29
    %s59 = ssub.s32 %s18, %s25
    %s60 = sor.u32 %s58, %s59
    %p61 = scmp.eq.s32.totalorder %s60, 0
    %s63 = sadd.s32 %s62, 1
    %s64 = scalar_select %p61, %s62, %s63
    %p67 = pneg %p61
    %p68 = scmp.eq.s32.totalorder %s10, 1
    %p69 = por %p67, %p68
    %p70 = scmp.ne.s32.totalorder %s62, %s65
    %p71 = scmp.eq.s32.totalorder %s10, 0
    %p72 = por %p70, %p71
    %p73 = scmp.ne.s32.totalorder %s62, %s65
    %p74 = scmp.eq.s32.totalorder %s15, 1
    %p75 = por %p73, %p74
    %p76 = scmp.ne.s32.totalorder %s65, %s66
    %p77 = scmp.eq.s32.totalorder %s15, 0
    %p78 = por %p76, %p77
    %p79 = scmp.ne.s32.totalorder %s65, %s66
    %p80 = scmp.eq.s32.totalorder %s16, 1
    %p81 = por %p79, %p80
    %p83 = scmp.ne.s32.totalorder %s66, %s82
    %p84 = scmp.eq.s32.totalorder %s16, 0
    %p85 = por %p83, %p84
    %s87 = sadd.s32 %s86, 1
    %p90 = scmp.eq.s32.totalorder %s10, 1
    %p91 = scmp.ne.s32.totalorder %s86, %s88
    %p92 = scmp.eq.s32.totalorder %s10, 0
    %p93 = por %p91, %p92
    %p94 = scmp.ne.s32.totalorder %s86, %s88
    %p95 = scmp.eq.s32.totalorder %s15, 1
    %p96 = por %p94, %p95
    %p97 = scmp.ne.s32.totalorder %s88, %s89
    %p98 = scmp.eq.s32.totalorder %s15, 0
    %p99 = por %p97, %p98
    %p100 = scmp.ne.s32.totalorder %s88, %s89
    %p101 = scmp.eq.s32.totalorder %s16, 1
    %p102 = por %p100, %p101
    %p104 = scmp.ne.s32.totalorder %s89, %s103
    %p105 = scmp.eq.s32.totalorder %s16, 0
    %p106 = por %p104, %p105
    %s108 = sadd.s32 %s107, 1
    %p111 = scmp.eq.s32.totalorder %s10, 1
    %p112 = scmp.ne.s32.totalorder %s107, %s109
    %p113 = scmp.eq.s32.totalorder %s10, 0
    %p114 = por %p112, %p113
    %p115 = scmp.ne.s32.totalorder %s107, %s109
    %p116 = scmp.eq.s32.totalorder %s15, 1
    %p117 = por %p115, %p116
    %p118 = scmp.ne.s32.totalorder %s109, %s110
    %p119 = scmp.eq.s32.totalorder %s15, 0
    %p120 = por %p118, %p119
    %p121 = scmp.ne.s32.totalorder %s109, %s110
    %p122 = scmp.eq.s32.totalorder %s16, 1
    %p123 = por %p121, %p122
    %p125 = scmp.ne.s32.totalorder %s110, %s124
    %p126 = scmp.eq.s32.totalorder %s16, 0
    %p127 = por %p125, %p126
    %s128 = ssub.s32 %s17, %s29
    %s129 = ssub.s32 %s18, %s25
    %s130 = sor.u32 %s128, %s129
    %p131 = scmp.eq.s32.totalorder %s130, 0
    %s133 = sadd.s32 %s132, 1
    %s134 = scalar_select %p131, %s132, %s133
    %p137 = pneg %p131
    %p138 = scmp.eq.s32.totalorder %s10, 1
    %p139 = por %p137, %p138
    %p140 = scmp.ne.s32.totalorder %s132, %s135
    %p141 = scmp.eq.s32.totalorder %s10, 0
    %p142 = por %p140, %p141
    %p143 = scmp.ne.s32.totalorder %s132, %s135
    %p144 = scmp.eq.s32.totalorder %s15, 1
    %p145 = por %p143, %p144
    %p146 = scmp.ne.s32.totalorder %s135, %s136
    %p147 = scmp.eq.s32.totalorder %s15, 0
    %p148 = por %p146, %p147
    %p149 = scmp.ne.s32.totalorder %s135, %s136
    %p150 = scmp.eq.s32.totalorder %s16, 1
    %p151 = por %p149, %p150
    %p153 = scmp.ne.s32.totalorder %s136, %s152
    %p154 = scmp.eq.s32.totalorder %s16, 0
    %p155 = por %p153, %p154
    %p156 = scmp.le.s32.totalorder 1, %s10
    %p157 = scmp.lt.s32.totalorder %s10, 3
    %p158 = pnand %p156, %p157
    %p159 = pneg %p158
    // Predicated region
    $region9: #{fno3d_binseg_forward.12} parent=5 // pred_check
      _
    $region10: #{fno3d_binseg_forward.12} parent=5 // pred_check_branch
      %161 = sbr.rel (%p158) target = $region12
    $region11: #{fno3d_binseg_forward.12} parent=5 // pred_region
      %s162 = ssub.s32 %s10, 1
      // Predicated region
      $region13: #{fno3d_binseg_forward.12} parent=11 // pred_check
        %p163 = pneg %p99
      $region14: #{fno3d_binseg_forward.12} parent=11 // pred_check_branch
        %165 = sbr.rel (%p163) target = $region16
      $region15: #{fno3d_binseg_forward.12} parent=11 // pred_region
        _
      $region16: #{fno3d_binseg_forward.12} parent=11 // pred_fallthru
        _
      // Predicated region
      $region17: #{fno3d_binseg_forward.12} parent=11 // pred_check
        %p166 = pneg %p120
      $region18: #{fno3d_binseg_forward.12} parent=11 // pred_check_branch
        %168 = sbr.rel (%p166) target = $region20
      $region19: #{fno3d_binseg_forward.12} parent=11 // pred_region
        _
      $region20: #{fno3d_binseg_forward.12} parent=11 // pred_fallthru
        _
    $region12: #{fno3d_binseg_forward.12} parent=5 // pred_fallthru
      _
    %p169 = scmp.lt.s32.totalorder %s10, 2
    // Predicated region
    $region21: #{fno3d_binseg_forward.12} parent=5 // pred_check
      %p170 = pneg %p169
    $region22: #{fno3d_binseg_forward.12} parent=5 // pred_check_branch
      %172 = sbr.rel (%p170) target = $region24
    $region23: #{fno3d_binseg_forward.12} parent=5 // pred_region
      // Predicated region
      $region25: #{fno3d_binseg_forward.12} parent=23 // pred_check
        %p173 = pneg %p44
      $region26: #{fno3d_binseg_forward.12} parent=23 // pred_check_branch
        %175 = sbr.rel (%p173) target = $region28
      $region27: #{fno3d_binseg_forward.12} parent=23 // pred_region
        %s176 = smul.u32 7, %s18
        %p177 = scmp.lt.s32.totalorder %s17, 1
        %s178 = scalar_select %p177, %s17, 1
        %p179 = scmp.lt.s32.totalorder %s176, 6
        %s180 = scalar_select %p179, %s176, 6
        %s181 = smul.addr %s178, 7
        %s182 = sadd.s32 %s180, %s181
        %s183 = smul.addr %s182, 8
        %s184 = scalar_lea.vmem %s0, %s183
        %s185 = smul.u32 7, %s18
      $region28: #{fno3d_binseg_forward.12} parent=23 // pred_fallthru
        _
      // Predicated region
      $region29: #{fno3d_binseg_forward.12} parent=23 // pred_check
        %p186 = pneg %p72
      $region30: #{fno3d_binseg_forward.12} parent=23 // pred_check_branch
        %188 = sbr.rel (%p186) target = $region32
      $region31: #{fno3d_binseg_forward.12} parent=23 // pred_region
        %s189 = smul.u32 7, %s18
        %p190 = scmp.lt.s32.totalorder %s17, 1
        %s191 = scalar_select %p190, %s17, 1
        %p192 = scmp.lt.s32.totalorder %s189, 6
        %s193 = scalar_select %p192, %s189, 6
        %s194 = smul.addr %s191, 7
        %s195 = sadd.s32 %s193, %s194
        %s196 = smul.addr %s195, 8
        %s197 = scalar_lea.vmem %s1, %s196
        %s198 = smul.u32 7, %s18
      $region32: #{fno3d_binseg_forward.12} parent=23 // pred_fallthru
        _
    $region24: #{fno3d_binseg_forward.12} parent=5 // pred_fallthru
      _
    %p199 = scmp.le.s32.totalorder 1, %s10
    %p200 = scmp.lt.s32.totalorder %s10, 3
    %p201 = pnand %p199, %p200
    %p202 = pneg %p201
    // Predicated region
    $region33: #{fno3d_binseg_forward.12} parent=5 // pred_check
      _
    $region34: #{fno3d_binseg_forward.12} parent=5 // pred_check_branch
      %204 = sbr.rel (%p201) target = $region36
    $region35: #{fno3d_binseg_forward.12} parent=5 // pred_region
      %s205 = ssub.s32 %s10, 1
      %s206 = smul.u32 7, %s20
      %p207 = scmp.lt.s32.totalorder %s19, 1
      %s208 = scalar_select %p207, %s19, 1
      %p209 = scmp.lt.s32.totalorder %s206, 6
      %s210 = scalar_select %p209, %s206, 6
      %s211 = smul.addr %s208, 7
      %s212 = sadd.s32 %s210, %s211
      %s213 = smul.addr %s212, 8
      %s214 = scalar_lea.vmem %s0, %s213
      %p215 = pneg %p50
      %p216 = pneg %p47
      %s217 = smul.u32 7, %s20
      %p218 = scmp.lt.s32.totalorder %s19, 1
      %s219 = scalar_select %p218, %s19, 1
      %p220 = scmp.lt.s32.totalorder %s217, 6
      %s221 = scalar_select %p220, %s217, 6
      %s222 = smul.addr %s219, 7
      %s223 = sadd.s32 %s221, %s222
      %s224 = smul.addr %s223, 8
      %s225 = scalar_lea.vmem %s1, %s224
      %p226 = pneg %p78
      %p227 = pneg %p75
      %p228 = pneg %p99
      %p229 = pneg %p96
      %p230 = pneg %p120
      %p231 = pneg %p117
      %p232 = pneg %p148
      %p233 = pneg %p145
      %s234 = smul.u32 7, %s20
      %p235 = scmp.lt.s32.totalorder %s19, 1
      %s236 = scalar_select %p235, %s19, 1
      %p237 = scmp.lt.s32.totalorder %s234, 6
      %s238 = scalar_select %p237, %s234, 6
      %s239 = smul.addr %s236, 7
      %s240 = sadd.s32 %s238, %s239
      %s241 = smul.addr %s240, 8
      %s242 = scalar_lea.vmem %s4, %s241
      %s243 = smul.u32 7, %s20
      %p244 = scmp.lt.s32.totalorder %s19, 1
      %s245 = scalar_select %p244, %s19, 1
      %p246 = scmp.lt.s32.totalorder %s243, 6
      %s247 = scalar_select %p246, %s243, 6
      %s248 = smul.addr %s245, 7
      %s249 = sadd.s32 %s247, %s248
      %s250 = smul.addr %s249, 8
      %s251 = scalar_lea.vmem %s0, %s250
      %s252 = smul.u32 7, %s20
      %s253 = smul.u32 7, %s20
      %p254 = scmp.lt.s32.totalorder %s19, 1
      %s255 = scalar_select %p254, %s19, 1
      %p256 = scmp.lt.s32.totalorder %s253, 6
      %s257 = scalar_select %p256, %s253, 6
      %s258 = smul.addr %s255, 7
      %s259 = sadd.s32 %s257, %s258
      %s260 = smul.addr %s259, 8
      %s261 = scalar_lea.vmem %s1, %s260
      %s262 = smul.u32 7, %s20
      %s263 = smul.u32 7, %s20
      %p264 = scmp.lt.s32.totalorder %s19, 1
      %s265 = scalar_select %p264, %s19, 1
      %p266 = scmp.lt.s32.totalorder %s263, 6
      %s267 = scalar_select %p266, %s263, 6
      %s268 = smul.addr %s265, 7
      %s269 = sadd.s32 %s267, %s268
      %s270 = smul.addr %s269, 8
      %s271 = scalar_lea.vmem %s4, %s270
      %s272 = smul.u32 7, %s20
      %v273 = vld [vmem:[%s2] sm:$0xff]
      %v274 = vld [vmem:[%s251] sm:$0xff]
      %v275 = vld [vmem:[%s251 + $0x8] sm:$0xff]
      %v276 = vld [vmem:[%s251 + $0x10] sm:$0xff]
      %v277 = vld [vmem:[%s251 + $0x18] sm:$0xff]
      %v278 = vld [vmem:[%s251 + $0x20] sm:$0xff]
      %v279 = vld [vmem:[%s251 + $0x28] sm:$0xff]
      %v280 = vld [vmem:[%s251 + $0x30] sm:$0xff]
      %v281 = vld [vmem:[%s3] sm:$0xff]
      %283 = vset.pattern.permute.xlu0 0
      %284 = vperm.xlu0 %283, %v281
      %v285 = vpop.permute.xlu0 %284
      %vm287 = vcmask 64512
      %v289 = vsel %vm287, %v273, 0
      %291 = vmatprep.subr.mxu0 %v275
      %292 = vmatpush1.msra.mxu0 %v274
      %293 = vmatprep.subr.mxu0 0.0
      %294 = vmatpush1.msra.mxu0 0.0
      %295 = vmatprep.subr.mxu0 0.0
      %296 = vmatpush1.msra.mxu0 0.0
      %297 = vmatprep.subr.mxu0 0.0
      %298 = vmatpush1.msra.mxu0 0.0
      %299 = vmatprep.subr.mxu0 0.0
      %300 = vmatpush1.msra.mxu0 0.0
      %301 = vmatprep.subr.mxu0 0.0
      %302 = vmatpush1.msra.mxu0 0.0
      %303 = vmatprep.subr.mxu0 0.0
      %304 = vmatpush1.msra.mxu0 0.0
      %305 = vmatprep.subr.mxu0 0.0
      %306 = vmatpush1.msra.mxu0 0.0
      %307 = vmatprep.subr.mxu0 0.0
      %308 = vmatpush1.msra.mxu0 0.0
      %309 = vmatprep.subr.mxu0 0.0
      %310 = vmatpush1.msra.mxu0 0.0
      %311 = vmatprep.subr.mxu0 0.0
      %312 = vmatpush1.msra.mxu0 0.0
      %313 = vmatprep.subr.mxu0 0.0
      %314 = vmatpush1.msra.mxu0 0.0
      %315 = vmatprep.subr.mxu0 0.0
      %316 = vmatpush1.msra.mxu0 0.0
      %317 = vmatprep.subr.mxu0 0.0
      %318 = vmatpush1.msra.mxu0 0.0
      %319 = vmatprep.subr.mxu0 0.0
      %320 = vmatpush1.msra.mxu0 0.0
      %321 = vmatprep.subr.mxu0 0.0
      %322 = vmatpush1.msra.mxu0 0.0
      %323 = vmatprep.subr.mxu0 0.0
      %324 = vmatpush1.msra.mxu0 0.0
      %325 = vmatprep.subr.mxu0 0.0
      %326 = vmatpush1.msra.mxu0 0.0
      %327 = vmatprep.subr.mxu0 0.0
      %328 = vmatpush1.msra.mxu0 0.0
      %329 = vmatprep.subr.mxu0 0.0
      %330 = vmatpush1.msra.mxu0 0.0
      %331 = vmatprep.subr.mxu0 0.0
      %332 = vmatpush1.msra.mxu0 0.0
      %333 = vmatprep.subr.mxu0 0.0
      %334 = vmatpush1.msra.mxu0 0.0
      %335 = vmatprep.subr.mxu0 0.0
      %336 = vmatpush1.msra.mxu0 0.0
      %337 = vmatprep.subr.mxu0 0.0
      %338 = vmatpush1.msra.mxu0 0.0
      %339 = vmatprep.subr.mxu0 0.0
      %340 = vmatpush1.msra.mxu0 0.0
      %341 = vmatprep.subr.mxu0 0.0
      %342 = vmatpush1.msra.mxu0 0.0
      %343 = vmatprep.subr.mxu0 0.0
      %344 = vmatpush1.msra.mxu0 0.0
      %345 = vmatprep.subr.mxu0 0.0
      %346 = vmatpush1.msra.mxu0 0.0
      %347 = vmatprep.subr.mxu0 0.0
      %348 = vmatpush1.msra.mxu0 0.0
      %349 = vmatprep.subr.mxu0 0.0
      %350 = vmatpush1.msra.mxu0 0.0
      %351 = vmatprep.subr.mxu0 0.0
      %352 = vmatpush1.msra.mxu0 0.0
      %353 = vmatprep.subr.mxu0 0.0
      %354 = vmatpush1.msra.mxu0 0.0
      %355 = vmatprep.mubr.f32.mxu0 0.0
      %356 = vmatmul.mubr.f32.gmra.mrb[0].mxu0 %v289
      %v357 = vpop.f32.mrb[0].mxu0
      %v358 = vadd.f32 %v285, %v357
      %v359 = vpop.f32.mrb[0].mxu0
      %v360 = vadd.f32 %v285, %v359
      %361 = vdwg.mxu0
      %362 = vmatprep.subr.mxu0 %v277
      %363 = vmatpush1.msra.mxu0 %v276
      %364 = vmatprep.subr.mxu0 0.0
      %365 = vmatpush1.msra.mxu0 0.0
      %366 = vmatprep.subr.mxu0 0.0
      %367 = vmatpush1.msra.mxu0 0.0
      %368 = vmatprep.subr.mxu0 0.0
      %369 = vmatpush1.msra.mxu0 0.0
      %370 = vmatprep.subr.mxu0 0.0
      %371 = vmatpush1.msra.mxu0 0.0
      %372 = vmatprep.subr.mxu0 0.0
      %373 = vmatpush1.msra.mxu0 0.0
      %374 = vmatprep.subr.mxu0 0.0
      %375 = vmatpush1.msra.mxu0 0.0
      %376 = vmatprep.subr.mxu0 0.0
      %377 = vmatpush1.msra.mxu0 0.0
      %378 = vmatprep.subr.mxu0 0.0
      %379 = vmatpush1.msra.mxu0 0.0
      %380 = vmatprep.subr.mxu0 0.0
      %381 = vmatpush1.msra.mxu0 0.0
      %382 = vmatprep.subr.mxu0 0.0
      %383 = vmatpush1.msra.mxu0 0.0
      %384 = vmatprep.subr.mxu0 0.0
      %385 = vmatpush1.msra.mxu0 0.0
      %386 = vmatprep.subr.mxu0 0.0
      %387 = vmatpush1.msra.mxu0 0.0
      %388 = vmatprep.subr.mxu0 0.0
      %389 = vmatpush1.msra.mxu0 0.0
      %390 = vmatprep.subr.mxu0 0.0
      %391 = vmatpush1.msra.mxu0 0.0
      %392 = vmatprep.subr.mxu0 0.0
      %393 = vmatpush1.msra.mxu0 0.0
      %394 = vmatprep.subr.mxu0 0.0
      %395 = vmatpush1.msra.mxu0 0.0
      %396 = vmatprep.subr.mxu0 0.0
      %397 = vmatpush1.msra.mxu0 0.0
      %398 = vmatprep.subr.mxu0 0.0
      %399 = vmatpush1.msra.mxu0 0.0
      %400 = vmatprep.subr.mxu0 0.0
      %401 = vmatpush1.msra.mxu0 0.0
      %402 = vmatprep.subr.mxu0 0.0
      %403 = vmatpush1.msra.mxu0 0.0
      %404 = vmatprep.subr.mxu0 0.0
      %405 = vmatpush1.msra.mxu0 0.0
      %406 = vmatprep.subr.mxu0 0.0
      %407 = vmatpush1.msra.mxu0 0.0
      %408 = vmatprep.subr.mxu0 0.0
      %409 = vmatpush1.msra.mxu0 0.0
      %410 = vmatprep.subr.mxu0 0.0
      %411 = vmatpush1.msra.mxu0 0.0
      %412 = vmatprep.subr.mxu0 0.0
      %413 = vmatpush1.msra.mxu0 0.0
      %414 = vmatprep.subr.mxu0 0.0
      %415 = vmatpush1.msra.mxu0 0.0
      %416 = vmatprep.subr.mxu0 0.0
      %417 = vmatpush1.msra.mxu0 0.0
      %418 = vmatprep.subr.mxu0 0.0
      %419 = vmatpush1.msra.mxu0 0.0
      %420 = vmatprep.subr.mxu0 0.0
      %421 = vmatpush1.msra.mxu0 0.0
      %422 = vmatprep.subr.mxu0 0.0
      %423 = vmatpush1.msra.mxu0 0.0
      %424 = vmatprep.subr.mxu0 0.0
      %425 = vmatpush1.msra.mxu0 0.0
      %426 = vmatprep.mubr.f32.mxu0 0.0
      %427 = vmatmul.mubr.f32.gmra.mrb[0].mxu0 %v289
      %v428 = vpop.f32.mrb[0].mxu0
      %v429 = vadd.f32 %v285, %v428
      %v430 = vpop.f32.mrb[0].mxu0
      %v431 = vadd.f32 %v285, %v430
      %432 = vdwg.mxu0
      %433 = vmatprep.subr.mxu0 %v279
      %434 = vmatpush1.msra.mxu0 %v278
      %435 = vmatprep.subr.mxu0 0.0
      %436 = vmatpush1.msra.mxu0 0.0
      %437 = vmatprep.subr.mxu0 0.0
      %438 = vmatpush1.msra.mxu0 0.0
      %439 = vmatprep.subr.mxu0 0.0
      %440 = vmatpush1.msra.mxu0 0.0
      %441 = vmatprep.subr.mxu0 0.0
      %442 = vmatpush1.msra.mxu0 0.0
      %443 = vmatprep.subr.mxu0 0.0
      %444 = vmatpush1.msra.mxu0 0.0
      %445 = vmatprep.subr.mxu0 0.0
      %446 = vmatpush1.msra.mxu0 0.0
      %447 = vmatprep.subr.mxu0 0.0
      %448 = vmatpush1.msra.mxu0 0.0
      %449 = vmatprep.subr.mxu0 0.0
      %450 = vmatpush1.msra.mxu0 0.0
      %451 = vmatprep.subr.mxu0 0.0
      %452 = vmatpush1.msra.mxu0 0.0
      %453 = vmatprep.subr.mxu0 0.0
      %454 = vmatpush1.msra.mxu0 0.0
      %455 = vmatprep.subr.mxu0 0.0
      %456 = vmatpush1.msra.mxu0 0.0
      %457 = vmatprep.subr.mxu0 0.0
      %458 = vmatpush1.msra.mxu0 0.0
      %459 = vmatprep.subr.mxu0 0.0
      %460 = vmatpush1.msra.mxu0 0.0
      %461 = vmatprep.subr.mxu0 0.0
      %462 = vmatpush1.msra.mxu0 0.0
      %463 = vmatprep.subr.mxu0 0.0
      %464 = vmatpush1.msra.mxu0 0.0
      %465 = vmatprep.subr.mxu0 0.0
      %466 = vmatpush1.msra.mxu0 0.0
      %467 = vmatprep.subr.mxu0 0.0
      %468 = vmatpush1.msra.mxu0 0.0
      %469 = vmatprep.subr.mxu0 0.0
      %470 = vmatpush1.msra.mxu0 0.0
      %471 = vmatprep.subr.mxu0 0.0
      %472 = vmatpush1.msra.mxu0 0.0
      %473 = vmatprep.subr.mxu0 0.0
      %474 = vmatpush1.msra.mxu0 0.0
      %475 = vmatprep.subr.mxu0 0.0
      %476 = vmatpush1.msra.mxu0 0.0
      %477 = vmatprep.subr.mxu0 0.0
      %478 = vmatpush1.msra.mxu0 0.0
      %479 = vmatprep.subr.mxu0 0.0
      %480 = vmatpush1.msra.mxu0 0.0
      %481 = vmatprep.subr.mxu0 0.0
      %482 = vmatpush1.msra.mxu0 0.0
      %483 = vmatprep.subr.mxu0 0.0
      %484 = vmatpush1.msra.mxu0 0.0
      %485 = vmatprep.subr.mxu0 0.0
      %486 = vmatpush1.msra.mxu0 0.0
      %487 = vmatprep.subr.mxu0 0.0
      %488 = vmatpush1.msra.mxu0 0.0
      %489 = vmatprep.subr.mxu0 0.0
      %490 = vmatpush1.msra.mxu0 0.0
      %491 = vmatprep.subr.mxu0 0.0
      %492 = vmatpush1.msra.mxu0 0.0
      %493 = vmatprep.subr.mxu0 0.0
      %494 = vmatpush1.msra.mxu0 0.0
      %495 = vmatprep.subr.mxu0 0.0
      %496 = vmatpush1.msra.mxu0 0.0
      %497 = vmatprep.mubr.f32.mxu0 0.0
      %498 = vmatmul.mubr.f32.gmra.mrb[0].mxu0 %v289
      %v499 = vpop.f32.mrb[0].mxu0
      %v500 = vadd.f32 %v285, %v499
      %v501 = vpop.f32.mrb[0].mxu0
      %v502 = vadd.f32 %v285, %v501
      %503 = vdwg.mxu0
      %504 = vmatprep.subr.mxu0 0.0
      %505 = vmatpush1.msra.mxu0 %v280
      %506 = vmatprep.subr.mxu0 0.0
      %507 = vmatpush1.msra.mxu0 0.0
      %508 = vmatprep.subr.mxu0 0.0
      %509 = vmatpush1.msra.mxu0 0.0
      %510 = vmatprep.subr.mxu0 0.0
      %511 = vmatpush1.msra.mxu0 0.0
      %512 = vmatprep.subr.mxu0 0.0
      %513 = vmatpush1.msra.mxu0 0.0
      %514 = vmatprep.subr.mxu0 0.0
      %515 = vmatpush1.msra.mxu0 0.0
      %516 = vmatprep.subr.mxu0 0.0
      %517 = vmatpush1.msra.mxu0 0.0
      %518 = vmatprep.subr.mxu0 0.0
      %519 = vmatpush1.msra.mxu0 0.0
      %520 = vmatprep.subr.mxu0 0.0
      %521 = vmatpush1.msra.mxu0 0.0
      %522 = vmatprep.subr.mxu0 0.0
      %523 = vmatpush1.msra.mxu0 0.0
      %524 = vmatprep.subr.mxu0 0.0
      %525 = vmatpush1.msra.mxu0 0.0
      %526 = vmatprep.subr.mxu0 0.0
      %527 = vmatpush1.msra.mxu0 0.0
      %528 = vmatprep.subr.mxu0 0.0
      %529 = vmatpush1.msra.mxu0 0.0
      %530 = vmatprep.subr.mxu0 0.0
      %531 = vmatpush1.msra.mxu0 0.0
      %532 = vmatprep.subr.mxu0 0.0
      %533 = vmatpush1.msra.mxu0 0.0
      %534 = vmatprep.subr.mxu0 0.0
      %535 = vmatpush1.msra.mxu0 0.0
      %536 = vmatprep.subr.mxu0 0.0
      %537 = vmatpush1.msra.mxu0 0.0
      %538 = vmatprep.subr.mxu0 0.0
      %539 = vmatpush1.msra.mxu0 0.0
      %540 = vmatprep.subr.mxu0 0.0
      %541 = vmatpush1.msra.mxu0 0.0
      %542 = vmatprep.subr.mxu0 0.0
      %543 = vmatpush1.msra.mxu0 0.0
      %544 = vmatprep.subr.mxu0 0.0
      %545 = vmatpush1.msra.mxu0 0.0
      %546 = vmatprep.subr.mxu0 0.0
      %547 = vmatpush1.msra.mxu0 0.0
      %548 = vmatprep.subr.mxu0 0.0
      %549 = vmatpush1.msra.mxu0 0.0
      %550 = vmatprep.subr.mxu0 0.0
      %551 = vmatpush1.msra.mxu0 0.0
      %552 = vmatprep.subr.mxu0 0.0
      %553 = vmatpush1.msra.mxu0 0.0
      %554 = vmatprep.subr.mxu0 0.0
      %555 = vmatpush1.msra.mxu0 0.0
      %556 = vmatprep.subr.mxu0 0.0
      %557 = vmatpush1.msra.mxu0 0.0
      %558 = vmatprep.subr.mxu0 0.0
      %559 = vmatpush1.msra.mxu0 0.0
      %560 = vmatprep.subr.mxu0 0.0
      %561 = vmatpush1.msra.mxu0 0.0
      %562 = vmatprep.subr.mxu0 0.0
      %563 = vmatpush1.msra.mxu0 0.0
      %564 = vmatprep.subr.mxu0 0.0
      %565 = vmatpush1.msra.mxu0 0.0
      %566 = vmatprep.subr.mxu0 0.0
      %567 = vmatpush1.msra.mxu0 0.0
      %568 = vmatprep.mubr.f32.mxu0 0.0
      %569 = vmatmul.mubr.f32.gmra.mrb[0].mxu0 %v289
      %v570 = vpop.f32.mrb[0].mxu0
      %v571 = vadd.f32 %v285, %v570
      %v572 = vpop.f32.mrb[0].mxu0
      %573 = vdwg.mxu0
      %v574 = vld [vmem:[%s261] sm:$0xff]
      %v575 = vld [vmem:[%s261 + $0x8] sm:$0xff]
      %v576 = vld [vmem:[%s261 + $0x10] sm:$0xff]
      %v577 = vld [vmem:[%s261 + $0x18] sm:$0xff]
      %v578 = vld [vmem:[%s261 + $0x20] sm:$0xff]
      %v579 = vld [vmem:[%s261 + $0x28] sm:$0xff]
      %v580 = vld [vmem:[%s261 + $0x30] sm:$0xff]
      %v581 = vadd.f32 %v358, %v574
      %v582 = vadd.f32 %v360, %v575
      %v583 = vadd.f32 %v429, %v576
      %v584 = vadd.f32 %v431, %v577
      %v585 = vadd.f32 %v500, %v578
      %v586 = vadd.f32 %v502, %v579
      %v587 = vadd.f32 %v571, %v580
      %v588 = vmul.f32 %v581, 0.5
      %v589 = vmul.f32 %v582, 0.5
      %v590 = vmul.f32 %v583, 0.5
      %v591 = vmul.f32 %v584, 0.5
      %v592 = vmul.f32 %v585, 0.5
      %v593 = vmul.f32 %v586, 0.5
      %v594 = vmul.f32 %v587, 0.5
      %v595 = vmul.f32 %v581, 0.70710677
      %v596 = vmul.f32 %v582, 0.70710677
      %v597 = vmul.f32 %v583, 0.70710677
      %v598 = vmul.f32 %v584, 0.70710677
      %v599 = vmul.f32 %v585, 0.70710677
      %v600 = vmul.f32 %v586, 0.70710677
      %v601 = vmul.f32 %v587, 0.70710677
      %v602 = verf.f32.pop %v595
      %v603 = verf.f32.pop %v596
      %v604 = verf.f32.pop %v597
      %v605 = verf.f32.pop %v598
      %v606 = verf.f32.pop %v599
      %v607 = verf.f32.pop %v600
      %v608 = verf.f32.pop %v601
      %v609 = vadd.f32 %v602, 1.0
      %v610 = vadd.f32 %v603, 1.0
      %v611 = vadd.f32 %v604, 1.0
      %v612 = vadd.f32 %v605, 1.0
      %v613 = vadd.f32 %v606, 1.0
      %v614 = vadd.f32 %v607, 1.0
      %v615 = vadd.f32 %v608, 1.0
      %v616 = vmul.f32 %v588, %v609
      %v617 = vmul.f32 %v589, %v610
      %v618 = vmul.f32 %v590, %v611
      %v619 = vmul.f32 %v591, %v612
      %v620 = vmul.f32 %v592, %v613
      %v621 = vmul.f32 %v593, %v614
      %v622 = vmul.f32 %v594, %v615
      %623 = vst [vmem:[%s271] sm:$0xff] %v616
      %624 = vst [vmem:[%s271 + $0x8] sm:$0xff] %v617
      %625 = vst [vmem:[%s271 + $0x10] sm:$0xff] %v618
      %626 = vst [vmem:[%s271 + $0x18] sm:$0xff] %v619
      %627 = vst [vmem:[%s271 + $0x20] sm:$0xff] %v620
      %628 = vst [vmem:[%s271 + $0x28] sm:$0xff] %v621
      %629 = vst [vmem:[%s271 + $0x30] sm:$0xff] %v622
      %s630 = smul.u32 7, %s20
      %p631 = scmp.lt.s32.totalorder %s19, 1
      %s632 = scalar_select %p631, %s19, 1
      %p633 = scmp.lt.s32.totalorder %s630, 6
      %s634 = scalar_select %p633, %s630, 6
      %s635 = smul.addr %s632, 7
      %s636 = sadd.s32 %s634, %s635
      %s637 = smul.addr %s636, 8
      %s638 = scalar_lea.vmem %s4, %s637
      // Predicated region
      $region37: #{fno3d_binseg_forward.12} parent=35 // pred_check
        %p639 = pneg %p145
      $region38: #{fno3d_binseg_forward.12} parent=35 // pred_check_branch
        %641 = sbr.rel (%p639) target = $region40
      $region39: #{fno3d_binseg_forward.12} parent=35 // pred_region
        %s642 = smul.u32 7, %s20
      $region40: #{fno3d_binseg_forward.12} parent=35 // pred_fallthru
        _
    $region36: #{fno3d_binseg_forward.12} parent=5 // pred_fallthru
      _
    %p643 = scmp.le.s32.totalorder 2, %s10
    // Predicated region
    $region41: #{fno3d_binseg_forward.12} parent=5 // pred_check
      %p644 = pneg %p643
    $region42: #{fno3d_binseg_forward.12} parent=5 // pred_check_branch
      %646 = sbr.rel (%p644) target = $region44
    $region43: #{fno3d_binseg_forward.12} parent=5 // pred_region
      %s647 = ssub.s32 %s10, 2
      // Predicated region
      $region45: #{fno3d_binseg_forward.12} parent=43 // pred_check
        %p648 = pneg %p151
      $region46: #{fno3d_binseg_forward.12} parent=43 // pred_check_branch
        %650 = sbr.rel (%p648) target = $region48
      $region47: #{fno3d_binseg_forward.12} parent=43 // pred_region
        %s651 = smul.u32 7, %s22
        %p652 = scmp.lt.s32.totalorder %s21, 1
        %s653 = scalar_select %p652, %s21, 1
        %p654 = scmp.lt.s32.totalorder %s651, 6
        %s655 = scalar_select %p654, %s651, 6
        %s656 = smul.addr %s653, 7
        %s657 = sadd.s32 %s655, %s656
        %s658 = smul.addr %s657, 8
        %s659 = scalar_lea.vmem %s4, %s658
      $region48: #{fno3d_binseg_forward.12} parent=43 // pred_fallthru
        _
    $region44: #{fno3d_binseg_forward.12} parent=5 // pred_fallthru
      _
  $region6: #{fno3d_binseg_forward.12} parent=0 // loop_footer
    %s14 = sadd.s32 1, %s10
  $region7: #{fno3d_binseg_forward.12} parent=0 // loop_footer_branch
    %9 = sbr.rel target = $region3
  $region8: #{fno3d_binseg_forward.12} parent=0 // loop_exit
    _

// kernel: fno3d_binseg_forward.18
$region0: #{fno3d_binseg_forward.18}
  #allocation0 [shape = 'u32[]', space=smem, size = 0x4, offset = 0x4, fixed_abs, tag = 'smem constant byte address 0x4 - core index']
  #allocation1 [shape = 'u32[144,128]{1,0:T(1,128)}', space=vmem, size = 0x12000, scoped, tag = 'internal scratch']
  %s0 = inlined_call_operand.vmem [shape: f32[2,8,896], index: 0, kind: input, shape index: {}]
  %s1 = inlined_call_operand.vmem [shape: f32[2,8,896], index: 1, kind: input, shape index: {}]
  %s2 = inlined_call_operand.vmem [shape: f32[8,8], index: 2, kind: input, shape index: {}]
  %s3 = inlined_call_operand.vmem [shape: f32[8,1], index: 3, kind: input, shape index: {}]
  %s4 = inlined_call_operand.vmem [shape: f32[2,8,896], index: 4, kind: output, shape index: {}]
  %s5 = sld [smem:[#allocation0]]
  $region49: #{fno3d_binseg_forward.18} parent=0
    _
  %s7 = ssub.s32 1, %s5
  %s8 = scalar_select 0, %s7, %s5
  loop: start=0, step=1, limit=4
  $region2: #{fno3d_binseg_forward.18} parent=0 // loop_pre_header
    _
  $region3: #{fno3d_binseg_forward.18} parent=0 // loop_header
    %s10 = sphi 0, %s14
    %p11 = scmp.ge.s32.totalorder %s10, 4
    %s17 = sphi 0, %s29
    %s18 = sphi 0, %s25
    %s19 = sphi 0, %s17
    %s20 = sphi 0, %s18
    %s21 = sphi 0, %s19
    %s22 = sphi 0, %s20
    %s34 = sphi 0, %s36
    %s37 = sphi 0, %s34
    %s38 = sphi 0, %s37
    %s54 = sphi 0, %s38
    %s62 = sphi 0, %s64
    %s65 = sphi 0, %s62
    %s66 = sphi 0, %s65
    %s82 = sphi 0, %s66
    %s86 = sphi 0, %s86
    %s88 = sphi 0, %s86
    %s89 = sphi 0, %s88
    %s103 = sphi 0, %s89
    %s107 = sphi 0, %s107
    %s109 = sphi 0, %s107
    %s110 = sphi 0, %s109
    %s124 = sphi 0, %s110
    %s132 = sphi 0, %s134
    %s135 = sphi 0, %s132
    %s136 = sphi 0, %s135
    %s152 = sphi 0, %s136
  $region4: #{fno3d_binseg_forward.18} parent=0 // loop_header_branch
    %13 = sbr.rel (%p11) target = $region8
  $region5: #{fno3d_binseg_forward.18} parent=0 // loop_body
    %s15 = ssub.s32 %s10, 1
    %s16 = ssub.s32 %s10, 2
    %s23 = sadd.s32 1, %s18
    %p24 = scmp.ge.s32.totalorder %s23, 1
    %s25 = scalar_select %p24, 0, %s23
    %s26 = sadd.s32 1, %s17
    %s27 = scalar_select %p24, %s26, %s17
    %p28 = scmp.ge.s32.totalorder %s27, 2
    %s29 = scalar_select %p28, 0, %s27
    %s30 = ssub.s32 %s17, %s29
    %s31 = ssub.s32 %s18, %s25
    %s32 = sor.u32 %s30, %s31
    %p33 = scmp.eq.s32.totalorder %s32, 0
    %s35 = sadd.s32 %s34, 1
    %s36 = scalar_select %p33, %s34, %s35
    %p39 = pneg %p33
    %p40 = scmp.eq.s32.totalorder %s10, 1
    %p41 = por %p39, %p40
    %p42 = scmp.ne.s32.totalorder %s34, %s37
    %p43 = scmp.eq.s32.totalorder %s10, 0
    %p44 = por %p42, %p43
    %p45 = scmp.ne.s32.totalorder %s34, %s37
    %p46 = scmp.eq.s32.totalorder %s15, 1
    %p47 = por %p45, %p46
    %p48 = scmp.ne.s32.totalorder %s37, %s38
    %p49 = scmp.eq.s32.totalorder %s15, 0
    %p50 = por %p48, %p49
    %p51 = scmp.ne.s32.totalorder %s37, %s38
    %p52 = scmp.eq.s32.totalorder %s16, 1
    %p53 = por %p51, %p52
    %p55 = scmp.ne.s32.totalorder %s38, %s54
    %p56 = scmp.eq.s32.totalorder %s16, 0
    %p57 = por %p55, %p56
    %s58 = ssub.s32 %s17, %s29
    %s59 = ssub.s32 %s18, %s25
    %s60 = sor.u32 %s58, %s59
    %p61 = scmp.eq.s32.totalorder %s60, 0
    %s63 = sadd.s32 %s62, 1
    %s64 = scalar_select %p61, %s62, %s63
    %p67 = pneg %p61
    %p68 = scmp.eq.s32.totalorder %s10, 1
    %p69 = por %p67, %p68
    %p70 = scmp.ne.s32.totalorder %s62, %s65
    %p71 = scmp.eq.s32.totalorder %s10, 0
    %p72 = por %p70, %p71
    %p73 = scmp.ne.s32.totalorder %s62, %s65
    %p74 = scmp.eq.s32.totalorder %s15, 1
    %p75 = por %p73, %p74
    %p76 = scmp.ne.s32.totalorder %s65, %s66
    %p77 = scmp.eq.s32.totalorder %s15, 0
    %p78 = por %p76, %p77
    %p79 = scmp.ne.s32.totalorder %s65, %s66
    %p80 = scmp.eq.s32.totalorder %s16, 1
    %p81 = por %p79, %p80
    %p83 = scmp.ne.s32.totalorder %s66, %s82
    %p84 = scmp.eq.s32.totalorder %s16, 0
    %p85 = por %p83, %p84
    %s87 = sadd.s32 %s86, 1
    %p90 = scmp.eq.s32.totalorder %s10, 1
    %p91 = scmp.ne.s32.totalorder %s86, %s88
    %p92 = scmp.eq.s32.totalorder %s10, 0
    %p93 = por %p91, %p92
    %p94 = scmp.ne.s32.totalorder %s86, %s88
    %p95 = scmp.eq.s32.totalorder %s15, 1
    %p96 = por %p94, %p95
    %p97 = scmp.ne.s32.totalorder %s88, %s89
    %p98 = scmp.eq.s32.totalorder %s15, 0
    %p99 = por %p97, %p98
    %p100 = scmp.ne.s32.totalorder %s88, %s89
    %p101 = scmp.eq.s32.totalorder %s16, 1
    %p102 = por %p100, %p101
    %p104 = scmp.ne.s32.totalorder %s89, %s103
    %p105 = scmp.eq.s32.totalorder %s16, 0
    %p106 = por %p104, %p105
    %s108 = sadd.s32 %s107, 1
    %p111 = scmp.eq.s32.totalorder %s10, 1
    %p112 = scmp.ne.s32.totalorder %s107, %s109
    %p113 = scmp.eq.s32.totalorder %s10, 0
    %p114 = por %p112, %p113
    %p115 = scmp.ne.s32.totalorder %s107, %s109
    %p116 = scmp.eq.s32.totalorder %s15, 1
    %p117 = por %p115, %p116
    %p118 = scmp.ne.s32.totalorder %s109, %s110
    %p119 = scmp.eq.s32.totalorder %s15, 0
    %p120 = por %p118, %p119
    %p121 = scmp.ne.s32.totalorder %s109, %s110
    %p122 = scmp.eq.s32.totalorder %s16, 1
    %p123 = por %p121, %p122
    %p125 = scmp.ne.s32.totalorder %s110, %s124
    %p126 = scmp.eq.s32.totalorder %s16, 0
    %p127 = por %p125, %p126
    %s128 = ssub.s32 %s17, %s29
    %s129 = ssub.s32 %s18, %s25
    %s130 = sor.u32 %s128, %s129
    %p131 = scmp.eq.s32.totalorder %s130, 0
    %s133 = sadd.s32 %s132, 1
    %s134 = scalar_select %p131, %s132, %s133
    %p137 = pneg %p131
    %p138 = scmp.eq.s32.totalorder %s10, 1
    %p139 = por %p137, %p138
    %p140 = scmp.ne.s32.totalorder %s132, %s135
    %p141 = scmp.eq.s32.totalorder %s10, 0
    %p142 = por %p140, %p141
    %p143 = scmp.ne.s32.totalorder %s132, %s135
    %p144 = scmp.eq.s32.totalorder %s15, 1
    %p145 = por %p143, %p144
    %p146 = scmp.ne.s32.totalorder %s135, %s136
    %p147 = scmp.eq.s32.totalorder %s15, 0
    %p148 = por %p146, %p147
    %p149 = scmp.ne.s32.totalorder %s135, %s136
    %p150 = scmp.eq.s32.totalorder %s16, 1
    %p151 = por %p149, %p150
    %p153 = scmp.ne.s32.totalorder %s136, %s152
    %p154 = scmp.eq.s32.totalorder %s16, 0
    %p155 = por %p153, %p154
    %p156 = scmp.le.s32.totalorder 1, %s10
    %p157 = scmp.lt.s32.totalorder %s10, 3
    %p158 = pnand %p156, %p157
    %p159 = pneg %p158
    // Predicated region
    $region9: #{fno3d_binseg_forward.18} parent=5 // pred_check
      _
    $region10: #{fno3d_binseg_forward.18} parent=5 // pred_check_branch
      %161 = sbr.rel (%p158) target = $region12
    $region11: #{fno3d_binseg_forward.18} parent=5 // pred_region
      %s162 = ssub.s32 %s10, 1
      // Predicated region
      $region13: #{fno3d_binseg_forward.18} parent=11 // pred_check
        %p163 = pneg %p99
      $region14: #{fno3d_binseg_forward.18} parent=11 // pred_check_branch
        %165 = sbr.rel (%p163) target = $region16
      $region15: #{fno3d_binseg_forward.18} parent=11 // pred_region
        _
      $region16: #{fno3d_binseg_forward.18} parent=11 // pred_fallthru
        _
      // Predicated region
      $region17: #{fno3d_binseg_forward.18} parent=11 // pred_check
        %p166 = pneg %p120
      $region18: #{fno3d_binseg_forward.18} parent=11 // pred_check_branch
        %168 = sbr.rel (%p166) target = $region20
      $region19: #{fno3d_binseg_forward.18} parent=11 // pred_region
        _
      $region20: #{fno3d_binseg_forward.18} parent=11 // pred_fallthru
        _
    $region12: #{fno3d_binseg_forward.18} parent=5 // pred_fallthru
      _
    %p169 = scmp.lt.s32.totalorder %s10, 2
    // Predicated region
    $region21: #{fno3d_binseg_forward.18} parent=5 // pred_check
      %p170 = pneg %p169
    $region22: #{fno3d_binseg_forward.18} parent=5 // pred_check_branch
      %172 = sbr.rel (%p170) target = $region24
    $region23: #{fno3d_binseg_forward.18} parent=5 // pred_region
      // Predicated region
      $region25: #{fno3d_binseg_forward.18} parent=23 // pred_check
        %p173 = pneg %p44
      $region26: #{fno3d_binseg_forward.18} parent=23 // pred_check_branch
        %175 = sbr.rel (%p173) target = $region28
      $region27: #{fno3d_binseg_forward.18} parent=23 // pred_region
        %s176 = smul.u32 7, %s18
        %p177 = scmp.lt.s32.totalorder %s17, 1
        %s178 = scalar_select %p177, %s17, 1
        %p179 = scmp.lt.s32.totalorder %s176, 6
        %s180 = scalar_select %p179, %s176, 6
        %s181 = smul.addr %s178, 7
        %s182 = sadd.s32 %s180, %s181
        %s183 = smul.addr %s182, 8
        %s184 = scalar_lea.vmem %s0, %s183
        %s185 = smul.u32 7, %s18
      $region28: #{fno3d_binseg_forward.18} parent=23 // pred_fallthru
        _
      // Predicated region
      $region29: #{fno3d_binseg_forward.18} parent=23 // pred_check
        %p186 = pneg %p72
      $region30: #{fno3d_binseg_forward.18} parent=23 // pred_check_branch
        %188 = sbr.rel (%p186) target = $region32
      $region31: #{fno3d_binseg_forward.18} parent=23 // pred_region
        %s189 = smul.u32 7, %s18
        %p190 = scmp.lt.s32.totalorder %s17, 1
        %s191 = scalar_select %p190, %s17, 1
        %p192 = scmp.lt.s32.totalorder %s189, 6
        %s193 = scalar_select %p192, %s189, 6
        %s194 = smul.addr %s191, 7
        %s195 = sadd.s32 %s193, %s194
        %s196 = smul.addr %s195, 8
        %s197 = scalar_lea.vmem %s1, %s196
        %s198 = smul.u32 7, %s18
      $region32: #{fno3d_binseg_forward.18} parent=23 // pred_fallthru
        _
    $region24: #{fno3d_binseg_forward.18} parent=5 // pred_fallthru
      _
    %p199 = scmp.le.s32.totalorder 1, %s10
    %p200 = scmp.lt.s32.totalorder %s10, 3
    %p201 = pnand %p199, %p200
    %p202 = pneg %p201
    // Predicated region
    $region33: #{fno3d_binseg_forward.18} parent=5 // pred_check
      _
    $region34: #{fno3d_binseg_forward.18} parent=5 // pred_check_branch
      %204 = sbr.rel (%p201) target = $region36
    $region35: #{fno3d_binseg_forward.18} parent=5 // pred_region
      %s205 = ssub.s32 %s10, 1
      %s206 = smul.u32 7, %s20
      %p207 = scmp.lt.s32.totalorder %s19, 1
      %s208 = scalar_select %p207, %s19, 1
      %p209 = scmp.lt.s32.totalorder %s206, 6
      %s210 = scalar_select %p209, %s206, 6
      %s211 = smul.addr %s208, 7
      %s212 = sadd.s32 %s210, %s211
      %s213 = smul.addr %s212, 8
      %s214 = scalar_lea.vmem %s0, %s213
      %p215 = pneg %p50
      %p216 = pneg %p47
      %s217 = smul.u32 7, %s20
      %p218 = scmp.lt.s32.totalorder %s19, 1
      %s219 = scalar_select %p218, %s19, 1
      %p220 = scmp.lt.s32.totalorder %s217, 6
      %s221 = scalar_select %p220, %s217, 6
      %s222 = smul.addr %s219, 7
      %s223 = sadd.s32 %s221, %s222
      %s224 = smul.addr %s223, 8
      %s225 = scalar_lea.vmem %s1, %s224
      %p226 = pneg %p78
      %p227 = pneg %p75
      %p228 = pneg %p99
      %p229 = pneg %p96
      %p230 = pneg %p120
      %p231 = pneg %p117
      %p232 = pneg %p148
      %p233 = pneg %p145
      %s234 = smul.u32 7, %s20
      %p235 = scmp.lt.s32.totalorder %s19, 1
      %s236 = scalar_select %p235, %s19, 1
      %p237 = scmp.lt.s32.totalorder %s234, 6
      %s238 = scalar_select %p237, %s234, 6
      %s239 = smul.addr %s236, 7
      %s240 = sadd.s32 %s238, %s239
      %s241 = smul.addr %s240, 8
      %s242 = scalar_lea.vmem %s4, %s241
      %s243 = smul.u32 7, %s20
      %p244 = scmp.lt.s32.totalorder %s19, 1
      %s245 = scalar_select %p244, %s19, 1
      %p246 = scmp.lt.s32.totalorder %s243, 6
      %s247 = scalar_select %p246, %s243, 6
      %s248 = smul.addr %s245, 7
      %s249 = sadd.s32 %s247, %s248
      %s250 = smul.addr %s249, 8
      %s251 = scalar_lea.vmem %s0, %s250
      %s252 = smul.u32 7, %s20
      %s253 = smul.u32 7, %s20
      %p254 = scmp.lt.s32.totalorder %s19, 1
      %s255 = scalar_select %p254, %s19, 1
      %p256 = scmp.lt.s32.totalorder %s253, 6
      %s257 = scalar_select %p256, %s253, 6
      %s258 = smul.addr %s255, 7
      %s259 = sadd.s32 %s257, %s258
      %s260 = smul.addr %s259, 8
      %s261 = scalar_lea.vmem %s1, %s260
      %s262 = smul.u32 7, %s20
      %s263 = smul.u32 7, %s20
      %p264 = scmp.lt.s32.totalorder %s19, 1
      %s265 = scalar_select %p264, %s19, 1
      %p266 = scmp.lt.s32.totalorder %s263, 6
      %s267 = scalar_select %p266, %s263, 6
      %s268 = smul.addr %s265, 7
      %s269 = sadd.s32 %s267, %s268
      %s270 = smul.addr %s269, 8
      %s271 = scalar_lea.vmem %s4, %s270
      %s272 = smul.u32 7, %s20
      %v273 = vld [vmem:[%s2] sm:$0xff]
      %v274 = vld [vmem:[%s251] sm:$0xff]
      %v275 = vld [vmem:[%s251 + $0x8] sm:$0xff]
      %v276 = vld [vmem:[%s251 + $0x10] sm:$0xff]
      %v277 = vld [vmem:[%s251 + $0x18] sm:$0xff]
      %v278 = vld [vmem:[%s251 + $0x20] sm:$0xff]
      %v279 = vld [vmem:[%s251 + $0x28] sm:$0xff]
      %v280 = vld [vmem:[%s251 + $0x30] sm:$0xff]
      %v281 = vld [vmem:[%s3] sm:$0xff]
      %283 = vset.pattern.permute.xlu0 0
      %284 = vperm.xlu0 %283, %v281
      %v285 = vpop.permute.xlu0 %284
      %vm287 = vcmask 64512
      %v289 = vsel %vm287, %v273, 0
      %291 = vmatprep.subr.mxu0 %v275
      %292 = vmatpush1.msra.mxu0 %v274
      %293 = vmatprep.subr.mxu0 0.0
      %294 = vmatpush1.msra.mxu0 0.0
      %295 = vmatprep.subr.mxu0 0.0
      %296 = vmatpush1.msra.mxu0 0.0
      %297 = vmatprep.subr.mxu0 0.0
      %298 = vmatpush1.msra.mxu0 0.0
      %299 = vmatprep.subr.mxu0 0.0
      %300 = vmatpush1.msra.mxu0 0.0
      %301 = vmatprep.subr.mxu0 0.0
      %302 = vmatpush1.msra.mxu0 0.0
      %303 = vmatprep.subr.mxu0 0.0
      %304 = vmatpush1.msra.mxu0 0.0
      %305 = vmatprep.subr.mxu0 0.0
      %306 = vmatpush1.msra.mxu0 0.0
      %307 = vmatprep.subr.mxu0 0.0
      %308 = vmatpush1.msra.mxu0 0.0
      %309 = vmatprep.subr.mxu0 0.0
      %310 = vmatpush1.msra.mxu0 0.0
      %311 = vmatprep.subr.mxu0 0.0
      %312 = vmatpush1.msra.mxu0 0.0
      %313 = vmatprep.subr.mxu0 0.0
      %314 = vmatpush1.msra.mxu0 0.0
      %315 = vmatprep.subr.mxu0 0.0
      %316 = vmatpush1.msra.mxu0 0.0
      %317 = vmatprep.subr.mxu0 0.0
      %318 = vmatpush1.msra.mxu0 0.0
      %319 = vmatprep.subr.mxu0 0.0
      %320 = vmatpush1.msra.mxu0 0.0
      %321 = vmatprep.subr.mxu0 0.0
      %322 = vmatpush1.msra.mxu0 0.0
      %323 = vmatprep.subr.mxu0 0.0
      %324 = vmatpush1.msra.mxu0 0.0
      %325 = vmatprep.subr.mxu0 0.0
      %326 = vmatpush1.msra.mxu0 0.0
      %327 = vmatprep.subr.mxu0 0.0
      %328 = vmatpush1.msra.mxu0 0.0
      %329 = vmatprep.subr.mxu0 0.0
      %330 = vmatpush1.msra.mxu0 0.0
      %331 = vmatprep.subr.mxu0 0.0
      %332 = vmatpush1.msra.mxu0 0.0
      %333 = vmatprep.subr.mxu0 0.0
      %334 = vmatpush1.msra.mxu0 0.0
      %335 = vmatprep.subr.mxu0 0.0
      %336 = vmatpush1.msra.mxu0 0.0
      %337 = vmatprep.subr.mxu0 0.0
      %338 = vmatpush1.msra.mxu0 0.0
      %339 = vmatprep.subr.mxu0 0.0
      %340 = vmatpush1.msra.mxu0 0.0
      %341 = vmatprep.subr.mxu0 0.0
      %342 = vmatpush1.msra.mxu0 0.0
      %343 = vmatprep.subr.mxu0 0.0
      %344 = vmatpush1.msra.mxu0 0.0
      %345 = vmatprep.subr.mxu0 0.0
      %346 = vmatpush1.msra.mxu0 0.0
      %347 = vmatprep.subr.mxu0 0.0
      %348 = vmatpush1.msra.mxu0 0.0
      %349 = vmatprep.subr.mxu0 0.0
      %350 = vmatpush1.msra.mxu0 0.0
      %351 = vmatprep.subr.mxu0 0.0
      %352 = vmatpush1.msra.mxu0 0.0
      %353 = vmatprep.subr.mxu0 0.0
      %354 = vmatpush1.msra.mxu0 0.0
      %355 = vmatprep.mubr.f32.mxu0 0.0
      %356 = vmatmul.mubr.f32.gmra.mrb[0].mxu0 %v289
      %v357 = vpop.f32.mrb[0].mxu0
      %v358 = vadd.f32 %v285, %v357
      %v359 = vpop.f32.mrb[0].mxu0
      %v360 = vadd.f32 %v285, %v359
      %361 = vdwg.mxu0
      %362 = vmatprep.subr.mxu0 %v277
      %363 = vmatpush1.msra.mxu0 %v276
      %364 = vmatprep.subr.mxu0 0.0
      %365 = vmatpush1.msra.mxu0 0.0
      %366 = vmatprep.subr.mxu0 0.0
      %367 = vmatpush1.msra.mxu0 0.0
      %368 = vmatprep.subr.mxu0 0.0
      %369 = vmatpush1.msra.mxu0 0.0
      %370 = vmatprep.subr.mxu0 0.0
      %371 = vmatpush1.msra.mxu0 0.0
      %372 = vmatprep.subr.mxu0 0.0
      %373 = vmatpush1.msra.mxu0 0.0
      %374 = vmatprep.subr.mxu0 0.0
      %375 = vmatpush1.msra.mxu0 0.0
      %376 = vmatprep.subr.mxu0 0.0
      %377 = vmatpush1.msra.mxu0 0.0
      %378 = vmatprep.subr.mxu0 0.0
      %379 = vmatpush1.msra.mxu0 0.0
      %380 = vmatprep.subr.mxu0 0.0
      %381 = vmatpush1.msra.mxu0 0.0
      %382 = vmatprep.subr.mxu0 0.0
      %383 = vmatpush1.msra.mxu0 0.0
      %384 = vmatprep.subr.mxu0 0.0
      %385 = vmatpush1.msra.mxu0 0.0
      %386 = vmatprep.subr.mxu0 0.0
      %387 = vmatpush1.msra.mxu0 0.0
      %388 = vmatprep.subr.mxu0 0.0
      %389 = vmatpush1.msra.mxu0 0.0
      %390 = vmatprep.subr.mxu0 0.0
      %391 = vmatpush1.msra.mxu0 0.0
      %392 = vmatprep.subr.mxu0 0.0
      %393 = vmatpush1.msra.mxu0 0.0
      %394 = vmatprep.subr.mxu0 0.0
      %395 = vmatpush1.msra.mxu0 0.0
      %396 = vmatprep.subr.mxu0 0.0
      %397 = vmatpush1.msra.mxu0 0.0
      %398 = vmatprep.subr.mxu0 0.0
      %399 = vmatpush1.msra.mxu0 0.0
      %400 = vmatprep.subr.mxu0 0.0
      %401 = vmatpush1.msra.mxu0 0.0
      %402 = vmatprep.subr.mxu0 0.0
      %403 = vmatpush1.msra.mxu0 0.0
      %404 = vmatprep.subr.mxu0 0.0
      %405 = vmatpush1.msra.mxu0 0.0
      %406 = vmatprep.subr.mxu0 0.0
      %407 = vmatpush1.msra.mxu0 0.0
      %408 = vmatprep.subr.mxu0 0.0
      %409 = vmatpush1.msra.mxu0 0.0
      %410 = vmatprep.subr.mxu0 0.0
      %411 = vmatpush1.msra.mxu0 0.0
      %412 = vmatprep.subr.mxu0 0.0
      %413 = vmatpush1.msra.mxu0 0.0
      %414 = vmatprep.subr.mxu0 0.0
      %415 = vmatpush1.msra.mxu0 0.0
      %416 = vmatprep.subr.mxu0 0.0
      %417 = vmatpush1.msra.mxu0 0.0
      %418 = vmatprep.subr.mxu0 0.0
      %419 = vmatpush1.msra.mxu0 0.0
      %420 = vmatprep.subr.mxu0 0.0
      %421 = vmatpush1.msra.mxu0 0.0
      %422 = vmatprep.subr.mxu0 0.0
      %423 = vmatpush1.msra.mxu0 0.0
      %424 = vmatprep.subr.mxu0 0.0
      %425 = vmatpush1.msra.mxu0 0.0
      %426 = vmatprep.mubr.f32.mxu0 0.0
      %427 = vmatmul.mubr.f32.gmra.mrb[0].mxu0 %v289
      %v428 = vpop.f32.mrb[0].mxu0
      %v429 = vadd.f32 %v285, %v428
      %v430 = vpop.f32.mrb[0].mxu0
      %v431 = vadd.f32 %v285, %v430
      %432 = vdwg.mxu0
      %433 = vmatprep.subr.mxu0 %v279
      %434 = vmatpush1.msra.mxu0 %v278
      %435 = vmatprep.subr.mxu0 0.0
      %436 = vmatpush1.msra.mxu0 0.0
      %437 = vmatprep.subr.mxu0 0.0
      %438 = vmatpush1.msra.mxu0 0.0
      %439 = vmatprep.subr.mxu0 0.0
      %440 = vmatpush1.msra.mxu0 0.0
      %441 = vmatprep.subr.mxu0 0.0
      %442 = vmatpush1.msra.mxu0 0.0
      %443 = vmatprep.subr.mxu0 0.0
      %444 = vmatpush1.msra.mxu0 0.0
      %445 = vmatprep.subr.mxu0 0.0
      %446 = vmatpush1.msra.mxu0 0.0
      %447 = vmatprep.subr.mxu0 0.0
      %448 = vmatpush1.msra.mxu0 0.0
      %449 = vmatprep.subr.mxu0 0.0
      %450 = vmatpush1.msra.mxu0 0.0
      %451 = vmatprep.subr.mxu0 0.0
      %452 = vmatpush1.msra.mxu0 0.0
      %453 = vmatprep.subr.mxu0 0.0
      %454 = vmatpush1.msra.mxu0 0.0
      %455 = vmatprep.subr.mxu0 0.0
      %456 = vmatpush1.msra.mxu0 0.0
      %457 = vmatprep.subr.mxu0 0.0
      %458 = vmatpush1.msra.mxu0 0.0
      %459 = vmatprep.subr.mxu0 0.0
      %460 = vmatpush1.msra.mxu0 0.0
      %461 = vmatprep.subr.mxu0 0.0
      %462 = vmatpush1.msra.mxu0 0.0
      %463 = vmatprep.subr.mxu0 0.0
      %464 = vmatpush1.msra.mxu0 0.0
      %465 = vmatprep.subr.mxu0 0.0
      %466 = vmatpush1.msra.mxu0 0.0
      %467 = vmatprep.subr.mxu0 0.0
      %468 = vmatpush1.msra.mxu0 0.0
      %469 = vmatprep.subr.mxu0 0.0
      %470 = vmatpush1.msra.mxu0 0.0
      %471 = vmatprep.subr.mxu0 0.0
      %472 = vmatpush1.msra.mxu0 0.0
      %473 = vmatprep.subr.mxu0 0.0
      %474 = vmatpush1.msra.mxu0 0.0
      %475 = vmatprep.subr.mxu0 0.0
      %476 = vmatpush1.msra.mxu0 0.0
      %477 = vmatprep.subr.mxu0 0.0
      %478 = vmatpush1.msra.mxu0 0.0
      %479 = vmatprep.subr.mxu0 0.0
      %480 = vmatpush1.msra.mxu0 0.0
      %481 = vmatprep.subr.mxu0 0.0
      %482 = vmatpush1.msra.mxu0 0.0
      %483 = vmatprep.subr.mxu0 0.0
      %484 = vmatpush1.msra.mxu0 0.0
      %485 = vmatprep.subr.mxu0 0.0
      %486 = vmatpush1.msra.mxu0 0.0
      %487 = vmatprep.subr.mxu0 0.0
      %488 = vmatpush1.msra.mxu0 0.0
      %489 = vmatprep.subr.mxu0 0.0
      %490 = vmatpush1.msra.mxu0 0.0
      %491 = vmatprep.subr.mxu0 0.0
      %492 = vmatpush1.msra.mxu0 0.0
      %493 = vmatprep.subr.mxu0 0.0
      %494 = vmatpush1.msra.mxu0 0.0
      %495 = vmatprep.subr.mxu0 0.0
      %496 = vmatpush1.msra.mxu0 0.0
      %497 = vmatprep.mubr.f32.mxu0 0.0
      %498 = vmatmul.mubr.f32.gmra.mrb[0].mxu0 %v289
      %v499 = vpop.f32.mrb[0].mxu0
      %v500 = vadd.f32 %v285, %v499
      %v501 = vpop.f32.mrb[0].mxu0
      %v502 = vadd.f32 %v285, %v501
      %503 = vdwg.mxu0
      %504 = vmatprep.subr.mxu0 0.0
      %505 = vmatpush1.msra.mxu0 %v280
      %506 = vmatprep.subr.mxu0 0.0
      %507 = vmatpush1.msra.mxu0 0.0
      %508 = vmatprep.subr.mxu0 0.0
      %509 = vmatpush1.msra.mxu0 0.0
      %510 = vmatprep.subr.mxu0 0.0
      %511 = vmatpush1.msra.mxu0 0.0
      %512 = vmatprep.subr.mxu0 0.0
      %513 = vmatpush1.msra.mxu0 0.0
      %514 = vmatprep.subr.mxu0 0.0
      %515 = vmatpush1.msra.mxu0 0.0
      %516 = vmatprep.subr.mxu0 0.0
      %517 = vmatpush1.msra.mxu0 0.0
      %518 = vmatprep.subr.mxu0 0.0
      %519 = vmatpush1.msra.mxu0 0.0
      %520 = vmatprep.subr.mxu0 0.0
      %521 = vmatpush1.msra.mxu0 0.0
      %522 = vmatprep.subr.mxu0 0.0
      %523 = vmatpush1.msra.mxu0 0.0
      %524 = vmatprep.subr.mxu0 0.0
      %525 = vmatpush1.msra.mxu0 0.0
      %526 = vmatprep.subr.mxu0 0.0
      %527 = vmatpush1.msra.mxu0 0.0
      %528 = vmatprep.subr.mxu0 0.0
      %529 = vmatpush1.msra.mxu0 0.0
      %530 = vmatprep.subr.mxu0 0.0
      %531 = vmatpush1.msra.mxu0 0.0
      %532 = vmatprep.subr.mxu0 0.0
      %533 = vmatpush1.msra.mxu0 0.0
      %534 = vmatprep.subr.mxu0 0.0
      %535 = vmatpush1.msra.mxu0 0.0
      %536 = vmatprep.subr.mxu0 0.0
      %537 = vmatpush1.msra.mxu0 0.0
      %538 = vmatprep.subr.mxu0 0.0
      %539 = vmatpush1.msra.mxu0 0.0
      %540 = vmatprep.subr.mxu0 0.0
      %541 = vmatpush1.msra.mxu0 0.0
      %542 = vmatprep.subr.mxu0 0.0
      %543 = vmatpush1.msra.mxu0 0.0
      %544 = vmatprep.subr.mxu0 0.0
      %545 = vmatpush1.msra.mxu0 0.0
      %546 = vmatprep.subr.mxu0 0.0
      %547 = vmatpush1.msra.mxu0 0.0
      %548 = vmatprep.subr.mxu0 0.0
      %549 = vmatpush1.msra.mxu0 0.0
      %550 = vmatprep.subr.mxu0 0.0
      %551 = vmatpush1.msra.mxu0 0.0
      %552 = vmatprep.subr.mxu0 0.0
      %553 = vmatpush1.msra.mxu0 0.0
      %554 = vmatprep.subr.mxu0 0.0
      %555 = vmatpush1.msra.mxu0 0.0
      %556 = vmatprep.subr.mxu0 0.0
      %557 = vmatpush1.msra.mxu0 0.0
      %558 = vmatprep.subr.mxu0 0.0
      %559 = vmatpush1.msra.mxu0 0.0
      %560 = vmatprep.subr.mxu0 0.0
      %561 = vmatpush1.msra.mxu0 0.0
      %562 = vmatprep.subr.mxu0 0.0
      %563 = vmatpush1.msra.mxu0 0.0
      %564 = vmatprep.subr.mxu0 0.0
      %565 = vmatpush1.msra.mxu0 0.0
      %566 = vmatprep.subr.mxu0 0.0
      %567 = vmatpush1.msra.mxu0 0.0
      %568 = vmatprep.mubr.f32.mxu0 0.0
      %569 = vmatmul.mubr.f32.gmra.mrb[0].mxu0 %v289
      %v570 = vpop.f32.mrb[0].mxu0
      %v571 = vadd.f32 %v285, %v570
      %v572 = vpop.f32.mrb[0].mxu0
      %573 = vdwg.mxu0
      %v574 = vld [vmem:[%s261] sm:$0xff]
      %v575 = vld [vmem:[%s261 + $0x8] sm:$0xff]
      %v576 = vld [vmem:[%s261 + $0x10] sm:$0xff]
      %v577 = vld [vmem:[%s261 + $0x18] sm:$0xff]
      %v578 = vld [vmem:[%s261 + $0x20] sm:$0xff]
      %v579 = vld [vmem:[%s261 + $0x28] sm:$0xff]
      %v580 = vld [vmem:[%s261 + $0x30] sm:$0xff]
      %v581 = vadd.f32 %v358, %v574
      %v582 = vadd.f32 %v360, %v575
      %v583 = vadd.f32 %v429, %v576
      %v584 = vadd.f32 %v431, %v577
      %v585 = vadd.f32 %v500, %v578
      %v586 = vadd.f32 %v502, %v579
      %v587 = vadd.f32 %v571, %v580
      %588 = vst [vmem:[%s271] sm:$0xff] %v581
      %589 = vst [vmem:[%s271 + $0x8] sm:$0xff] %v582
      %590 = vst [vmem:[%s271 + $0x10] sm:$0xff] %v583
      %591 = vst [vmem:[%s271 + $0x18] sm:$0xff] %v584
      %592 = vst [vmem:[%s271 + $0x20] sm:$0xff] %v585
      %593 = vst [vmem:[%s271 + $0x28] sm:$0xff] %v586
      %594 = vst [vmem:[%s271 + $0x30] sm:$0xff] %v587
      %s595 = smul.u32 7, %s20
      %p596 = scmp.lt.s32.totalorder %s19, 1
      %s597 = scalar_select %p596, %s19, 1
      %p598 = scmp.lt.s32.totalorder %s595, 6
      %s599 = scalar_select %p598, %s595, 6
      %s600 = smul.addr %s597, 7
      %s601 = sadd.s32 %s599, %s600
      %s602 = smul.addr %s601, 8
      %s603 = scalar_lea.vmem %s4, %s602
      // Predicated region
      $region37: #{fno3d_binseg_forward.18} parent=35 // pred_check
        %p604 = pneg %p145
      $region38: #{fno3d_binseg_forward.18} parent=35 // pred_check_branch
        %606 = sbr.rel (%p604) target = $region40
      $region39: #{fno3d_binseg_forward.18} parent=35 // pred_region
        %s607 = smul.u32 7, %s20
      $region40: #{fno3d_binseg_forward.18} parent=35 // pred_fallthru
        _
    $region36: #{fno3d_binseg_forward.18} parent=5 // pred_fallthru
      _
    %p608 = scmp.le.s32.totalorder 2, %s10
    // Predicated region
    $region41: #{fno3d_binseg_forward.18} parent=5 // pred_check
      %p609 = pneg %p608
    $region42: #{fno3d_binseg_forward.18} parent=5 // pred_check_branch
      %611 = sbr.rel (%p609) target = $region44
    $region43: #{fno3d_binseg_forward.18} parent=5 // pred_region
      %s612 = ssub.s32 %s10, 2
      // Predicated region
      $region45: #{fno3d_binseg_forward.18} parent=43 // pred_check
        %p613 = pneg %p151
      $region46: #{fno3d_binseg_forward.18} parent=43 // pred_check_branch
        %615 = sbr.rel (%p613) target = $region48
      $region47: #{fno3d_binseg_forward.18} parent=43 // pred_region
        %s616 = smul.u32 7, %s22
        %p617 = scmp.lt.s32.totalorder %s21, 1
        %s618 = scalar_select %p617, %s21, 1
        %p619 = scmp.lt.s32.totalorder %s616, 6
        %s620 = scalar_select %p619, %s616, 6
        %s621 = smul.addr %s618, 7
        %s622 = sadd.s32 %s620, %s621
        %s623 = smul.addr %s622, 8
        %s624 = scalar_lea.vmem %s4, %s623
      $region48: #{fno3d_binseg_forward.18} parent=43 // pred_fallthru
        _
    $region44: #{fno3d_binseg_forward.18} parent=5 // pred_fallthru
      _
  $region6: #{fno3d_binseg_forward.18} parent=0 // loop_footer
    %s14 = sadd.s32 1, %s10
  $region7: #{fno3d_binseg_forward.18} parent=0 // loop_footer_branch
    %9 = sbr.rel target = $region3
  $region8: #{fno3d_binseg_forward.18} parent=0 // loop_exit
    _

// kernel: fno3d_binseg_forward.19
$region0: #{fno3d_binseg_forward.19}
  #allocation0 [shape = 'u32[]', space=smem, size = 0x4, offset = 0x4, fixed_abs, tag = 'smem constant byte address 0x4 - core index']
  #allocation1 [shape = 'u32[144,128]{1,0:T(1,128)}', space=vmem, size = 0x12000, scoped, tag = 'internal scratch']
  %s0 = inlined_call_operand.vmem [shape: f32[2,8,896], index: 0, kind: input, shape index: {}]
  %s1 = inlined_call_operand.vmem [shape: f32[128,8], index: 1, kind: input, shape index: {}]
  %s2 = inlined_call_operand.vmem [shape: f32[128,1], index: 2, kind: input, shape index: {}]
  %s3 = inlined_call_operand.vmem [shape: f32[2,128], index: 3, kind: input, shape index: {}]
  %s4 = inlined_call_operand.vmem [shape: f32[2,1], index: 4, kind: input, shape index: {}]
  %s5 = inlined_call_operand.vmem [shape: f32[2,2,896], index: 5, kind: output, shape index: {}]
  %s6 = sld [smem:[#allocation0]]
  $region53: #{fno3d_binseg_forward.19} parent=0
    _
  %s8 = ssub.s32 1, %s6
  %s9 = scalar_select 0, %s8, %s6
  loop: start=0, step=1, limit=4
  $region2: #{fno3d_binseg_forward.19} parent=0 // loop_pre_header
    _
  $region3: #{fno3d_binseg_forward.19} parent=0 // loop_header
    %s11 = sphi 0, %s15
    %p12 = scmp.ge.s32.totalorder %s11, 4
    %s18 = sphi 0, %s30
    %s19 = sphi 0, %s26
    %s20 = sphi 0, %s18
    %s21 = sphi 0, %s19
    %s22 = sphi 0, %s20
    %s23 = sphi 0, %s21
    %s35 = sphi 0, %s37
    %s38 = sphi 0, %s35
    %s39 = sphi 0, %s38
    %s55 = sphi 0, %s39
    %s59 = sphi 0, %s59
    %s61 = sphi 0, %s59
    %s62 = sphi 0, %s61
    %s76 = sphi 0, %s62
    %s80 = sphi 0, %s80
    %s82 = sphi 0, %s80
    %s83 = sphi 0, %s82
    %s97 = sphi 0, %s83
    %s101 = sphi 0, %s101
    %s103 = sphi 0, %s101
    %s104 = sphi 0, %s103
    %s118 = sphi 0, %s104
    %s122 = sphi 0, %s122
    %s124 = sphi 0, %s122
    %s125 = sphi 0, %s124
    %s139 = sphi 0, %s125
    %s147 = sphi 0, %s149
    %s150 = sphi 0, %s147
    %s151 = sphi 0, %s150
    %s167 = sphi 0, %s151
  $region4: #{fno3d_binseg_forward.19} parent=0 // loop_header_branch
    %14 = sbr.rel (%p12) target = $region8
  $region5: #{fno3d_binseg_forward.19} parent=0 // loop_body
    %s16 = ssub.s32 %s11, 1
    %s17 = ssub.s32 %s11, 2
    %s24 = sadd.s32 1, %s19
    %p25 = scmp.ge.s32.totalorder %s24, 1
    %s26 = scalar_select %p25, 0, %s24
    %s27 = sadd.s32 1, %s18
    %s28 = scalar_select %p25, %s27, %s18
    %p29 = scmp.ge.s32.totalorder %s28, 2
    %s30 = scalar_select %p29, 0, %s28
    %s31 = ssub.s32 %s18, %s30
    %s32 = ssub.s32 %s19, %s26
    %s33 = sor.u32 %s31, %s32
    %p34 = scmp.eq.s32.totalorder %s33, 0
    %s36 = sadd.s32 %s35, 1
    %s37 = scalar_select %p34, %s35, %s36
    %p40 = pneg %p34
    %p41 = scmp.eq.s32.totalorder %s11, 1
    %p42 = por %p40, %p41
    %p43 = scmp.ne.s32.totalorder %s35, %s38
    %p44 = scmp.eq.s32.totalorder %s11, 0
    %p45 = por %p43, %p44
    %p46 = scmp.ne.s32.totalorder %s35, %s38
    %p47 = scmp.eq.s32.totalorder %s16, 1
    %p48 = por %p46, %p47
    %p49 = scmp.ne.s32.totalorder %s38, %s39
    %p50 = scmp.eq.s32.totalorder %s16, 0
    %p51 = por %p49, %p50
    %p52 = scmp.ne.s32.totalorder %s38, %s39
    %p53 = scmp.eq.s32.totalorder %s17, 1
    %p54 = por %p52, %p53
    %p56 = scmp.ne.s32.totalorder %s39, %s55
    %p57 = scmp.eq.s32.totalorder %s17, 0
    %p58 = por %p56, %p57
    %s60 = sadd.s32 %s59, 1
    %p63 = scmp.eq.s32.totalorder %s11, 1
    %p64 = scmp.ne.s32.totalorder %s59, %s61
    %p65 = scmp.eq.s32.totalorder %s11, 0
    %p66 = por %p64, %p65
    %p67 = scmp.ne.s32.totalorder %s59, %s61
    %p68 = scmp.eq.s32.totalorder %s16, 1
    %p69 = por %p67, %p68
    %p70 = scmp.ne.s32.totalorder %s61, %s62
    %p71 = scmp.eq.s32.totalorder %s16, 0
    %p72 = por %p70, %p71
    %p73 = scmp.ne.s32.totalorder %s61, %s62
    %p74 = scmp.eq.s32.totalorder %s17, 1
    %p75 = por %p73, %p74
    %p77 = scmp.ne.s32.totalorder %s62, %s76
    %p78 = scmp.eq.s32.totalorder %s17, 0
    %p79 = por %p77, %p78
    %s81 = sadd.s32 %s80, 1
    %p84 = scmp.eq.s32.totalorder %s11, 1
    %p85 = scmp.ne.s32.totalorder %s80, %s82
    %p86 = scmp.eq.s32.totalorder %s11, 0
    %p87 = por %p85, %p86
    %p88 = scmp.ne.s32.totalorder %s80, %s82
    %p89 = scmp.eq.s32.totalorder %s16, 1
    %p90 = por %p88, %p89
    %p91 = scmp.ne.s32.totalorder %s82, %s83
    %p92 = scmp.eq.s32.totalorder %s16, 0
    %p93 = por %p91, %p92
    %p94 = scmp.ne.s32.totalorder %s82, %s83
    %p95 = scmp.eq.s32.totalorder %s17, 1
    %p96 = por %p94, %p95
    %p98 = scmp.ne.s32.totalorder %s83, %s97
    %p99 = scmp.eq.s32.totalorder %s17, 0
    %p100 = por %p98, %p99
    %s102 = sadd.s32 %s101, 1
    %p105 = scmp.eq.s32.totalorder %s11, 1
    %p106 = scmp.ne.s32.totalorder %s101, %s103
    %p107 = scmp.eq.s32.totalorder %s11, 0
    %p108 = por %p106, %p107
    %p109 = scmp.ne.s32.totalorder %s101, %s103
    %p110 = scmp.eq.s32.totalorder %s16, 1
    %p111 = por %p109, %p110
    %p112 = scmp.ne.s32.totalorder %s103, %s104
    %p113 = scmp.eq.s32.totalorder %s16, 0
    %p114 = por %p112, %p113
    %p115 = scmp.ne.s32.totalorder %s103, %s104
    %p116 = scmp.eq.s32.totalorder %s17, 1
    %p117 = por %p115, %p116
    %p119 = scmp.ne.s32.totalorder %s104, %s118
    %p120 = scmp.eq.s32.totalorder %s17, 0
    %p121 = por %p119, %p120
    %s123 = sadd.s32 %s122, 1
    %p126 = scmp.eq.s32.totalorder %s11, 1
    %p127 = scmp.ne.s32.totalorder %s122, %s124
    %p128 = scmp.eq.s32.totalorder %s11, 0
    %p129 = por %p127, %p128
    %p130 = scmp.ne.s32.totalorder %s122, %s124
    %p131 = scmp.eq.s32.totalorder %s16, 1
    %p132 = por %p130, %p131
    %p133 = scmp.ne.s32.totalorder %s124, %s125
    %p134 = scmp.eq.s32.totalorder %s16, 0
    %p135 = por %p133, %p134
    %p136 = scmp.ne.s32.totalorder %s124, %s125
    %p137 = scmp.eq.s32.totalorder %s17, 1
    %p138 = por %p136, %p137
    %p140 = scmp.ne.s32.totalorder %s125, %s139
    %p141 = scmp.eq.s32.totalorder %s17, 0
    %p142 = por %p140, %p141
    %s143 = ssub.s32 %s18, %s30
    %s144 = ssub.s32 %s19, %s26
    %s145 = sor.u32 %s143, %s144
    %p146 = scmp.eq.s32.totalorder %s145, 0
    %s148 = sadd.s32 %s147, 1
    %s149 = scalar_select %p146, %s147, %s148
    %p152 = pneg %p146
    %p153 = scmp.eq.s32.totalorder %s11, 1
    %p154 = por %p152, %p153
    %p155 = scmp.ne.s32.totalorder %s147, %s150
    %p156 = scmp.eq.s32.totalorder %s11, 0
    %p157 = por %p155, %p156
    %p158 = scmp.ne.s32.totalorder %s147, %s150
    %p159 = scmp.eq.s32.totalorder %s16, 1
    %p160 = por %p158, %p159
    %p161 = scmp.ne.s32.totalorder %s150, %s151
    %p162 = scmp.eq.s32.totalorder %s16, 0
    %p163 = por %p161, %p162
    %p164 = scmp.ne.s32.totalorder %s150, %s151
    %p165 = scmp.eq.s32.totalorder %s17, 1
    %p166 = por %p164, %p165
    %p168 = scmp.ne.s32.totalorder %s151, %s167
    %p169 = scmp.eq.s32.totalorder %s17, 0
    %p170 = por %p168, %p169
    %p171 = scmp.le.s32.totalorder 1, %s11
    %p172 = scmp.lt.s32.totalorder %s11, 3
    %p173 = pnand %p171, %p172
    %p174 = pneg %p173
    // Predicated region
    $region9: #{fno3d_binseg_forward.19} parent=5 // pred_check
      _
    $region10: #{fno3d_binseg_forward.19} parent=5 // pred_check_branch
      %176 = sbr.rel (%p173) target = $region12
    $region11: #{fno3d_binseg_forward.19} parent=5 // pred_region
      %s177 = ssub.s32 %s11, 1
      // Predicated region
      $region13: #{fno3d_binseg_forward.19} parent=11 // pred_check
        %p178 = pneg %p72
      $region14: #{fno3d_binseg_forward.19} parent=11 // pred_check_branch
        %180 = sbr.rel (%p178) target = $region16
      $region15: #{fno3d_binseg_forward.19} parent=11 // pred_region
        _
      $region16: #{fno3d_binseg_forward.19} parent=11 // pred_fallthru
        _
      // Predicated region
      $region17: #{fno3d_binseg_forward.19} parent=11 // pred_check
        %p181 = pneg %p93
      $region18: #{fno3d_binseg_forward.19} parent=11 // pred_check_branch
        %183 = sbr.rel (%p181) target = $region20
      $region19: #{fno3d_binseg_forward.19} parent=11 // pred_region
        _
      $region20: #{fno3d_binseg_forward.19} parent=11 // pred_fallthru
        _
      // Predicated region
      $region21: #{fno3d_binseg_forward.19} parent=11 // pred_check
        %p184 = pneg %p114
      $region22: #{fno3d_binseg_forward.19} parent=11 // pred_check_branch
        %186 = sbr.rel (%p184) target = $region24
      $region23: #{fno3d_binseg_forward.19} parent=11 // pred_region
        _
      $region24: #{fno3d_binseg_forward.19} parent=11 // pred_fallthru
        _
      // Predicated region
      $region25: #{fno3d_binseg_forward.19} parent=11 // pred_check
        %p187 = pneg %p135
      $region26: #{fno3d_binseg_forward.19} parent=11 // pred_check_branch
        %189 = sbr.rel (%p187) target = $region28
      $region27: #{fno3d_binseg_forward.19} parent=11 // pred_region
        _
      $region28: #{fno3d_binseg_forward.19} parent=11 // pred_fallthru
        _
    $region12: #{fno3d_binseg_forward.19} parent=5 // pred_fallthru
      _
    %p190 = scmp.lt.s32.totalorder %s11, 2
    // Predicated region
    $region29: #{fno3d_binseg_forward.19} parent=5 // pred_check
      %p191 = pneg %p190
    $region30: #{fno3d_binseg_forward.19} parent=5 // pred_check_branch
      %193 = sbr.rel (%p191) target = $region32
    $region31: #{fno3d_binseg_forward.19} parent=5 // pred_region
      // Predicated region
      $region33: #{fno3d_binseg_forward.19} parent=31 // pred_check
        %p194 = pneg %p45
      $region34: #{fno3d_binseg_forward.19} parent=31 // pred_check_branch
        %196 = sbr.rel (%p194) target = $region36
      $region35: #{fno3d_binseg_forward.19} parent=31 // pred_region
        %s197 = smul.u32 7, %s19
        %p198 = scmp.lt.s32.totalorder %s18, 1
        %s199 = scalar_select %p198, %s18, 1
        %p200 = scmp.lt.s32.totalorder %s197, 6
        %s201 = scalar_select %p200, %s197, 6
        %s202 = smul.addr %s199, 7
        %s203 = sadd.s32 %s201, %s202
        %s204 = smul.addr %s203, 8
        %s205 = scalar_lea.vmem %s0, %s204
        %s206 = smul.u32 7, %s19
      $region36: #{fno3d_binseg_forward.19} parent=31 // pred_fallthru
        _
    $region32: #{fno3d_binseg_forward.19} parent=5 // pred_fallthru
      _
    %p207 = scmp.le.s32.totalorder 1, %s11
    %p208 = scmp.lt.s32.totalorder %s11, 3
    %p209 = pnand %p207, %p208
    %p210 = pneg %p209
    // Predicated region
    $region37: #{fno3d_binseg_forward.19} parent=5 // pred_check
      _
    $region38: #{fno3d_binseg_forward.19} parent=5 // pred_check_branch
      %212 = sbr.rel (%p209) target = $region40
    $region39: #{fno3d_binseg_forward.19} parent=5 // pred_region
      %s213 = ssub.s32 %s11, 1
      %s214 = smul.u32 7, %s21
      %p215 = scmp.lt.s32.totalorder %s20, 1
      %s216 = scalar_select %p215, %s20, 1
      %p217 = scmp.lt.s32.totalorder %s214, 6
      %s218 = scalar_select %p217, %s214, 6
      %s219 = smul.addr %s216, 7
      %s220 = sadd.s32 %s218, %s219
      %s221 = smul.addr %s220, 8
      %s222 = scalar_lea.vmem %s0, %s221
      %p223 = pneg %p51
      %p224 = pneg %p48
      %p225 = pneg %p72
      %p226 = pneg %p69
      %p227 = pneg %p93
      %p228 = pneg %p90
      %p229 = pneg %p114
      %p230 = pneg %p111
      %p231 = pneg %p135
      %p232 = pneg %p132
      %p233 = pneg %p163
      %p234 = pneg %p160
      %s235 = smul.u32 7, %s21
      %p236 = scmp.lt.s32.totalorder %s20, 1
      %s237 = scalar_select %p236, %s20, 1
      %p238 = scmp.lt.s32.totalorder %s235, 6
      %s239 = scalar_select %p238, %s235, 6
      %s240 = smul.addr %s237, 7
      %s241 = sadd.s32 %s239, %s240
      %s242 = smul.addr %s241, 2
      %s243 = scalar_lea.vmem %s5, %s242
      %s244 = smul.u32 7, %s21
      %p245 = scmp.lt.s32.totalorder %s20, 1
      %s246 = scalar_select %p245, %s20, 1
      %p247 = scmp.lt.s32.totalorder %s244, 6
      %s248 = scalar_select %p247, %s244, 6
      %s249 = smul.addr %s246, 7
      %s250 = sadd.s32 %s248, %s249
      %s251 = smul.addr %s250, 8
      %s252 = scalar_lea.vmem %s0, %s251
      %s253 = smul.u32 7, %s21
      %s254 = smul.u32 7, %s21
      %p255 = scmp.lt.s32.totalorder %s20, 1
      %s256 = scalar_select %p255, %s20, 1
      %p257 = scmp.lt.s32.totalorder %s254, 6
      %s258 = scalar_select %p257, %s254, 6
      %s259 = smul.addr %s256, 7
      %s260 = sadd.s32 %s258, %s259
      %s261 = smul.addr %s260, 2
      %s262 = scalar_lea.vmem %s5, %s261
      %s263 = smul.u32 7, %s21
      %v264 = vld [vmem:[%s1] sm:$0xff]
      %v265 = vld [vmem:[%s1 + $0x8] sm:$0xff]
      %v266 = vld [vmem:[%s1 + $0x10] sm:$0xff]
      %v267 = vld [vmem:[%s1 + $0x18] sm:$0xff]
      %v268 = vld [vmem:[%s1 + $0x20] sm:$0xff]
      %v269 = vld [vmem:[%s1 + $0x28] sm:$0xff]
      %v270 = vld [vmem:[%s1 + $0x30] sm:$0xff]
      %v271 = vld [vmem:[%s1 + $0x38] sm:$0xff]
      %v272 = vld [vmem:[%s1 + $0x40] sm:$0xff]
      %v273 = vld [vmem:[%s1 + $0x48] sm:$0xff]
      %v274 = vld [vmem:[%s1 + $0x50] sm:$0xff]
      %v275 = vld [vmem:[%s1 + $0x58] sm:$0xff]
      %v276 = vld [vmem:[%s1 + $0x60] sm:$0xff]
      %v277 = vld [vmem:[%s1 + $0x68] sm:$0xff]
      %v278 = vld [vmem:[%s1 + $0x70] sm:$0xff]
      %v279 = vld [vmem:[%s1 + $0x78] sm:$0xff]
      %v280 = vld [vmem:[%s252] sm:$0xff]
      %v281 = vld [vmem:[%s252 + $0x8] sm:$0xff]
      %v282 = vld [vmem:[%s252 + $0x10] sm:$0xff]
      %v283 = vld [vmem:[%s252 + $0x18] sm:$0xff]
      %v284 = vld [vmem:[%s252 + $0x20] sm:$0xff]
      %v285 = vld [vmem:[%s252 + $0x28] sm:$0xff]
      %v286 = vld [vmem:[%s252 + $0x30] sm:$0xff]
      %v287 = vld [vmem:[%s2] sm:$0xff]
      %v288 = vld [vmem:[%s2 + $0x8] sm:$0xff]
      %v289 = vld [vmem:[%s2 + $0x10] sm:$0xff]
      %v290 = vld [vmem:[%s2 + $0x18] sm:$0xff]
      %v291 = vld [vmem:[%s2 + $0x20] sm:$0xff]
      %v292 = vld [vmem:[%s2 + $0x28] sm:$0xff]
      %v293 = vld [vmem:[%s2 + $0x30] sm:$0xff]
      %v294 = vld [vmem:[%s2 + $0x38] sm:$0xff]
      %v295 = vld [vmem:[%s2 + $0x40] sm:$0xff]
      %v296 = vld [vmem:[%s2 + $0x48] sm:$0xff]
      %v297 = vld [vmem:[%s2 + $0x50] sm:$0xff]
      %v298 = vld [vmem:[%s2 + $0x58] sm:$0xff]
      %v299 = vld [vmem:[%s2 + $0x60] sm:$0xff]
      %v300 = vld [vmem:[%s2 + $0x68] sm:$0xff]
      %v301 = vld [vmem:[%s2 + $0x70] sm:$0xff]
      %v302 = vld [vmem:[%s2 + $0x78] sm:$0xff]
      %304 = vset.pattern.permute.xlu0 0
      %305 = vperm.xlu0 %304, %v287
      %v306 = vpop.permute.xlu0 %305
      %309 = vset.pattern.permute.xlu0 0
      %310 = vperm.xlu0 %309, %v288
      %v311 = vpop.permute.xlu0 %310
      %314 = vset.pattern.permute.xlu0 0
      %315 = vperm.xlu0 %314, %v289
      %v316 = vpop.permute.xlu0 %315
      %319 = vset.pattern.permute.xlu0 0
      %320 = vperm.xlu0 %319, %v290
      %v321 = vpop.permute.xlu0 %320
      %324 = vset.pattern.permute.xlu0 0
      %325 = vperm.xlu0 %324, %v291
      %v326 = vpop.permute.xlu0 %325
      %329 = vset.pattern.permute.xlu0 0
      %330 = vperm.xlu0 %329, %v292
      %v331 = vpop.permute.xlu0 %330
      %334 = vset.pattern.permute.xlu0 0
      %335 = vperm.xlu0 %334, %v293
      %v336 = vpop.permute.xlu0 %335
      %339 = vset.pattern.permute.xlu0 0
      %340 = vperm.xlu0 %339, %v294
      %v341 = vpop.permute.xlu0 %340
      %344 = vset.pattern.permute.xlu0 0
      %345 = vperm.xlu0 %344, %v295
      %v346 = vpop.permute.xlu0 %345
      %349 = vset.pattern.permute.xlu0 0
      %350 = vperm.xlu0 %349, %v296
      %v351 = vpop.permute.xlu0 %350
      %354 = vset.pattern.permute.xlu0 0
      %355 = vperm.xlu0 %354, %v297
      %v356 = vpop.permute.xlu0 %355
      %359 = vset.pattern.permute.xlu0 0
      %360 = vperm.xlu0 %359, %v298
      %v361 = vpop.permute.xlu0 %360
      %364 = vset.pattern.permute.xlu0 0
      %365 = vperm.xlu0 %364, %v299
      %v366 = vpop.permute.xlu0 %365
      %369 = vset.pattern.permute.xlu0 0
      %370 = vperm.xlu0 %369, %v300
      %v371 = vpop.permute.xlu0 %370
      %374 = vset.pattern.permute.xlu0 0
      %375 = vperm.xlu0 %374, %v301
      %v376 = vpop.permute.xlu0 %375
      %379 = vset.pattern.permute.xlu0 0
      %380 = vperm.xlu0 %379, %v302
      %v381 = vpop.permute.xlu0 %380
      %vm383 = vcmask 64512
      %v385 = vsel %vm383, %v264, 0
      %v388 = vsel %vm383, %v265, 0
      %v391 = vsel %vm383, %v266, 0
      %v394 = vsel %vm383, %v267, 0
      %v397 = vsel %vm383, %v268, 0
      %v400 = vsel %vm383, %v269, 0
      %v403 = vsel %vm383, %v270, 0
      %v406 = vsel %vm383, %v271, 0
      %v409 = vsel %vm383, %v272, 0
      %v412 = vsel %vm383, %v273, 0
      %v415 = vsel %vm383, %v274, 0
      %v418 = vsel %vm383, %v275, 0
      %v421 = vsel %vm383, %v276, 0
      %v424 = vsel %vm383, %v277, 0
      %v427 = vsel %vm383, %v278, 0
      %v430 = vsel %vm383, %v279, 0
      %432 = vmatprep.subr.mxu0 %v281
      %433 = vmatpush1.msra.mxu0 %v280
      %434 = vmatprep.subr.mxu0 0.0
      %435 = vmatpush1.msra.mxu0 0.0
      %436 = vmatprep.subr.mxu0 0.0
      %437 = vmatpush1.msra.mxu0 0.0
      %438 = vmatprep.subr.mxu0 0.0
      %439 = vmatpush1.msra.mxu0 0.0
      %440 = vmatprep.subr.mxu0 0.0
      %441 = vmatpush1.msra.mxu0 0.0
      %442 = vmatprep.subr.mxu0 0.0
      %443 = vmatpush1.msra.mxu0 0.0
      %444 = vmatprep.subr.mxu0 0.0
      %445 = vmatpush1.msra.mxu0 0.0
      %446 = vmatprep.subr.mxu0 0.0
      %447 = vmatpush1.msra.mxu0 0.0
      %448 = vmatprep.subr.mxu0 0.0
      %449 = vmatpush1.msra.mxu0 0.0
      %450 = vmatprep.subr.mxu0 0.0
      %451 = vmatpush1.msra.mxu0 0.0
      %452 = vmatprep.subr.mxu0 0.0
      %453 = vmatpush1.msra.mxu0 0.0
      %454 = vmatprep.subr.mxu0 0.0
      %455 = vmatpush1.msra.mxu0 0.0
      %456 = vmatprep.subr.mxu0 0.0
      %457 = vmatpush1.msra.mxu0 0.0
      %458 = vmatprep.subr.mxu0 0.0
      %459 = vmatpush1.msra.mxu0 0.0
      %460 = vmatprep.subr.mxu0 0.0
      %461 = vmatpush1.msra.mxu0 0.0
      %462 = vmatprep.subr.mxu0 0.0
      %463 = vmatpush1.msra.mxu0 0.0
      %464 = vmatprep.subr.mxu0 0.0
      %465 = vmatpush1.msra.mxu0 0.0
      %466 = vmatprep.subr.mxu0 0.0
      %467 = vmatpush1.msra.mxu0 0.0
      %468 = vmatprep.subr.mxu0 0.0
      %469 = vmatpush1.msra.mxu0 0.0
      %470 = vmatprep.subr.mxu0 0.0
      %471 = vmatpush1.msra.mxu0 0.0
      %472 = vmatprep.subr.mxu0 0.0
      %473 = vmatpush1.msra.mxu0 0.0
      %474 = vmatprep.subr.mxu0 0.0
      %475 = vmatpush1.msra.mxu0 0.0
      %476 = vmatprep.subr.mxu0 0.0
      %477 = vmatpush1.msra.mxu0 0.0
      %478 = vmatprep.subr.mxu0 0.0
      %479 = vmatpush1.msra.mxu0 0.0
      %480 = vmatprep.subr.mxu0 0.0
      %481 = vmatpush1.msra.mxu0 0.0
      %482 = vmatprep.subr.mxu0 0.0
      %483 = vmatpush1.msra.mxu0 0.0
      %484 = vmatprep.subr.mxu0 0.0
      %485 = vmatpush1.msra.mxu0 0.0
      %486 = vmatprep.subr.mxu0 0.0
      %487 = vmatpush1.msra.mxu0 0.0
      %488 = vmatprep.subr.mxu0 0.0
      %489 = vmatpush1.msra.mxu0 0.0
      %490 = vmatprep.subr.mxu0 0.0
      %491 = vmatpush1.msra.mxu0 0.0
      %492 = vmatprep.subr.mxu0 0.0
      %493 = vmatpush1.msra.mxu0 0.0
      %494 = vmatprep.subr.mxu0 0.0
      %495 = vmatpush1.msra.mxu0 0.0
      %496 = vmatprep.mubr.f32.mxu0 0.0
      %497 = vmatmul.mubr.f32.gmra.mrb[0].mxu0 %v385
      %v498 = vpop.f32.mrb[0].mxu0
      %v499 = vadd.f32 %v306, %v498
      %v500 = vpop.f32.mrb[0].mxu0
      %v501 = vadd.f32 %v306, %v500
      %502 = vmatprep.mubr.f32.mxu0 0.0
      %503 = vmatmul.mubr.f32.gmra.mrb[0].mxu0 %v388
      %v504 = vpop.f32.mrb[0].mxu0
      %v505 = vadd.f32 %v311, %v504
      %v506 = vpop.f32.mrb[0].mxu0
      %v507 = vadd.f32 %v311, %v506
      %508 = vmatprep.mubr.f32.mxu0 0.0
      %509 = vmatmul.mubr.f32.gmra.mrb[0].mxu0 %v391
      %v510 = vpop.f32.mrb[0].mxu0
      %v511 = vadd.f32 %v316, %v510
      %v512 = vpop.f32.mrb[0].mxu0
      %v513 = vadd.f32 %v316, %v512
      %514 = vmatprep.mubr.f32.mxu0 0.0
      %515 = vmatmul.mubr.f32.gmra.mrb[0].mxu0 %v394
      %v516 = vpop.f32.mrb[0].mxu0
      %v517 = vadd.f32 %v321, %v516
      %v518 = vpop.f32.mrb[0].mxu0
      %v519 = vadd.f32 %v321, %v518
      %520 = vmatprep.mubr.f32.mxu0 0.0
      %521 = vmatmul.mubr.f32.gmra.mrb[0].mxu0 %v397
      %v522 = vpop.f32.mrb[0].mxu0
      %v523 = vadd.f32 %v326, %v522
      %v524 = vpop.f32.mrb[0].mxu0
      %v525 = vadd.f32 %v326, %v524
      %526 = vmatprep.mubr.f32.mxu0 0.0
      %527 = vmatmul.mubr.f32.gmra.mrb[0].mxu0 %v400
      %v528 = vpop.f32.mrb[0].mxu0
      %v529 = vadd.f32 %v331, %v528
      %v530 = vpop.f32.mrb[0].mxu0
      %v531 = vadd.f32 %v331, %v530
      %532 = vmatprep.mubr.f32.mxu0 0.0
      %533 = vmatmul.mubr.f32.gmra.mrb[0].mxu0 %v403
      %v534 = vpop.f32.mrb[0].mxu0
      %v535 = vadd.f32 %v336, %v534
      %v536 = vpop.f32.mrb[0].mxu0
      %v537 = vadd.f32 %v336, %v536
      %538 = vmatprep.mubr.f32.mxu0 0.0
      %539 = vmatmul.mubr.f32.gmra.mrb[0].mxu0 %v406
      %v540 = vpop.f32.mrb[0].mxu0
      %v541 = vadd.f32 %v341, %v540
      %v542 = vpop.f32.mrb[0].mxu0
      %v543 = vadd.f32 %v341, %v542
      %544 = vmatprep.mubr.f32.mxu0 0.0
      %545 = vmatmul.mubr.f32.gmra.mrb[0].mxu0 %v409
      %v546 = vpop.f32.mrb[0].mxu0
      %v547 = vadd.f32 %v346, %v546
      %v548 = vpop.f32.mrb[0].mxu0
      %v549 = vadd.f32 %v346, %v548
      %550 = vmatprep.mubr.f32.mxu0 0.0
      %551 = vmatmul.mubr.f32.gmra.mrb[0].mxu0 %v412
      %v552 = vpop.f32.mrb[0].mxu0
      %v553 = vadd.f32 %v351, %v552
      %v554 = vpop.f32.mrb[0].mxu0
      %v555 = vadd.f32 %v351, %v554
      %556 = vmatprep.mubr.f32.mxu0 0.0
      %557 = vmatmul.mubr.f32.gmra.mrb[0].mxu0 %v415
      %v558 = vpop.f32.mrb[0].mxu0
      %v559 = vadd.f32 %v356, %v558
      %v560 = vpop.f32.mrb[0].mxu0
      %v561 = vadd.f32 %v356, %v560
      %562 = vmatprep.mubr.f32.mxu0 0.0
      %563 = vmatmul.mubr.f32.gmra.mrb[0].mxu0 %v418
      %v564 = vpop.f32.mrb[0].mxu0
      %v565 = vadd.f32 %v361, %v564
      %v566 = vpop.f32.mrb[0].mxu0
      %v567 = vadd.f32 %v361, %v566
      %568 = vmatprep.mubr.f32.mxu0 0.0
      %569 = vmatmul.mubr.f32.gmra.mrb[0].mxu0 %v421
      %v570 = vpop.f32.mrb[0].mxu0
      %v571 = vadd.f32 %v366, %v570
      %v572 = vpop.f32.mrb[0].mxu0
      %v573 = vadd.f32 %v366, %v572
      %574 = vmatprep.mubr.f32.mxu0 0.0
      %575 = vmatmul.mubr.f32.gmra.mrb[0].mxu0 %v424
      %v576 = vpop.f32.mrb[0].mxu0
      %v577 = vadd.f32 %v371, %v576
      %v578 = vpop.f32.mrb[0].mxu0
      %v579 = vadd.f32 %v371, %v578
      %580 = vmatprep.mubr.f32.mxu0 0.0
      %581 = vmatmul.mubr.f32.gmra.mrb[0].mxu0 %v427
      %v582 = vpop.f32.mrb[0].mxu0
      %v583 = vadd.f32 %v376, %v582
      %v584 = vpop.f32.mrb[0].mxu0
      %v585 = vadd.f32 %v376, %v584
      %586 = vmatprep.mubr.f32.mxu0 0.0
      %587 = vmatmul.mubr.f32.gmra.mrb[0].mxu0 %v430
      %v588 = vpop.f32.mrb[0].mxu0
      %v589 = vadd.f32 %v381, %v588
      %v590 = vpop.f32.mrb[0].mxu0
      %v591 = vadd.f32 %v381, %v590
      %592 = vdwg.mxu0
      %593 = vmatprep.subr.mxu0 %v283
      %594 = vmatpush1.msra.mxu0 %v282
      %595 = vmatprep.subr.mxu0 0.0
      %596 = vmatpush1.msra.mxu0 0.0
      %597 = vmatprep.subr.mxu0 0.0
      %598 = vmatpush1.msra.mxu0 0.0
      %599 = vmatprep.subr.mxu0 0.0
      %600 = vmatpush1.msra.mxu0 0.0
      %601 = vmatprep.subr.mxu0 0.0
      %602 = vmatpush1.msra.mxu0 0.0
      %603 = vmatprep.subr.mxu0 0.0
      %604 = vmatpush1.msra.mxu0 0.0
      %605 = vmatprep.subr.mxu0 0.0
      %606 = vmatpush1.msra.mxu0 0.0
      %607 = vmatprep.subr.mxu0 0.0
      %608 = vmatpush1.msra.mxu0 0.0
      %609 = vmatprep.subr.mxu0 0.0
      %610 = vmatpush1.msra.mxu0 0.0
      %611 = vmatprep.subr.mxu0 0.0
      %612 = vmatpush1.msra.mxu0 0.0
      %613 = vmatprep.subr.mxu0 0.0
      %614 = vmatpush1.msra.mxu0 0.0
      %615 = vmatprep.subr.mxu0 0.0
      %616 = vmatpush1.msra.mxu0 0.0
      %617 = vmatprep.subr.mxu0 0.0
      %618 = vmatpush1.msra.mxu0 0.0
      %619 = vmatprep.subr.mxu0 0.0
      %620 = vmatpush1.msra.mxu0 0.0
      %621 = vmatprep.subr.mxu0 0.0
      %622 = vmatpush1.msra.mxu0 0.0
      %623 = vmatprep.subr.mxu0 0.0
      %624 = vmatpush1.msra.mxu0 0.0
      %625 = vmatprep.subr.mxu0 0.0
      %626 = vmatpush1.msra.mxu0 0.0
      %627 = vmatprep.subr.mxu0 0.0
      %628 = vmatpush1.msra.mxu0 0.0
      %629 = vmatprep.subr.mxu0 0.0
      %630 = vmatpush1.msra.mxu0 0.0
      %631 = vmatprep.subr.mxu0 0.0
      %632 = vmatpush1.msra.mxu0 0.0
      %633 = vmatprep.subr.mxu0 0.0
      %634 = vmatpush1.msra.mxu0 0.0
      %635 = vmatprep.subr.mxu0 0.0
      %636 = vmatpush1.msra.mxu0 0.0
      %637 = vmatprep.subr.mxu0 0.0
      %638 = vmatpush1.msra.mxu0 0.0
      %639 = vmatprep.subr.mxu0 0.0
      %640 = vmatpush1.msra.mxu0 0.0
      %641 = vmatprep.subr.mxu0 0.0
      %642 = vmatpush1.msra.mxu0 0.0
      %643 = vmatprep.subr.mxu0 0.0
      %644 = vmatpush1.msra.mxu0 0.0
      %645 = vmatprep.subr.mxu0 0.0
      %646 = vmatpush1.msra.mxu0 0.0
      %647 = vmatprep.subr.mxu0 0.0
      %648 = vmatpush1.msra.mxu0 0.0
      %649 = vmatprep.subr.mxu0 0.0
      %650 = vmatpush1.msra.mxu0 0.0
      %651 = vmatprep.subr.mxu0 0.0
      %652 = vmatpush1.msra.mxu0 0.0
      %653 = vmatprep.subr.mxu0 0.0
      %654 = vmatpush1.msra.mxu0 0.0
      %655 = vmatprep.subr.mxu0 0.0
      %656 = vmatpush1.msra.mxu0 0.0
      %657 = vmatprep.mubr.f32.mxu0 0.0
      %658 = vmatmul.mubr.f32.gmra.mrb[0].mxu0 %v385
      %v659 = vpop.f32.mrb[0].mxu0
      %v660 = vadd.f32 %v306, %v659
      %v661 = vpop.f32.mrb[0].mxu0
      %v662 = vadd.f32 %v306, %v661
      %663 = vmatprep.mubr.f32.mxu0 0.0
      %664 = vmatmul.mubr.f32.gmra.mrb[0].mxu0 %v388
      %v665 = vpop.f32.mrb[0].mxu0
      %v666 = vadd.f32 %v311, %v665
      %v667 = vpop.f32.mrb[0].mxu0
      %v668 = vadd.f32 %v311, %v667
      %669 = vmatprep.mubr.f32.mxu0 0.0
      %670 = vmatmul.mubr.f32.gmra.mrb[0].mxu0 %v391
      %v671 = vpop.f32.mrb[0].mxu0
      %v672 = vadd.f32 %v316, %v671
      %v673 = vpop.f32.mrb[0].mxu0
      %v674 = vadd.f32 %v316, %v673
      %675 = vmatprep.mubr.f32.mxu0 0.0
      %676 = vmatmul.mubr.f32.gmra.mrb[0].mxu0 %v394
      %v677 = vpop.f32.mrb[0].mxu0
      %v678 = vadd.f32 %v321, %v677
      %v679 = vpop.f32.mrb[0].mxu0
      %v680 = vadd.f32 %v321, %v679
      %681 = vmatprep.mubr.f32.mxu0 0.0
      %682 = vmatmul.mubr.f32.gmra.mrb[0].mxu0 %v397
      %v683 = vpop.f32.mrb[0].mxu0
      %v684 = vadd.f32 %v326, %v683
      %v685 = vpop.f32.mrb[0].mxu0
      %v686 = vadd.f32 %v326, %v685
      %687 = vmatprep.mubr.f32.mxu0 0.0
      %688 = vmatmul.mubr.f32.gmra.mrb[0].mxu0 %v400
      %v689 = vpop.f32.mrb[0].mxu0
      %v690 = vadd.f32 %v331, %v689
      %v691 = vpop.f32.mrb[0].mxu0
      %v692 = vadd.f32 %v331, %v691
      %693 = vmatprep.mubr.f32.mxu0 0.0
      %694 = vmatmul.mubr.f32.gmra.mrb[0].mxu0 %v403
      %v695 = vpop.f32.mrb[0].mxu0
      %v696 = vadd.f32 %v336, %v695
      %v697 = vpop.f32.mrb[0].mxu0
      %v698 = vadd.f32 %v336, %v697
      %699 = vmatprep.mubr.f32.mxu0 0.0
      %700 = vmatmul.mubr.f32.gmra.mrb[0].mxu0 %v406
      %v701 = vpop.f32.mrb[0].mxu0
      %v702 = vadd.f32 %v341, %v701
      %v703 = vpop.f32.mrb[0].mxu0
      %v704 = vadd.f32 %v341, %v703
      %705 = vmatprep.mubr.f32.mxu0 0.0
      %706 = vmatmul.mubr.f32.gmra.mrb[0].mxu0 %v409
      %v707 = vpop.f32.mrb[0].mxu0
      %v708 = vadd.f32 %v346, %v707
      %v709 = vpop.f32.mrb[0].mxu0
      %v710 = vadd.f32 %v346, %v709
      %711 = vmatprep.mubr.f32.mxu0 0.0
      %712 = vmatmul.mubr.f32.gmra.mrb[0].mxu0 %v412
      %v713 = vpop.f32.mrb[0].mxu0
      %v714 = vadd.f32 %v351, %v713
      %v715 = vpop.f32.mrb[0].mxu0
      %v716 = vadd.f32 %v351, %v715
      %717 = vmatprep.mubr.f32.mxu0 0.0
      %718 = vmatmul.mubr.f32.gmra.mrb[0].mxu0 %v415
      %v719 = vpop.f32.mrb[0].mxu0
      %v720 = vadd.f32 %v356, %v719
      %v721 = vpop.f32.mrb[0].mxu0
      %v722 = vadd.f32 %v356, %v721
      %723 = vmatprep.mubr.f32.mxu0 0.0
      %724 = vmatmul.mubr.f32.gmra.mrb[0].mxu0 %v418
      %v725 = vpop.f32.mrb[0].mxu0
      %v726 = vadd.f32 %v361, %v725
      %v727 = vpop.f32.mrb[0].mxu0
      %v728 = vadd.f32 %v361, %v727
      %729 = vmatprep.mubr.f32.mxu0 0.0
      %730 = vmatmul.mubr.f32.gmra.mrb[0].mxu0 %v421
      %v731 = vpop.f32.mrb[0].mxu0
      %v732 = vadd.f32 %v366, %v731
      %v733 = vpop.f32.mrb[0].mxu0
      %v734 = vadd.f32 %v366, %v733
      %735 = vmatprep.mubr.f32.mxu0 0.0
      %736 = vmatmul.mubr.f32.gmra.mrb[0].mxu0 %v424
      %v737 = vpop.f32.mrb[0].mxu0
      %v738 = vadd.f32 %v371, %v737
      %v739 = vpop.f32.mrb[0].mxu0
      %v740 = vadd.f32 %v371, %v739
      %741 = vmatprep.mubr.f32.mxu0 0.0
      %742 = vmatmul.mubr.f32.gmra.mrb[0].mxu0 %v427
      %v743 = vpop.f32.mrb[0].mxu0
      %v744 = vadd.f32 %v376, %v743
      %v745 = vpop.f32.mrb[0].mxu0
      %v746 = vadd.f32 %v376, %v745
      %747 = vmatprep.mubr.f32.mxu0 0.0
      %748 = vmatmul.mubr.f32.gmra.mrb[0].mxu0 %v430
      %v749 = vpop.f32.mrb[0].mxu0
      %v750 = vadd.f32 %v381, %v749
      %v751 = vpop.f32.mrb[0].mxu0
      %v752 = vadd.f32 %v381, %v751
      %753 = vdwg.mxu0
      %754 = vmatprep.subr.mxu0 %v285
      %755 = vmatpush1.msra.mxu0 %v284
      %756 = vmatprep.subr.mxu0 0.0
      %757 = vmatpush1.msra.mxu0 0.0
      %758 = vmatprep.subr.mxu0 0.0
      %759 = vmatpush1.msra.mxu0 0.0
      %760 = vmatprep.subr.mxu0 0.0
      %761 = vmatpush1.msra.mxu0 0.0
      %762 = vmatprep.subr.mxu0 0.0
      %763 = vmatpush1.msra.mxu0 0.0
      %764 = vmatprep.subr.mxu0 0.0
      %765 = vmatpush1.msra.mxu0 0.0
      %766 = vmatprep.subr.mxu0 0.0
      %767 = vmatpush1.msra.mxu0 0.0
      %768 = vmatprep.subr.mxu0 0.0
      %769 = vmatpush1.msra.mxu0 0.0
      %770 = vmatprep.subr.mxu0 0.0
      %771 = vmatpush1.msra.mxu0 0.0
      %772 = vmatprep.subr.mxu0 0.0
      %773 = vmatpush1.msra.mxu0 0.0
      %774 = vmatprep.subr.mxu0 0.0
      %775 = vmatpush1.msra.mxu0 0.0
      %776 = vmatprep.subr.mxu0 0.0
      %777 = vmatpush1.msra.mxu0 0.0
      %778 = vmatprep.subr.mxu0 0.0
      %779 = vmatpush1.msra.mxu0 0.0
      %780 = vmatprep.subr.mxu0 0.0
      %781 = vmatpush1.msra.mxu0 0.0
      %782 = vmatprep.subr.mxu0 0.0
      %783 = vmatpush1.msra.mxu0 0.0
      %784 = vmatprep.subr.mxu0 0.0
      %785 = vmatpush1.msra.mxu0 0.0
      %786 = vmatprep.subr.mxu0 0.0
      %787 = vmatpush1.msra.mxu0 0.0
      %788 = vmatprep.subr.mxu0 0.0
      %789 = vmatpush1.msra.mxu0 0.0
      %790 = vmatprep.subr.mxu0 0.0
      %791 = vmatpush1.msra.mxu0 0.0
      %792 = vmatprep.subr.mxu0 0.0
      %793 = vmatpush1.msra.mxu0 0.0
      %794 = vmatprep.subr.mxu0 0.0
      %795 = vmatpush1.msra.mxu0 0.0
      %796 = vmatprep.subr.mxu0 0.0
      %797 = vmatpush1.msra.mxu0 0.0
      %798 = vmatprep.subr.mxu0 0.0
      %799 = vmatpush1.msra.mxu0 0.0
      %800 = vmatprep.subr.mxu0 0.0
      %801 = vmatpush1.msra.mxu0 0.0
      %802 = vmatprep.subr.mxu0 0.0
      %803 = vmatpush1.msra.mxu0 0.0
      %804 = vmatprep.subr.mxu0 0.0
      %805 = vmatpush1.msra.mxu0 0.0
      %806 = vmatprep.subr.mxu0 0.0
      %807 = vmatpush1.msra.mxu0 0.0
      %808 = vmatprep.subr.mxu0 0.0
      %809 = vmatpush1.msra.mxu0 0.0
      %810 = vmatprep.subr.mxu0 0.0
      %811 = vmatpush1.msra.mxu0 0.0
      %812 = vmatprep.subr.mxu0 0.0
      %813 = vmatpush1.msra.mxu0 0.0
      %814 = vmatprep.subr.mxu0 0.0
      %815 = vmatpush1.msra.mxu0 0.0
      %816 = vmatprep.subr.mxu0 0.0
      %817 = vmatpush1.msra.mxu0 0.0
      %818 = vmatprep.mubr.f32.mxu0 0.0
      %819 = vmatmul.mubr.f32.gmra.mrb[0].mxu0 %v385
      %v820 = vpop.f32.mrb[0].mxu0
      %v821 = vadd.f32 %v306, %v820
      %v822 = vpop.f32.mrb[0].mxu0
      %v823 = vadd.f32 %v306, %v822
      %824 = vmatprep.mubr.f32.mxu0 0.0
      %825 = vmatmul.mubr.f32.gmra.mrb[0].mxu0 %v388
      %v826 = vpop.f32.mrb[0].mxu0
      %v827 = vadd.f32 %v311, %v826
      %v828 = vpop.f32.mrb[0].mxu0
      %v829 = vadd.f32 %v311, %v828
      %830 = vmatprep.mubr.f32.mxu0 0.0
      %831 = vmatmul.mubr.f32.gmra.mrb[0].mxu0 %v391
      %v832 = vpop.f32.mrb[0].mxu0
      %v833 = vadd.f32 %v316, %v832
      %v834 = vpop.f32.mrb[0].mxu0
      %v835 = vadd.f32 %v316, %v834
      %836 = vmatprep.mubr.f32.mxu0 0.0
      %837 = vmatmul.mubr.f32.gmra.mrb[0].mxu0 %v394
      %v838 = vpop.f32.mrb[0].mxu0
      %v839 = vadd.f32 %v321, %v838
      %v840 = vpop.f32.mrb[0].mxu0
      %v841 = vadd.f32 %v321, %v840
      %842 = vmatprep.mubr.f32.mxu0 0.0
      %843 = vmatmul.mubr.f32.gmra.mrb[0].mxu0 %v397
      %v844 = vpop.f32.mrb[0].mxu0
      %v845 = vadd.f32 %v326, %v844
      %v846 = vpop.f32.mrb[0].mxu0
      %v847 = vadd.f32 %v326, %v846
      %848 = vmatprep.mubr.f32.mxu0 0.0
      %849 = vmatmul.mubr.f32.gmra.mrb[0].mxu0 %v400
      %v850 = vpop.f32.mrb[0].mxu0
      %v851 = vadd.f32 %v331, %v850
      %v852 = vpop.f32.mrb[0].mxu0
      %v853 = vadd.f32 %v331, %v852
      %854 = vmatprep.mubr.f32.mxu0 0.0
      %855 = vmatmul.mubr.f32.gmra.mrb[0].mxu0 %v403
      %v856 = vpop.f32.mrb[0].mxu0
      %v857 = vadd.f32 %v336, %v856
      %v858 = vpop.f32.mrb[0].mxu0
      %v859 = vadd.f32 %v336, %v858
      %860 = vmatprep.mubr.f32.mxu0 0.0
      %861 = vmatmul.mubr.f32.gmra.mrb[0].mxu0 %v406
      %v862 = vpop.f32.mrb[0].mxu0
      %v863 = vadd.f32 %v341, %v862
      %v864 = vpop.f32.mrb[0].mxu0
      %v865 = vadd.f32 %v341, %v864
      %866 = vmatprep.mubr.f32.mxu0 0.0
      %867 = vmatmul.mubr.f32.gmra.mrb[0].mxu0 %v409
      %v868 = vpop.f32.mrb[0].mxu0
      %v869 = vadd.f32 %v346, %v868
      %v870 = vpop.f32.mrb[0].mxu0
      %v871 = vadd.f32 %v346, %v870
      %872 = vmatprep.mubr.f32.mxu0 0.0
      %873 = vmatmul.mubr.f32.gmra.mrb[0].mxu0 %v412
      %v874 = vpop.f32.mrb[0].mxu0
      %v875 = vadd.f32 %v351, %v874
      %v876 = vpop.f32.mrb[0].mxu0
      %v877 = vadd.f32 %v351, %v876
      %878 = vmatprep.mubr.f32.mxu0 0.0
      %879 = vmatmul.mubr.f32.gmra.mrb[0].mxu0 %v415
      %v880 = vpop.f32.mrb[0].mxu0
      %v881 = vadd.f32 %v356, %v880
      %v882 = vpop.f32.mrb[0].mxu0
      %v883 = vadd.f32 %v356, %v882
      %884 = vmatprep.mubr.f32.mxu0 0.0
      %885 = vmatmul.mubr.f32.gmra.mrb[0].mxu0 %v418
      %v886 = vpop.f32.mrb[0].mxu0
      %v887 = vadd.f32 %v361, %v886
      %v888 = vpop.f32.mrb[0].mxu0
      %v889 = vadd.f32 %v361, %v888
      %890 = vmatprep.mubr.f32.mxu0 0.0
      %891 = vmatmul.mubr.f32.gmra.mrb[0].mxu0 %v421
      %v892 = vpop.f32.mrb[0].mxu0
      %v893 = vadd.f32 %v366, %v892
      %v894 = vpop.f32.mrb[0].mxu0
      %v895 = vadd.f32 %v366, %v894
      %896 = vmatprep.mubr.f32.mxu0 0.0
      %897 = vmatmul.mubr.f32.gmra.mrb[0].mxu0 %v424
      %v898 = vpop.f32.mrb[0].mxu0
      %v899 = vadd.f32 %v371, %v898
      %v900 = vpop.f32.mrb[0].mxu0
      %v901 = vadd.f32 %v371, %v900
      %902 = vmatprep.mubr.f32.mxu0 0.0
      %903 = vmatmul.mubr.f32.gmra.mrb[0].mxu0 %v427
      %v904 = vpop.f32.mrb[0].mxu0
      %v905 = vadd.f32 %v376, %v904
      %v906 = vpop.f32.mrb[0].mxu0
      %v907 = vadd.f32 %v376, %v906
      %908 = vmatprep.mubr.f32.mxu0 0.0
      %909 = vmatmul.mubr.f32.gmra.mrb[0].mxu0 %v430
      %v910 = vpop.f32.mrb[0].mxu0
      %v911 = vadd.f32 %v381, %v910
      %v912 = vpop.f32.mrb[0].mxu0
      %v913 = vadd.f32 %v381, %v912
      %914 = vdwg.mxu0
      %915 = vmatprep.subr.mxu0 0.0
      %916 = vmatpush1.msra.mxu0 %v286
      %917 = vmatprep.subr.mxu0 0.0
      %918 = vmatpush1.msra.mxu0 0.0
      %919 = vmatprep.subr.mxu0 0.0
      %920 = vmatpush1.msra.mxu0 0.0
      %921 = vmatprep.subr.mxu0 0.0
      %922 = vmatpush1.msra.mxu0 0.0
      %923 = vmatprep.subr.mxu0 0.0
      %924 = vmatpush1.msra.mxu0 0.0
      %925 = vmatprep.subr.mxu0 0.0
      %926 = vmatpush1.msra.mxu0 0.0
      %927 = vmatprep.subr.mxu0 0.0
      %928 = vmatpush1.msra.mxu0 0.0
      %929 = vmatprep.subr.mxu0 0.0
      %930 = vmatpush1.msra.mxu0 0.0
      %931 = vmatprep.subr.mxu0 0.0
      %932 = vmatpush1.msra.mxu0 0.0
      %933 = vmatprep.subr.mxu0 0.0
      %934 = vmatpush1.msra.mxu0 0.0
      %935 = vmatprep.subr.mxu0 0.0
      %936 = vmatpush1.msra.mxu0 0.0
      %937 = vmatprep.subr.mxu0 0.0
      %938 = vmatpush1.msra.mxu0 0.0
      %939 = vmatprep.subr.mxu0 0.0
      %940 = vmatpush1.msra.mxu0 0.0
      %941 = vmatprep.subr.mxu0 0.0
      %942 = vmatpush1.msra.mxu0 0.0
      %943 = vmatprep.subr.mxu0 0.0
      %944 = vmatpush1.msra.mxu0 0.0
      %945 = vmatprep.subr.mxu0 0.0
      %946 = vmatpush1.msra.mxu0 0.0
      %947 = vmatprep.subr.mxu0 0.0
      %948 = vmatpush1.msra.mxu0 0.0
      %949 = vmatprep.subr.mxu0 0.0
      %950 = vmatpush1.msra.mxu0 0.0
      %951 = vmatprep.subr.mxu0 0.0
      %952 = vmatpush1.msra.mxu0 0.0
      %953 = vmatprep.subr.mxu0 0.0
      %954 = vmatpush1.msra.mxu0 0.0
      %955 = vmatprep.subr.mxu0 0.0
      %956 = vmatpush1.msra.mxu0 0.0
      %957 = vmatprep.subr.mxu0 0.0
      %958 = vmatpush1.msra.mxu0 0.0
      %959 = vmatprep.subr.mxu0 0.0
      %960 = vmatpush1.msra.mxu0 0.0
      %961 = vmatprep.subr.mxu0 0.0
      %962 = vmatpush1.msra.mxu0 0.0
      %963 = vmatprep.subr.mxu0 0.0
      %964 = vmatpush1.msra.mxu0 0.0
      %965 = vmatprep.subr.mxu0 0.0
      %966 = vmatpush1.msra.mxu0 0.0
      %967 = vmatprep.subr.mxu0 0.0
      %968 = vmatpush1.msra.mxu0 0.0
      %969 = vmatprep.subr.mxu0 0.0
      %970 = vmatpush1.msra.mxu0 0.0
      %971 = vmatprep.subr.mxu0 0.0
      %972 = vmatpush1.msra.mxu0 0.0
      %973 = vmatprep.subr.mxu0 0.0
      %974 = vmatpush1.msra.mxu0 0.0
      %975 = vmatprep.subr.mxu0 0.0
      %976 = vmatpush1.msra.mxu0 0.0
      %977 = vmatprep.subr.mxu0 0.0
      %978 = vmatpush1.msra.mxu0 0.0
      %979 = vmatprep.mubr.f32.mxu0 0.0
      %980 = vmatmul.mubr.f32.gmra.mrb[0].mxu0 %v385
      %v981 = vpop.f32.mrb[0].mxu0
      %v982 = vadd.f32 %v306, %v981
      %v983 = vpop.f32.mrb[0].mxu0
      %984 = vmatprep.mubr.f32.mxu0 0.0
      %985 = vmatmul.mubr.f32.gmra.mrb[0].mxu0 %v388
      %v986 = vpop.f32.mrb[0].mxu0
      %v987 = vadd.f32 %v311, %v986
      %v988 = vpop.f32.mrb[0].mxu0
      %989 = vmatprep.mubr.f32.mxu0 0.0
      %990 = vmatmul.mubr.f32.gmra.mrb[0].mxu0 %v391
      %v991 = vpop.f32.mrb[0].mxu0
      %v992 = vadd.f32 %v316, %v991
      %v993 = vpop.f32.mrb[0].mxu0
      %994 = vmatprep.mubr.f32.mxu0 0.0
      %995 = vmatmul.mubr.f32.gmra.mrb[0].mxu0 %v394
      %v996 = vpop.f32.mrb[0].mxu0
      %v997 = vadd.f32 %v321, %v996
      %v998 = vpop.f32.mrb[0].mxu0
      %999 = vmatprep.mubr.f32.mxu0 0.0
      %1000 = vmatmul.mubr.f32.gmra.mrb[0].mxu0 %v397
      %v1001 = vpop.f32.mrb[0].mxu0
      %v1002 = vadd.f32 %v326, %v1001
      %v1003 = vpop.f32.mrb[0].mxu0
      %1004 = vmatprep.mubr.f32.mxu0 0.0
      %1005 = vmatmul.mubr.f32.gmra.mrb[0].mxu0 %v400
      %v1006 = vpop.f32.mrb[0].mxu0
      %v1007 = vadd.f32 %v331, %v1006
      %v1008 = vpop.f32.mrb[0].mxu0
      %1009 = vmatprep.mubr.f32.mxu0 0.0
      %1010 = vmatmul.mubr.f32.gmra.mrb[0].mxu0 %v403
      %v1011 = vpop.f32.mrb[0].mxu0
      %v1012 = vadd.f32 %v336, %v1011
      %v1013 = vpop.f32.mrb[0].mxu0
      %1014 = vmatprep.mubr.f32.mxu0 0.0
      %1015 = vmatmul.mubr.f32.gmra.mrb[0].mxu0 %v406
      %v1016 = vpop.f32.mrb[0].mxu0
      %v1017 = vadd.f32 %v341, %v1016
      %v1018 = vpop.f32.mrb[0].mxu0
      %1019 = vmatprep.mubr.f32.mxu0 0.0
      %1020 = vmatmul.mubr.f32.gmra.mrb[0].mxu0 %v409
      %v1021 = vpop.f32.mrb[0].mxu0
      %v1022 = vadd.f32 %v346, %v1021
      %v1023 = vpop.f32.mrb[0].mxu0
      %1024 = vmatprep.mubr.f32.mxu0 0.0
      %1025 = vmatmul.mubr.f32.gmra.mrb[0].mxu0 %v412
      %v1026 = vpop.f32.mrb[0].mxu0
      %v1027 = vadd.f32 %v351, %v1026
      %v1028 = vpop.f32.mrb[0].mxu0
      %1029 = vmatprep.mubr.f32.mxu0 0.0
      %1030 = vmatmul.mubr.f32.gmra.mrb[0].mxu0 %v415
      %v1031 = vpop.f32.mrb[0].mxu0
      %v1032 = vadd.f32 %v356, %v1031
      %v1033 = vpop.f32.mrb[0].mxu0
      %1034 = vmatprep.mubr.f32.mxu0 0.0
      %1035 = vmatmul.mubr.f32.gmra.mrb[0].mxu0 %v418
      %v1036 = vpop.f32.mrb[0].mxu0
      %v1037 = vadd.f32 %v361, %v1036
      %v1038 = vpop.f32.mrb[0].mxu0
      %1039 = vmatprep.mubr.f32.mxu0 0.0
      %1040 = vmatmul.mubr.f32.gmra.mrb[0].mxu0 %v421
      %v1041 = vpop.f32.mrb[0].mxu0
      %v1042 = vadd.f32 %v366, %v1041
      %v1043 = vpop.f32.mrb[0].mxu0
      %1044 = vmatprep.mubr.f32.mxu0 0.0
      %1045 = vmatmul.mubr.f32.gmra.mrb[0].mxu0 %v424
      %v1046 = vpop.f32.mrb[0].mxu0
      %v1047 = vadd.f32 %v371, %v1046
      %v1048 = vpop.f32.mrb[0].mxu0
      %1049 = vmatprep.mubr.f32.mxu0 0.0
      %1050 = vmatmul.mubr.f32.gmra.mrb[0].mxu0 %v427
      %v1051 = vpop.f32.mrb[0].mxu0
      %v1052 = vadd.f32 %v376, %v1051
      %v1053 = vpop.f32.mrb[0].mxu0
      %1054 = vmatprep.mubr.f32.mxu0 0.0
      %1055 = vmatmul.mubr.f32.gmra.mrb[0].mxu0 %v430
      %v1056 = vpop.f32.mrb[0].mxu0
      %v1057 = vadd.f32 %v381, %v1056
      %v1058 = vpop.f32.mrb[0].mxu0
      %1059 = vdwg.mxu0
      %v1060 = vmul.f32 %v499, 0.5
      %v1061 = vmul.f32 %v501, 0.5
      %v1062 = vmul.f32 %v660, 0.5
      %v1063 = vmul.f32 %v662, 0.5
      %v1064 = vmul.f32 %v821, 0.5
      %v1065 = vmul.f32 %v823, 0.5
      %v1066 = vmul.f32 %v982, 0.5
      %v1067 = vmul.f32 %v505, 0.5
      %v1068 = vmul.f32 %v507, 0.5
      %v1069 = vmul.f32 %v666, 0.5
      %v1070 = vmul.f32 %v668, 0.5
      %v1071 = vmul.f32 %v827, 0.5
      %v1072 = vmul.f32 %v829, 0.5
      %v1073 = vmul.f32 %v987, 0.5
      %v1074 = vmul.f32 %v511, 0.5
      %v1075 = vmul.f32 %v513, 0.5
      %v1076 = vmul.f32 %v672, 0.5
      %v1077 = vmul.f32 %v674, 0.5
      %v1078 = vmul.f32 %v833, 0.5
      %v1079 = vmul.f32 %v835, 0.5
      %v1080 = vmul.f32 %v992, 0.5
      %v1081 = vmul.f32 %v517, 0.5
      %v1082 = vmul.f32 %v519, 0.5
      %v1083 = vmul.f32 %v678, 0.5
      %v1084 = vmul.f32 %v680, 0.5
      %v1085 = vmul.f32 %v839, 0.5
      %v1086 = vmul.f32 %v841, 0.5
      %v1087 = vmul.f32 %v997, 0.5
      %v1088 = vmul.f32 %v523, 0.5
      %v1089 = vmul.f32 %v525, 0.5
      %v1090 = vmul.f32 %v684, 0.5
      %v1091 = vmul.f32 %v686, 0.5
      %v1092 = vmul.f32 %v845, 0.5
      %v1093 = vmul.f32 %v847, 0.5
      %v1094 = vmul.f32 %v1002, 0.5
      %v1095 = vmul.f32 %v529, 0.5
      %v1096 = vmul.f32 %v531, 0.5
      %v1097 = vmul.f32 %v690, 0.5
      %v1098 = vmul.f32 %v692, 0.5
      %v1099 = vmul.f32 %v851, 0.5
      %v1100 = vmul.f32 %v853, 0.5
      %v1101 = vmul.f32 %v1007, 0.5
      %v1102 = vmul.f32 %v535, 0.5
      %v1103 = vmul.f32 %v537, 0.5
      %v1104 = vmul.f32 %v696, 0.5
      %v1105 = vmul.f32 %v698, 0.5
      %v1106 = vmul.f32 %v857, 0.5
      %v1107 = vmul.f32 %v859, 0.5
      %v1108 = vmul.f32 %v1012, 0.5
      %v1109 = vmul.f32 %v541, 0.5
      %v1110 = vmul.f32 %v543, 0.5
      %v1111 = vmul.f32 %v702, 0.5
      %v1112 = vmul.f32 %v704, 0.5
      %v1113 = vmul.f32 %v863, 0.5
      %v1114 = vmul.f32 %v865, 0.5
      %v1115 = vmul.f32 %v1017, 0.5
      %v1116 = vmul.f32 %v547, 0.5
      %v1117 = vmul.f32 %v549, 0.5
      %v1118 = vmul.f32 %v708, 0.5
      %v1119 = vmul.f32 %v710, 0.5
      %v1120 = vmul.f32 %v869, 0.5
      %v1121 = vmul.f32 %v871, 0.5
      %v1122 = vmul.f32 %v1022, 0.5
      %v1123 = vmul.f32 %v553, 0.5
      %v1124 = vmul.f32 %v555, 0.5
      %v1125 = vmul.f32 %v714, 0.5
      %v1126 = vmul.f32 %v716, 0.5
      %v1127 = vmul.f32 %v875, 0.5
      %v1128 = vmul.f32 %v877, 0.5
      %v1129 = vmul.f32 %v1027, 0.5
      %v1130 = vmul.f32 %v559, 0.5
      %v1131 = vmul.f32 %v561, 0.5
      %v1132 = vmul.f32 %v720, 0.5
      %v1133 = vmul.f32 %v722, 0.5
      %v1134 = vmul.f32 %v881, 0.5
      %v1135 = vmul.f32 %v883, 0.5
      %v1136 = vmul.f32 %v1032, 0.5
      %v1137 = vmul.f32 %v565, 0.5
      %v1138 = vmul.f32 %v567, 0.5
      %v1139 = vmul.f32 %v726, 0.5
      %v1140 = vmul.f32 %v728, 0.5
      %v1141 = vmul.f32 %v887, 0.5
      %v1142 = vmul.f32 %v889, 0.5
      %v1143 = vmul.f32 %v1037, 0.5
      %v1144 = vmul.f32 %v571, 0.5
      %v1145 = vmul.f32 %v573, 0.5
      %v1146 = vmul.f32 %v732, 0.5
      %v1147 = vmul.f32 %v734, 0.5
      %v1148 = vmul.f32 %v893, 0.5
      %v1149 = vmul.f32 %v895, 0.5
      %v1150 = vmul.f32 %v1042, 0.5
      %v1151 = vmul.f32 %v577, 0.5
      %v1152 = vmul.f32 %v579, 0.5
      %v1153 = vmul.f32 %v738, 0.5
      %v1154 = vmul.f32 %v740, 0.5
      %v1155 = vmul.f32 %v899, 0.5
      %v1156 = vmul.f32 %v901, 0.5
      %v1157 = vmul.f32 %v1047, 0.5
      %v1158 = vmul.f32 %v583, 0.5
      %v1159 = vmul.f32 %v585, 0.5
      %v1160 = vmul.f32 %v744, 0.5
      %v1161 = vmul.f32 %v746, 0.5
      %v1162 = vmul.f32 %v905, 0.5
      %v1163 = vmul.f32 %v907, 0.5
      %v1164 = vmul.f32 %v1052, 0.5
      %v1165 = vmul.f32 %v589, 0.5
      %v1166 = vmul.f32 %v591, 0.5
      %v1167 = vmul.f32 %v750, 0.5
      %v1168 = vmul.f32 %v752, 0.5
      %v1169 = vmul.f32 %v911, 0.5
      %v1170 = vmul.f32 %v913, 0.5
      %v1171 = vmul.f32 %v1057, 0.5
      %v1172 = vmul.f32 %v499, 0.70710677
      %v1173 = vmul.f32 %v501, 0.70710677
      %v1174 = vmul.f32 %v660, 0.70710677
      %v1175 = vmul.f32 %v662, 0.70710677
      %v1176 = vmul.f32 %v821, 0.70710677
      %v1177 = vmul.f32 %v823, 0.70710677
      %v1178 = vmul.f32 %v982, 0.70710677
      %v1179 = vmul.f32 %v505, 0.70710677
      %v1180 = vmul.f32 %v507, 0.70710677
      %v1181 = vmul.f32 %v666, 0.70710677
      %v1182 = vmul.f32 %v668, 0.70710677
      %v1183 = vmul.f32 %v827, 0.70710677
      %v1184 = vmul.f32 %v829, 0.70710677
      %v1185 = vmul.f32 %v987, 0.70710677
      %v1186 = vmul.f32 %v511, 0.70710677
      %v1187 = vmul.f32 %v513, 0.70710677
      %v1188 = vmul.f32 %v672, 0.70710677
      %v1189 = vmul.f32 %v674, 0.70710677
      %v1190 = vmul.f32 %v833, 0.70710677
      %v1191 = vmul.f32 %v835, 0.70710677
      %v1192 = vmul.f32 %v992, 0.70710677
      %v1193 = vmul.f32 %v517, 0.70710677
      %v1194 = vmul.f32 %v519, 0.70710677
      %v1195 = vmul.f32 %v678, 0.70710677
      %v1196 = vmul.f32 %v680, 0.70710677
      %v1197 = vmul.f32 %v839, 0.70710677
      %v1198 = vmul.f32 %v841, 0.70710677
      %v1199 = vmul.f32 %v997, 0.70710677
      %v1200 = vmul.f32 %v523, 0.70710677
      %v1201 = vmul.f32 %v525, 0.70710677
      %v1202 = vmul.f32 %v684, 0.70710677
      %v1203 = vmul.f32 %v686, 0.70710677
      %v1204 = vmul.f32 %v845, 0.70710677
      %v1205 = vmul.f32 %v847, 0.70710677
      %v1206 = vmul.f32 %v1002, 0.70710677
      %v1207 = vmul.f32 %v529, 0.70710677
      %v1208 = vmul.f32 %v531, 0.70710677
      %v1209 = vmul.f32 %v690, 0.70710677
      %v1210 = vmul.f32 %v692, 0.70710677
      %v1211 = vmul.f32 %v851, 0.70710677
      %v1212 = vmul.f32 %v853, 0.70710677
      %v1213 = vmul.f32 %v1007, 0.70710677
      %v1214 = vmul.f32 %v535, 0.70710677
      %v1215 = vmul.f32 %v537, 0.70710677
      %v1216 = vmul.f32 %v696, 0.70710677
      %v1217 = vmul.f32 %v698, 0.70710677
      %v1218 = vmul.f32 %v857, 0.70710677
      %v1219 = vmul.f32 %v859, 0.70710677
      %v1220 = vmul.f32 %v1012, 0.70710677
      %v1221 = vmul.f32 %v541, 0.70710677
      %v1222 = vmul.f32 %v543, 0.70710677
      %v1223 = vmul.f32 %v702, 0.70710677
      %v1224 = vmul.f32 %v704, 0.70710677
      %v1225 = vmul.f32 %v863, 0.70710677
      %v1226 = vmul.f32 %v865, 0.70710677
      %v1227 = vmul.f32 %v1017, 0.70710677
      %v1228 = vmul.f32 %v547, 0.70710677
      %v1229 = vmul.f32 %v549, 0.70710677
      %v1230 = vmul.f32 %v708, 0.70710677
      %v1231 = vmul.f32 %v710, 0.70710677
      %v1232 = vmul.f32 %v869, 0.70710677
      %v1233 = vmul.f32 %v871, 0.70710677
      %v1234 = vmul.f32 %v1022, 0.70710677
      %v1235 = vmul.f32 %v553, 0.70710677
      %v1236 = vmul.f32 %v555, 0.70710677
      %v1237 = vmul.f32 %v714, 0.70710677
      %v1238 = vmul.f32 %v716, 0.70710677
      %v1239 = vmul.f32 %v875, 0.70710677
      %v1240 = vmul.f32 %v877, 0.70710677
      %v1241 = vmul.f32 %v1027, 0.70710677
      %v1242 = vmul.f32 %v559, 0.70710677
      %v1243 = vmul.f32 %v561, 0.70710677
      %v1244 = vmul.f32 %v720, 0.70710677
      %v1245 = vmul.f32 %v722, 0.70710677
      %v1246 = vmul.f32 %v881, 0.70710677
      %v1247 = vmul.f32 %v883, 0.70710677
      %v1248 = vmul.f32 %v1032, 0.70710677
      %v1249 = vmul.f32 %v565, 0.70710677
      %v1250 = vmul.f32 %v567, 0.70710677
      %v1251 = vmul.f32 %v726, 0.70710677
      %v1252 = vmul.f32 %v728, 0.70710677
      %v1253 = vmul.f32 %v887, 0.70710677
      %v1254 = vmul.f32 %v889, 0.70710677
      %v1255 = vmul.f32 %v1037, 0.70710677
      %v1256 = vmul.f32 %v571, 0.70710677
      %v1257 = vmul.f32 %v573, 0.70710677
      %v1258 = vmul.f32 %v732, 0.70710677
      %v1259 = vmul.f32 %v734, 0.70710677
      %v1260 = vmul.f32 %v893, 0.70710677
      %v1261 = vmul.f32 %v895, 0.70710677
      %v1262 = vmul.f32 %v1042, 0.70710677
      %v1263 = vmul.f32 %v577, 0.70710677
      %v1264 = vmul.f32 %v579, 0.70710677
      %v1265 = vmul.f32 %v738, 0.70710677
      %v1266 = vmul.f32 %v740, 0.70710677
      %v1267 = vmul.f32 %v899, 0.70710677
      %v1268 = vmul.f32 %v901, 0.70710677
      %v1269 = vmul.f32 %v1047, 0.70710677
      %v1270 = vmul.f32 %v583, 0.70710677
      %v1271 = vmul.f32 %v585, 0.70710677
      %v1272 = vmul.f32 %v744, 0.70710677
      %v1273 = vmul.f32 %v746, 0.70710677
      %v1274 = vmul.f32 %v905, 0.70710677
      %v1275 = vmul.f32 %v907, 0.70710677
      %v1276 = vmul.f32 %v1052, 0.70710677
      %v1277 = vmul.f32 %v589, 0.70710677
      %v1278 = vmul.f32 %v591, 0.70710677
      %v1279 = vmul.f32 %v750, 0.70710677
      %v1280 = vmul.f32 %v752, 0.70710677
      %v1281 = vmul.f32 %v911, 0.70710677
      %v1282 = vmul.f32 %v913, 0.70710677
      %v1283 = vmul.f32 %v1057, 0.70710677
      %v1284 = verf.f32.pop %v1172
      %v1285 = verf.f32.pop %v1173
      %v1286 = verf.f32.pop %v1174
      %v1287 = verf.f32.pop %v1175
      %v1288 = verf.f32.pop %v1176
      %v1289 = verf.f32.pop %v1177
      %v1290 = verf.f32.pop %v1178
      %v1291 = verf.f32.pop %v1179
      %v1292 = verf.f32.pop %v1180
      %v1293 = verf.f32.pop %v1181
      %v1294 = verf.f32.pop %v1182
      %v1295 = verf.f32.pop %v1183
      %v1296 = verf.f32.pop %v1184
      %v1297 = verf.f32.pop %v1185
      %v1298 = verf.f32.pop %v1186
      %v1299 = verf.f32.pop %v1187
      %v1300 = verf.f32.pop %v1188
      %v1301 = verf.f32.pop %v1189
      %v1302 = verf.f32.pop %v1190
      %v1303 = verf.f32.pop %v1191
      %v1304 = verf.f32.pop %v1192
      %v1305 = verf.f32.pop %v1193
      %v1306 = verf.f32.pop %v1194
      %v1307 = verf.f32.pop %v1195
      %v1308 = verf.f32.pop %v1196
      %v1309 = verf.f32.pop %v1197
      %v1310 = verf.f32.pop %v1198
      %v1311 = verf.f32.pop %v1199
      %v1312 = verf.f32.pop %v1200
      %v1313 = verf.f32.pop %v1201
      %v1314 = verf.f32.pop %v1202
      %v1315 = verf.f32.pop %v1203
      %v1316 = verf.f32.pop %v1204
      %v1317 = verf.f32.pop %v1205
      %v1318 = verf.f32.pop %v1206
      %v1319 = verf.f32.pop %v1207
      %v1320 = verf.f32.pop %v1208
      %v1321 = verf.f32.pop %v1209
      %v1322 = verf.f32.pop %v1210
      %v1323 = verf.f32.pop %v1211
      %v1324 = verf.f32.pop %v1212
      %v1325 = verf.f32.pop %v1213
      %v1326 = verf.f32.pop %v1214
      %v1327 = verf.f32.pop %v1215
      %v1328 = verf.f32.pop %v1216
      %v1329 = verf.f32.pop %v1217
      %v1330 = verf.f32.pop %v1218
      %v1331 = verf.f32.pop %v1219
      %v1332 = verf.f32.pop %v1220
      %v1333 = verf.f32.pop %v1221
      %v1334 = verf.f32.pop %v1222
      %v1335 = verf.f32.pop %v1223
      %v1336 = verf.f32.pop %v1224
      %v1337 = verf.f32.pop %v1225
      %v1338 = verf.f32.pop %v1226
      %v1339 = verf.f32.pop %v1227
      %v1340 = verf.f32.pop %v1228
      %v1341 = verf.f32.pop %v1229
      %v1342 = verf.f32.pop %v1230
      %v1343 = verf.f32.pop %v1231
      %v1344 = verf.f32.pop %v1232
      %v1345 = verf.f32.pop %v1233
      %v1346 = verf.f32.pop %v1234
      %v1347 = verf.f32.pop %v1235
      %v1348 = verf.f32.pop %v1236
      %v1349 = verf.f32.pop %v1237
      %v1350 = verf.f32.pop %v1238
      %v1351 = verf.f32.pop %v1239
      %v1352 = verf.f32.pop %v1240
      %v1353 = verf.f32.pop %v1241
      %v1354 = verf.f32.pop %v1242
      %v1355 = verf.f32.pop %v1243
      %v1356 = verf.f32.pop %v1244
      %v1357 = verf.f32.pop %v1245
      %v1358 = verf.f32.pop %v1246
      %v1359 = verf.f32.pop %v1247
      %v1360 = verf.f32.pop %v1248
      %v1361 = verf.f32.pop %v1249
      %v1362 = verf.f32.pop %v1250
      %v1363 = verf.f32.pop %v1251
      %v1364 = verf.f32.pop %v1252
      %v1365 = verf.f32.pop %v1253
      %v1366 = verf.f32.pop %v1254
      %v1367 = verf.f32.pop %v1255
      %v1368 = verf.f32.pop %v1256
      %v1369 = verf.f32.pop %v1257
      %v1370 = verf.f32.pop %v1258
      %v1371 = verf.f32.pop %v1259
      %v1372 = verf.f32.pop %v1260
      %v1373 = verf.f32.pop %v1261
      %v1374 = verf.f32.pop %v1262
      %v1375 = verf.f32.pop %v1263
      %v1376 = verf.f32.pop %v1264
      %v1377 = verf.f32.pop %v1265
      %v1378 = verf.f32.pop %v1266
      %v1379 = verf.f32.pop %v1267
      %v1380 = verf.f32.pop %v1268
      %v1381 = verf.f32.pop %v1269
      %v1382 = verf.f32.pop %v1270
      %v1383 = verf.f32.pop %v1271
      %v1384 = verf.f32.pop %v1272
      %v1385 = verf.f32.pop %v1273
      %v1386 = verf.f32.pop %v1274
      %v1387 = verf.f32.pop %v1275
      %v1388 = verf.f32.pop %v1276
      %v1389 = verf.f32.pop %v1277
      %v1390 = verf.f32.pop %v1278
      %v1391 = verf.f32.pop %v1279
      %v1392 = verf.f32.pop %v1280
      %v1393 = verf.f32.pop %v1281
      %v1394 = verf.f32.pop %v1282
      %v1395 = verf.f32.pop %v1283
      %v1396 = vadd.f32 %v1284, 1.0
      %v1397 = vadd.f32 %v1285, 1.0
      %v1398 = vadd.f32 %v1286, 1.0
      %v1399 = vadd.f32 %v1287, 1.0
      %v1400 = vadd.f32 %v1288, 1.0
      %v1401 = vadd.f32 %v1289, 1.0
      %v1402 = vadd.f32 %v1290, 1.0
      %v1403 = vadd.f32 %v1291, 1.0
      %v1404 = vadd.f32 %v1292, 1.0
      %v1405 = vadd.f32 %v1293, 1.0
      %v1406 = vadd.f32 %v1294, 1.0
      %v1407 = vadd.f32 %v1295, 1.0
      %v1408 = vadd.f32 %v1296, 1.0
      %v1409 = vadd.f32 %v1297, 1.0
      %v1410 = vadd.f32 %v1298, 1.0
      %v1411 = vadd.f32 %v1299, 1.0
      %v1412 = vadd.f32 %v1300, 1.0
      %v1413 = vadd.f32 %v1301, 1.0
      %v1414 = vadd.f32 %v1302, 1.0
      %v1415 = vadd.f32 %v1303, 1.0
      %v1416 = vadd.f32 %v1304, 1.0
      %v1417 = vadd.f32 %v1305, 1.0
      %v1418 = vadd.f32 %v1306, 1.0
      %v1419 = vadd.f32 %v1307, 1.0
      %v1420 = vadd.f32 %v1308, 1.0
      %v1421 = vadd.f32 %v1309, 1.0
      %v1422 = vadd.f32 %v1310, 1.0
      %v1423 = vadd.f32 %v1311, 1.0
      %v1424 = vadd.f32 %v1312, 1.0
      %v1425 = vadd.f32 %v1313, 1.0
      %v1426 = vadd.f32 %v1314, 1.0
      %v1427 = vadd.f32 %v1315, 1.0
      %v1428 = vadd.f32 %v1316, 1.0
      %v1429 = vadd.f32 %v1317, 1.0
      %v1430 = vadd.f32 %v1318, 1.0
      %v1431 = vadd.f32 %v1319, 1.0
      %v1432 = vadd.f32 %v1320, 1.0
      %v1433 = vadd.f32 %v1321, 1.0
      %v1434 = vadd.f32 %v1322, 1.0
      %v1435 = vadd.f32 %v1323, 1.0
      %v1436 = vadd.f32 %v1324, 1.0
      %v1437 = vadd.f32 %v1325, 1.0
      %v1438 = vadd.f32 %v1326, 1.0
      %v1439 = vadd.f32 %v1327, 1.0
      %v1440 = vadd.f32 %v1328, 1.0
      %v1441 = vadd.f32 %v1329, 1.0
      %v1442 = vadd.f32 %v1330, 1.0
      %v1443 = vadd.f32 %v1331, 1.0
      %v1444 = vadd.f32 %v1332, 1.0
      %v1445 = vadd.f32 %v1333, 1.0
      %v1446 = vadd.f32 %v1334, 1.0
      %v1447 = vadd.f32 %v1335, 1.0
      %v1448 = vadd.f32 %v1336, 1.0
      %v1449 = vadd.f32 %v1337, 1.0
      %v1450 = vadd.f32 %v1338, 1.0
      %v1451 = vadd.f32 %v1339, 1.0
      %v1452 = vadd.f32 %v1340, 1.0
      %v1453 = vadd.f32 %v1341, 1.0
      %v1454 = vadd.f32 %v1342, 1.0
      %v1455 = vadd.f32 %v1343, 1.0
      %v1456 = vadd.f32 %v1344, 1.0
      %v1457 = vadd.f32 %v1345, 1.0
      %v1458 = vadd.f32 %v1346, 1.0
      %v1459 = vadd.f32 %v1347, 1.0
      %v1460 = vadd.f32 %v1348, 1.0
      %v1461 = vadd.f32 %v1349, 1.0
      %v1462 = vadd.f32 %v1350, 1.0
      %v1463 = vadd.f32 %v1351, 1.0
      %v1464 = vadd.f32 %v1352, 1.0
      %v1465 = vadd.f32 %v1353, 1.0
      %v1466 = vadd.f32 %v1354, 1.0
      %v1467 = vadd.f32 %v1355, 1.0
      %v1468 = vadd.f32 %v1356, 1.0
      %v1469 = vadd.f32 %v1357, 1.0
      %v1470 = vadd.f32 %v1358, 1.0
      %v1471 = vadd.f32 %v1359, 1.0
      %v1472 = vadd.f32 %v1360, 1.0
      %v1473 = vadd.f32 %v1361, 1.0
      %v1474 = vadd.f32 %v1362, 1.0
      %v1475 = vadd.f32 %v1363, 1.0
      %v1476 = vadd.f32 %v1364, 1.0
      %v1477 = vadd.f32 %v1365, 1.0
      %v1478 = vadd.f32 %v1366, 1.0
      %v1479 = vadd.f32 %v1367, 1.0
      %v1480 = vadd.f32 %v1368, 1.0
      %v1481 = vadd.f32 %v1369, 1.0
      %v1482 = vadd.f32 %v1370, 1.0
      %v1483 = vadd.f32 %v1371, 1.0
      %v1484 = vadd.f32 %v1372, 1.0
      %v1485 = vadd.f32 %v1373, 1.0
      %v1486 = vadd.f32 %v1374, 1.0
      %v1487 = vadd.f32 %v1375, 1.0
      %v1488 = vadd.f32 %v1376, 1.0
      %v1489 = vadd.f32 %v1377, 1.0
      %v1490 = vadd.f32 %v1378, 1.0
      %v1491 = vadd.f32 %v1379, 1.0
      %v1492 = vadd.f32 %v1380, 1.0
      %v1493 = vadd.f32 %v1381, 1.0
      %v1494 = vadd.f32 %v1382, 1.0
      %v1495 = vadd.f32 %v1383, 1.0
      %v1496 = vadd.f32 %v1384, 1.0
      %v1497 = vadd.f32 %v1385, 1.0
      %v1498 = vadd.f32 %v1386, 1.0
      %v1499 = vadd.f32 %v1387, 1.0
      %v1500 = vadd.f32 %v1388, 1.0
      %v1501 = vadd.f32 %v1389, 1.0
      %v1502 = vadd.f32 %v1390, 1.0
      %v1503 = vadd.f32 %v1391, 1.0
      %v1504 = vadd.f32 %v1392, 1.0
      %v1505 = vadd.f32 %v1393, 1.0
      %v1506 = vadd.f32 %v1394, 1.0
      %v1507 = vadd.f32 %v1395, 1.0
      %v1508 = vmul.f32 %v1060, %v1396
      %v1509 = vmul.f32 %v1061, %v1397
      %v1510 = vmul.f32 %v1062, %v1398
      %v1511 = vmul.f32 %v1063, %v1399
      %v1512 = vmul.f32 %v1064, %v1400
      %v1513 = vmul.f32 %v1065, %v1401
      %v1514 = vmul.f32 %v1066, %v1402
      %v1515 = vmul.f32 %v1067, %v1403
      %v1516 = vmul.f32 %v1068, %v1404
      %v1517 = vmul.f32 %v1069, %v1405
      %v1518 = vmul.f32 %v1070, %v1406
      %v1519 = vmul.f32 %v1071, %v1407
      %v1520 = vmul.f32 %v1072, %v1408
      %v1521 = vmul.f32 %v1073, %v1409
      %v1522 = vmul.f32 %v1074, %v1410
      %v1523 = vmul.f32 %v1075, %v1411
      %v1524 = vmul.f32 %v1076, %v1412
      %v1525 = vmul.f32 %v1077, %v1413
      %v1526 = vmul.f32 %v1078, %v1414
      %v1527 = vmul.f32 %v1079, %v1415
      %v1528 = vmul.f32 %v1080, %v1416
      %v1529 = vmul.f32 %v1081, %v1417
      %v1530 = vmul.f32 %v1082, %v1418
      %v1531 = vmul.f32 %v1083, %v1419
      %v1532 = vmul.f32 %v1084, %v1420
      %v1533 = vmul.f32 %v1085, %v1421
      %v1534 = vmul.f32 %v1086, %v1422
      %v1535 = vmul.f32 %v1087, %v1423
      %v1536 = vmul.f32 %v1088, %v1424
      %v1537 = vmul.f32 %v1089, %v1425
      %v1538 = vmul.f32 %v1090, %v1426
      %v1539 = vmul.f32 %v1091, %v1427
      %v1540 = vmul.f32 %v1092, %v1428
      %v1541 = vmul.f32 %v1093, %v1429
      %v1542 = vmul.f32 %v1094, %v1430
      %v1543 = vmul.f32 %v1095, %v1431
      %v1544 = vmul.f32 %v1096, %v1432
      %v1545 = vmul.f32 %v1097, %v1433
      %v1546 = vmul.f32 %v1098, %v1434
      %v1547 = vmul.f32 %v1099, %v1435
      %v1548 = vmul.f32 %v1100, %v1436
      %v1549 = vmul.f32 %v1101, %v1437
      %v1550 = vmul.f32 %v1102, %v1438
      %v1551 = vmul.f32 %v1103, %v1439
      %v1552 = vmul.f32 %v1104, %v1440
      %v1553 = vmul.f32 %v1105, %v1441
      %v1554 = vmul.f32 %v1106, %v1442
      %v1555 = vmul.f32 %v1107, %v1443
      %v1556 = vmul.f32 %v1108, %v1444
      %v1557 = vmul.f32 %v1109, %v1445
      %v1558 = vmul.f32 %v1110, %v1446
      %v1559 = vmul.f32 %v1111, %v1447
      %v1560 = vmul.f32 %v1112, %v1448
      %v1561 = vmul.f32 %v1113, %v1449
      %v1562 = vmul.f32 %v1114, %v1450
      %v1563 = vmul.f32 %v1115, %v1451
      %v1564 = vmul.f32 %v1116, %v1452
      %v1565 = vmul.f32 %v1117, %v1453
      %v1566 = vmul.f32 %v1118, %v1454
      %v1567 = vmul.f32 %v1119, %v1455
      %v1568 = vmul.f32 %v1120, %v1456
      %v1569 = vmul.f32 %v1121, %v1457
      %v1570 = vmul.f32 %v1122, %v1458
      %v1571 = vmul.f32 %v1123, %v1459
      %v1572 = vmul.f32 %v1124, %v1460
      %v1573 = vmul.f32 %v1125, %v1461
      %v1574 = vmul.f32 %v1126, %v1462
      %v1575 = vmul.f32 %v1127, %v1463
      %v1576 = vmul.f32 %v1128, %v1464
      %v1577 = vmul.f32 %v1129, %v1465
      %v1578 = vmul.f32 %v1130, %v1466
      %v1579 = vmul.f32 %v1131, %v1467
      %v1580 = vmul.f32 %v1132, %v1468
      %v1581 = vmul.f32 %v1133, %v1469
      %v1582 = vmul.f32 %v1134, %v1470
      %v1583 = vmul.f32 %v1135, %v1471
      %v1584 = vmul.f32 %v1136, %v1472
      %v1585 = vmul.f32 %v1137, %v1473
      %v1586 = vmul.f32 %v1138, %v1474
      %v1587 = vmul.f32 %v1139, %v1475
      %v1588 = vmul.f32 %v1140, %v1476
      %v1589 = vmul.f32 %v1141, %v1477
      %v1590 = vmul.f32 %v1142, %v1478
      %v1591 = vmul.f32 %v1143, %v1479
      %v1592 = vmul.f32 %v1144, %v1480
      %v1593 = vmul.f32 %v1145, %v1481
      %v1594 = vmul.f32 %v1146, %v1482
      %v1595 = vmul.f32 %v1147, %v1483
      %v1596 = vmul.f32 %v1148, %v1484
      %v1597 = vmul.f32 %v1149, %v1485
      %v1598 = vmul.f32 %v1150, %v1486
      %v1599 = vmul.f32 %v1151, %v1487
      %v1600 = vmul.f32 %v1152, %v1488
      %v1601 = vmul.f32 %v1153, %v1489
      %v1602 = vmul.f32 %v1154, %v1490
      %v1603 = vmul.f32 %v1155, %v1491
      %v1604 = vmul.f32 %v1156, %v1492
      %v1605 = vmul.f32 %v1157, %v1493
      %v1606 = vmul.f32 %v1158, %v1494
      %v1607 = vmul.f32 %v1159, %v1495
      %v1608 = vmul.f32 %v1160, %v1496
      %v1609 = vmul.f32 %v1161, %v1497
      %v1610 = vmul.f32 %v1162, %v1498
      %v1611 = vmul.f32 %v1163, %v1499
      %v1612 = vmul.f32 %v1164, %v1500
      %v1613 = vmul.f32 %v1165, %v1501
      %v1614 = vmul.f32 %v1166, %v1502
      %v1615 = vmul.f32 %v1167, %v1503
      %v1616 = vmul.f32 %v1168, %v1504
      %v1617 = vmul.f32 %v1169, %v1505
      %v1618 = vmul.f32 %v1170, %v1506
      %v1619 = vmul.f32 %v1171, %v1507
      %v1620 = vld [vmem:[%s3] sm:$0x3]
      %v1621 = vld [vmem:[%s4] sm:$0x3]
      %1623 = vset.pattern.permute.xlu0 0
      %1624 = vperm.xlu0 %1623, %v1621
      %v1625 = vpop.permute.xlu0 %1624
      %1627 = vmatprep.subr.mxu0 %v1509
      %1628 = vmatpush1.msra.mxu0 %v1508
      %1629 = vmatprep.subr.mxu0 %v1516
      %1630 = vmatpush1.msra.mxu0 %v1515
      %1631 = vmatprep.subr.mxu0 %v1523
      %1632 = vmatpush1.msra.mxu0 %v1522
      %1633 = vmatprep.subr.mxu0 %v1530
      %1634 = vmatpush1.msra.mxu0 %v1529
      %1635 = vmatprep.subr.mxu0 %v1537
      %1636 = vmatpush1.msra.mxu0 %v1536
      %1637 = vmatprep.subr.mxu0 %v1544
      %1638 = vmatpush1.msra.mxu0 %v1543
      %1639 = vmatprep.subr.mxu0 %v1551
      %1640 = vmatpush1.msra.mxu0 %v1550
      %1641 = vmatprep.subr.mxu0 %v1558
      %1642 = vmatpush1.msra.mxu0 %v1557
      %1643 = vmatprep.subr.mxu0 %v1565
      %1644 = vmatpush1.msra.mxu0 %v1564
      %1645 = vmatprep.subr.mxu0 %v1572
      %1646 = vmatpush1.msra.mxu0 %v1571
      %1647 = vmatprep.subr.mxu0 %v1579
      %1648 = vmatpush1.msra.mxu0 %v1578
      %1649 = vmatprep.subr.mxu0 %v1586
      %1650 = vmatpush1.msra.mxu0 %v1585
      %1651 = vmatprep.subr.mxu0 %v1593
      %1652 = vmatpush1.msra.mxu0 %v1592
      %1653 = vmatprep.subr.mxu0 %v1600
      %1654 = vmatpush1.msra.mxu0 %v1599
      %1655 = vmatprep.subr.mxu0 %v1607
      %1656 = vmatpush1.msra.mxu0 %v1606
      %1657 = vmatprep.subr.mxu0 %v1614
      %1658 = vmatpush1.msra.mxu0 %v1613
      %1659 = vmatprep.subr.mxu0 0.0
      %1660 = vmatpush1.msra.mxu0 0.0
      %1661 = vmatprep.subr.mxu0 0.0
      %1662 = vmatpush1.msra.mxu0 0.0
      %1663 = vmatprep.subr.mxu0 0.0
      %1664 = vmatpush1.msra.mxu0 0.0
      %1665 = vmatprep.subr.mxu0 0.0
      %1666 = vmatpush1.msra.mxu0 0.0
      %1667 = vmatprep.subr.mxu0 0.0
      %1668 = vmatpush1.msra.mxu0 0.0
      %1669 = vmatprep.subr.mxu0 0.0
      %1670 = vmatpush1.msra.mxu0 0.0
      %1671 = vmatprep.subr.mxu0 0.0
      %1672 = vmatpush1.msra.mxu0 0.0
      %1673 = vmatprep.subr.mxu0 0.0
      %1674 = vmatpush1.msra.mxu0 0.0
      %1675 = vmatprep.subr.mxu0 0.0
      %1676 = vmatpush1.msra.mxu0 0.0
      %1677 = vmatprep.subr.mxu0 0.0
      %1678 = vmatpush1.msra.mxu0 0.0
      %1679 = vmatprep.subr.mxu0 0.0
      %1680 = vmatpush1.msra.mxu0 0.0
      %1681 = vmatprep.subr.mxu0 0.0
      %1682 = vmatpush1.msra.mxu0 0.0
      %1683 = vmatprep.subr.mxu0 0.0
      %1684 = vmatpush1.msra.mxu0 0.0
      %1685 = vmatprep.subr.mxu0 0.0
      %1686 = vmatpush1.msra.mxu0 0.0
      %1687 = vmatprep.subr.mxu0 0.0
      %1688 = vmatpush1.msra.mxu0 0.0
      %1689 = vmatprep.subr.mxu0 0.0
      %1690 = vmatpush1.msra.mxu0 0.0
      %1691 = vmatprep.mubr.f32.mxu0 0.0
      %1692 = vmatmul.mubr.f32.gmra.mrb[0].mxu0 %v1620
      %v1693 = vpop.f32.mrb[0].mxu0
      %v1694 = vadd.f32 %v1625, %v1693
      %v1695 = vpop.f32.mrb[0].mxu0
      %v1696 = vadd.f32 %v1625, %v1695
      %1697 = vdwg.mxu0
      %1698 = vmatprep.subr.mxu0 %v1511
      %1699 = vmatpush1.msra.mxu0 %v1510
      %1700 = vmatprep.subr.mxu0 %v1518
      %1701 = vmatpush1.msra.mxu0 %v1517
      %1702 = vmatprep.subr.mxu0 %v1525
      %1703 = vmatpush1.msra.mxu0 %v1524
      %1704 = vmatprep.subr.mxu0 %v1532
      %1705 = vmatpush1.msra.mxu0 %v1531
      %1706 = vmatprep.subr.mxu0 %v1539
      %1707 = vmatpush1.msra.mxu0 %v1538
      %1708 = vmatprep.subr.mxu0 %v1546
      %1709 = vmatpush1.msra.mxu0 %v1545
      %1710 = vmatprep.subr.mxu0 %v1553
      %1711 = vmatpush1.msra.mxu0 %v1552
      %1712 = vmatprep.subr.mxu0 %v1560
      %1713 = vmatpush1.msra.mxu0 %v1559
      %1714 = vmatprep.subr.mxu0 %v1567
      %1715 = vmatpush1.msra.mxu0 %v1566
      %1716 = vmatprep.subr.mxu0 %v1574
      %1717 = vmatpush1.msra.mxu0 %v1573
      %1718 = vmatprep.subr.mxu0 %v1581
      %1719 = vmatpush1.msra.mxu0 %v1580
      %1720 = vmatprep.subr.mxu0 %v1588
      %1721 = vmatpush1.msra.mxu0 %v1587
      %1722 = vmatprep.subr.mxu0 %v1595
      %1723 = vmatpush1.msra.mxu0 %v1594
      %1724 = vmatprep.subr.mxu0 %v1602
      %1725 = vmatpush1.msra.mxu0 %v1601
      %1726 = vmatprep.subr.mxu0 %v1609
      %1727 = vmatpush1.msra.mxu0 %v1608
      %1728 = vmatprep.subr.mxu0 %v1616
      %1729 = vmatpush1.msra.mxu0 %v1615
      %1730 = vmatprep.subr.mxu0 0.0
      %1731 = vmatpush1.msra.mxu0 0.0
      %1732 = vmatprep.subr.mxu0 0.0
      %1733 = vmatpush1.msra.mxu0 0.0
      %1734 = vmatprep.subr.mxu0 0.0
      %1735 = vmatpush1.msra.mxu0 0.0
      %1736 = vmatprep.subr.mxu0 0.0
      %1737 = vmatpush1.msra.mxu0 0.0
      %1738 = vmatprep.subr.mxu0 0.0
      %1739 = vmatpush1.msra.mxu0 0.0
      %1740 = vmatprep.subr.mxu0 0.0
      %1741 = vmatpush1.msra.mxu0 0.0
      %1742 = vmatprep.subr.mxu0 0.0
      %1743 = vmatpush1.msra.mxu0 0.0
      %1744 = vmatprep.subr.mxu0 0.0
      %1745 = vmatpush1.msra.mxu0 0.0
      %1746 = vmatprep.subr.mxu0 0.0
      %1747 = vmatpush1.msra.mxu0 0.0
      %1748 = vmatprep.subr.mxu0 0.0
      %1749 = vmatpush1.msra.mxu0 0.0
      %1750 = vmatprep.subr.mxu0 0.0
      %1751 = vmatpush1.msra.mxu0 0.0
      %1752 = vmatprep.subr.mxu0 0.0
      %1753 = vmatpush1.msra.mxu0 0.0
      %1754 = vmatprep.subr.mxu0 0.0
      %1755 = vmatpush1.msra.mxu0 0.0
      %1756 = vmatprep.subr.mxu0 0.0
      %1757 = vmatpush1.msra.mxu0 0.0
      %1758 = vmatprep.subr.mxu0 0.0
      %1759 = vmatpush1.msra.mxu0 0.0
      %1760 = vmatprep.subr.mxu0 0.0
      %1761 = vmatpush1.msra.mxu0 0.0
      %1762 = vmatprep.mubr.f32.mxu0 0.0
      %1763 = vmatmul.mubr.f32.gmra.mrb[0].mxu0 %v1620
      %v1764 = vpop.f32.mrb[0].mxu0
      %v1765 = vadd.f32 %v1625, %v1764
      %v1766 = vpop.f32.mrb[0].mxu0
      %v1767 = vadd.f32 %v1625, %v1766
      %1768 = vdwg.mxu0
      %1769 = vmatprep.subr.mxu0 %v1513
      %1770 = vmatpush1.msra.mxu0 %v1512
      %1771 = vmatprep.subr.mxu0 %v1520
      %1772 = vmatpush1.msra.mxu0 %v1519
      %1773 = vmatprep.subr.mxu0 %v1527
      %1774 = vmatpush1.msra.mxu0 %v1526
      %1775 = vmatprep.subr.mxu0 %v1534
      %1776 = vmatpush1.msra.mxu0 %v1533
      %1777 = vmatprep.subr.mxu0 %v1541
      %1778 = vmatpush1.msra.mxu0 %v1540
      %1779 = vmatprep.subr.mxu0 %v1548
      %1780 = vmatpush1.msra.mxu0 %v1547
      %1781 = vmatprep.subr.mxu0 %v1555
      %1782 = vmatpush1.msra.mxu0 %v1554
      %1783 = vmatprep.subr.mxu0 %v1562
      %1784 = vmatpush1.msra.mxu0 %v1561
      %1785 = vmatprep.subr.mxu0 %v1569
      %1786 = vmatpush1.msra.mxu0 %v1568
      %1787 = vmatprep.subr.mxu0 %v1576
      %1788 = vmatpush1.msra.mxu0 %v1575
      %1789 = vmatprep.subr.mxu0 %v1583
      %1790 = vmatpush1.msra.mxu0 %v1582
      %1791 = vmatprep.subr.mxu0 %v1590
      %1792 = vmatpush1.msra.mxu0 %v1589
      %1793 = vmatprep.subr.mxu0 %v1597
      %1794 = vmatpush1.msra.mxu0 %v1596
      %1795 = vmatprep.subr.mxu0 %v1604
      %1796 = vmatpush1.msra.mxu0 %v1603
      %1797 = vmatprep.subr.mxu0 %v1611
      %1798 = vmatpush1.msra.mxu0 %v1610
      %1799 = vmatprep.subr.mxu0 %v1618
      %1800 = vmatpush1.msra.mxu0 %v1617
      %1801 = vmatprep.subr.mxu0 0.0
      %1802 = vmatpush1.msra.mxu0 0.0
      %1803 = vmatprep.subr.mxu0 0.0
      %1804 = vmatpush1.msra.mxu0 0.0
      %1805 = vmatprep.subr.mxu0 0.0
      %1806 = vmatpush1.msra.mxu0 0.0
      %1807 = vmatprep.subr.mxu0 0.0
      %1808 = vmatpush1.msra.mxu0 0.0
      %1809 = vmatprep.subr.mxu0 0.0
      %1810 = vmatpush1.msra.mxu0 0.0
      %1811 = vmatprep.subr.mxu0 0.0
      %1812 = vmatpush1.msra.mxu0 0.0
      %1813 = vmatprep.subr.mxu0 0.0
      %1814 = vmatpush1.msra.mxu0 0.0
      %1815 = vmatprep.subr.mxu0 0.0
      %1816 = vmatpush1.msra.mxu0 0.0
      %1817 = vmatprep.subr.mxu0 0.0
      %1818 = vmatpush1.msra.mxu0 0.0
      %1819 = vmatprep.subr.mxu0 0.0
      %1820 = vmatpush1.msra.mxu0 0.0
      %1821 = vmatprep.subr.mxu0 0.0
      %1822 = vmatpush1.msra.mxu0 0.0
      %1823 = vmatprep.subr.mxu0 0.0
      %1824 = vmatpush1.msra.mxu0 0.0
      %1825 = vmatprep.subr.mxu0 0.0
      %1826 = vmatpush1.msra.mxu0 0.0
      %1827 = vmatprep.subr.mxu0 0.0
      %1828 = vmatpush1.msra.mxu0 0.0
      %1829 = vmatprep.subr.mxu0 0.0
      %1830 = vmatpush1.msra.mxu0 0.0
      %1831 = vmatprep.subr.mxu0 0.0
      %1832 = vmatpush1.msra.mxu0 0.0
      %1833 = vmatprep.mubr.f32.mxu0 0.0
      %1834 = vmatmul.mubr.f32.gmra.mrb[0].mxu0 %v1620
      %v1835 = vpop.f32.mrb[0].mxu0
      %v1836 = vadd.f32 %v1625, %v1835
      %v1837 = vpop.f32.mrb[0].mxu0
      %v1838 = vadd.f32 %v1625, %v1837
      %1839 = vdwg.mxu0
      %1840 = vmatprep.subr.mxu0 0.0
      %1841 = vmatpush1.msra.mxu0 %v1514
      %1842 = vmatprep.subr.mxu0 0.0
      %1843 = vmatpush1.msra.mxu0 %v1521
      %1844 = vmatprep.subr.mxu0 0.0
      %1845 = vmatpush1.msra.mxu0 %v1528
      %1846 = vmatprep.subr.mxu0 0.0
      %1847 = vmatpush1.msra.mxu0 %v1535
      %1848 = vmatprep.subr.mxu0 0.0
      %1849 = vmatpush1.msra.mxu0 %v1542
      %1850 = vmatprep.subr.mxu0 0.0
      %1851 = vmatpush1.msra.mxu0 %v1549
      %1852 = vmatprep.subr.mxu0 0.0
      %1853 = vmatpush1.msra.mxu0 %v1556
      %1854 = vmatprep.subr.mxu0 0.0
      %1855 = vmatpush1.msra.mxu0 %v1563
      %1856 = vmatprep.subr.mxu0 0.0
      %1857 = vmatpush1.msra.mxu0 %v1570
      %1858 = vmatprep.subr.mxu0 0.0
      %1859 = vmatpush1.msra.mxu0 %v1577
      %1860 = vmatprep.subr.mxu0 0.0
      %1861 = vmatpush1.msra.mxu0 %v1584
      %1862 = vmatprep.subr.mxu0 0.0
      %1863 = vmatpush1.msra.mxu0 %v1591
      %1864 = vmatprep.subr.mxu0 0.0
      %1865 = vmatpush1.msra.mxu0 %v1598
      %1866 = vmatprep.subr.mxu0 0.0
      %1867 = vmatpush1.msra.mxu0 %v1605
      %1868 = vmatprep.subr.mxu0 0.0
      %1869 = vmatpush1.msra.mxu0 %v1612
      %1870 = vmatprep.subr.mxu0 0.0
      %1871 = vmatpush1.msra.mxu0 %v1619
      %1872 = vmatprep.subr.mxu0 0.0
      %1873 = vmatpush1.msra.mxu0 0.0
      %1874 = vmatprep.subr.mxu0 0.0
      %1875 = vmatpush1.msra.mxu0 0.0
      %1876 = vmatprep.subr.mxu0 0.0
      %1877 = vmatpush1.msra.mxu0 0.0
      %1878 = vmatprep.subr.mxu0 0.0
      %1879 = vmatpush1.msra.mxu0 0.0
      %1880 = vmatprep.subr.mxu0 0.0
      %1881 = vmatpush1.msra.mxu0 0.0
      %1882 = vmatprep.subr.mxu0 0.0
      %1883 = vmatpush1.msra.mxu0 0.0
      %1884 = vmatprep.subr.mxu0 0.0
      %1885 = vmatpush1.msra.mxu0 0.0
      %1886 = vmatprep.subr.mxu0 0.0
      %1887 = vmatpush1.msra.mxu0 0.0
      %1888 = vmatprep.subr.mxu0 0.0
      %1889 = vmatpush1.msra.mxu0 0.0
      %1890 = vmatprep.subr.mxu0 0.0
      %1891 = vmatpush1.msra.mxu0 0.0
      %1892 = vmatprep.subr.mxu0 0.0
      %1893 = vmatpush1.msra.mxu0 0.0
      %1894 = vmatprep.subr.mxu0 0.0
      %1895 = vmatpush1.msra.mxu0 0.0
      %1896 = vmatprep.subr.mxu0 0.0
      %1897 = vmatpush1.msra.mxu0 0.0
      %1898 = vmatprep.subr.mxu0 0.0
      %1899 = vmatpush1.msra.mxu0 0.0
      %1900 = vmatprep.subr.mxu0 0.0
      %1901 = vmatpush1.msra.mxu0 0.0
      %1902 = vmatprep.subr.mxu0 0.0
      %1903 = vmatpush1.msra.mxu0 0.0
      %1904 = vmatprep.mubr.f32.mxu0 0.0
      %1905 = vmatmul.mubr.f32.gmra.mrb[0].mxu0 %v1620
      %v1906 = vpop.f32.mrb[0].mxu0
      %v1907 = vadd.f32 %v1625, %v1906
      %v1908 = vpop.f32.mrb[0].mxu0
      %1909 = vdwg.mxu0
      %v1917 = vcombine.low %v1694, %v1696
      %v1918 = vcombine.low %v1765, %v1767
      %v1920 = vunpack.c.l.s4 1983009808
      %v1921 = vunpack.c.0.s8 %v1920
      %v1922 = vlaneseq
      %v1923 = vshrl.u32 %v1922, 7
      %v1924 = vsub.s32 %v1921, %v1923
      %v1925 = vrot.slane %v1917, %v1924
      %v1927 = vunpack.c.l.s4 1983009808
      %v1928 = vunpack.c.0.s8 %v1927
      %v1929 = vlaneseq
      %v1930 = vshrl.u32 %v1929, 7
      %v1931 = vsub.s32 %v1928, %v1930
      %v1932 = vrot.slane %v1918, %v1931
      %v1933 = vcombine.low %v1925, %v1932
      %v1934 = vcombine.low %v1836, %v1838
      %v1936 = vunpack.c.l.s4 1983009808
      %v1937 = vunpack.c.0.s8 %v1936
      %v1938 = vlaneseq
      %v1939 = vshrl.u32 %v1938, 7
      %v1940 = vsub.s32 %v1937, %v1939
      %v1941 = vrot.slane %v1934, %v1940
      %v1943 = vunpack.c.l.s4 1983009808
      %v1944 = vunpack.c.0.s8 %v1943
      %v1945 = vlaneseq
      %v1946 = vshrl.u32 %v1945, 7
      %v1947 = vsub.s32 %v1944, %v1946
      %v1948 = vrot.slane %v1907, %v1947
      %v1949 = vcombine.low %v1941, %v1948
      %1952 = vst [vmem:[%s262] sm:$0xff] %v1933
      %1953 = vst [vmem:[%s262 + $0x8] sm:$0x3f] %v1949
      %s1954 = smul.u32 7, %s21
      %p1955 = scmp.lt.s32.totalorder %s20, 1
      %s1956 = scalar_select %p1955, %s20, 1
      %p1957 = scmp.lt.s32.totalorder %s1954, 6
      %s1958 = scalar_select %p1957, %s1954, 6
      %s1959 = smul.addr %s1956, 7
      %s1960 = sadd.s32 %s1958, %s1959
      %s1961 = smul.addr %s1960, 2
      %s1962 = scalar_lea.vmem %s5, %s1961
      // Predicated region
      $region41: #{fno3d_binseg_forward.19} parent=39 // pred_check
        %p1963 = pneg %p160
      $region42: #{fno3d_binseg_forward.19} parent=39 // pred_check_branch
        %1965 = sbr.rel (%p1963) target = $region44
      $region43: #{fno3d_binseg_forward.19} parent=39 // pred_region
        %s1966 = smul.u32 7, %s21
      $region44: #{fno3d_binseg_forward.19} parent=39 // pred_fallthru
        _
    $region40: #{fno3d_binseg_forward.19} parent=5 // pred_fallthru
      _
    %p1967 = scmp.le.s32.totalorder 2, %s11
    // Predicated region
    $region45: #{fno3d_binseg_forward.19} parent=5 // pred_check
      %p1968 = pneg %p1967
    $region46: #{fno3d_binseg_forward.19} parent=5 // pred_check_branch
      %1970 = sbr.rel (%p1968) target = $region48
    $region47: #{fno3d_binseg_forward.19} parent=5 // pred_region
      %s1971 = ssub.s32 %s11, 2
      // Predicated region
      $region49: #{fno3d_binseg_forward.19} parent=47 // pred_check
        %p1972 = pneg %p166
      $region50: #{fno3d_binseg_forward.19} parent=47 // pred_check_branch
        %1974 = sbr.rel (%p1972) target = $region52
      $region51: #{fno3d_binseg_forward.19} parent=47 // pred_region
        %s1975 = smul.u32 7, %s23
        %p1976 = scmp.lt.s32.totalorder %s22, 1
        %s1977 = scalar_select %p1976, %s22, 1
        %p1978 = scmp.lt.s32.totalorder %s1975, 6
        %s1979 = scalar_select %p1978, %s1975, 6
        %s1980 = smul.addr %s1977, 7
        %s1981 = sadd.s32 %s1979, %s1980
        %s1982 = smul.addr %s1981, 2
        %s1983 = scalar_lea.vmem %s5, %s1982
      $region52: #{fno3d_binseg_forward.19} parent=47 // pred_fallthru
        _
    $region48: #{fno3d_binseg_forward.19} parent=5 // pred_fallthru
      _
  $region6: #{fno3d_binseg_forward.19} parent=0 // loop_footer
    %s15 = sadd.s32 1, %s11
  $region7: #{fno3d_binseg_forward.19} parent=0 // loop_footer_branch
    %10 = sbr.rel target = $region3
  $region8: #{fno3d_binseg_forward.19} parent=0 // loop_exit
    _

</llo_original>
